<compile_context>
chip_gen: v7x
topology: tpu7x:2x2x1
jax: 0.10.0
libtpu: 0.0.40
codegen_flags: <defaults>
</compile_context>

<pallas_src>
import functools
import math

import jax
import jax.numpy as jnp
from jax import lax
from jax.experimental import pallas as pl
from jax.experimental.pallas import tpu as pltpu


# ------------------------------ small helpers -------------------------------

def _pick_tile(dim, preferred, align):
    """Largest multiple of `align` that divides `dim`, capped at `preferred`.
    Falls back to the full dimension (always a legal block shape)."""
    if dim % align != 0:
        return dim
    t = min(preferred, dim)
    t -= t % align
    while dim % t:
        t -= align
    return t


def _cparams(dims, blocks):
    """CompilerParams with a per-call VMEM budget.

    blocks: [(block_shape, dtype), ...] for the large operands of this call.
    Budget = double-buffered pipeline copies of every block + headroom, clamped
    to 48 MiB so the same setting is legal on v7x (64 MiB physical VMEM) as
    well as v5e/v6e (128 MiB).
    """
    nbytes = sum(math.prod(s) * jnp.dtype(d).itemsize for s, d in blocks)
    limit = int(min(max(4 * nbytes + (2 << 20), 8 << 20), 48 << 20))
    return pltpu.CompilerParams(dimension_semantics=dims, vmem_limit_bytes=limit)


def _fold_bn(gamma, beta, mean, var, eps=1e-5):
    scale = gamma / jnp.sqrt(var + eps)
    bias = beta - mean * scale
    return scale, bias


# ----------------------------- Pallas kernels ------------------------------

def _matmul_bn_kernel(x_ref, w_ref, scale_ref, bias_ref, o_ref, acc_ref, *, relu):
    """(M,K)@(K,N) tiled over (M, N, K); f32 VMEM accumulator; BN affine
    (+ optional ReLU) epilogue applied at the last K step."""
    @pl.when(pl.program_id(2) == 0)
    def _():
        acc_ref[...] = jnp.zeros_like(acc_ref)

    acc_ref[...] += jnp.dot(x_ref[...], w_ref[...],
                            preferred_element_type=jnp.float32)

    @pl.when(pl.program_id(2) == pl.num_programs(2) - 1)
    def _():
        out = acc_ref[...] * scale_ref[...] + bias_ref[...]
        if relu:
            out = jnp.maximum(out, 0.0)
        o_ref[...] = out.astype(o_ref.dtype)


def _conv3x3_bn_relu_kernel(xph_ref, w_ref, scale_ref, bias_ref, o_ref, *, stride):
    """3x3 conv (padding=1, stride=s) + BN affine + ReLU for one image.

    The nine taps are an in-kernel reduction over the phase-split padded input
    (no im2col in HBM); each tap is a (Ho*Wo, C) @ (C, TN) MXU matmul
    accumulated in f32.
    """
    s = stride
    _, Ho, Wo, TN = o_ref.shape
    C = xph_ref.shape[-1]
    acc = jnp.zeros((Ho * Wo, TN), jnp.float32)
    for ky in range(3):
        for kx in range(3):
            phase = (ky % s) * s + (kx % s)
            r0, c0 = ky // s, kx // s
            patch = xph_ref[phase, r0:r0 + Ho, c0:c0 + Wo, :]   # (Ho, Wo, C)
            acc = acc + jnp.dot(patch.reshape(Ho * Wo, C),
                                w_ref[ky * 3 + kx],
                                preferred_element_type=jnp.float32)
    out = acc * scale_ref[...] + bias_ref[...]
    out = jnp.maximum(out, 0.0)
    o_ref[...] = out.reshape(1, Ho, Wo, TN).astype(o_ref.dtype)


def _conv3_bn_proj_add_relu_kernel(h2_ref, w3_ref, s3_ref, b3_ref,
                                   xs_ref, wsc_ref, ssc_ref, bsc_ref, o_ref):
    """relu( (h2@w3)*s3+b3 + (x_strided@w_sc)*ssc+bsc ) — conv3 + BN3 fused
    with the projection shortcut (conv+BN) and the residual add/ReLU."""
    main = jnp.dot(h2_ref[...], w3_ref[...], preferred_element_type=jnp.float32)
    main = main * s3_ref[...] + b3_ref[...]
    short = jnp.dot(xs_ref[...], wsc_ref[...], preferred_element_type=jnp.float32)
    short = short * ssc_ref[...] + bsc_ref[...]
    o_ref[...] = jnp.maximum(main + short, 0.0).astype(o_ref.dtype)


def _conv3_bn_ident_add_relu_kernel(h2_ref, w3_ref, s3_ref, b3_ref, res_ref, o_ref):
    """relu( (h2@w3)*s3+b3 + residual ) — conv3 + BN3 + identity shortcut."""
    main = jnp.dot(h2_ref[...], w3_ref[...], preferred_element_type=jnp.float32)
    main = main * s3_ref[...] + b3_ref[...]
    o_ref[...] = jnp.maximum(main + res_ref[...].astype(jnp.float32),
                             0.0).astype(o_ref.dtype)


# ----------------------------- pallas_call wrappers --------------------------

def matmul_bn(x, w, scale, bias, *, relu, out_dtype):
    """Tiled (pixels, Cin) @ (Cin, Cout) with folded-BN epilogue."""
    M, K = x.shape
    _, N = w.shape
    TM = _pick_tile(M, 256, 8)
    TN = _pick_tile(N, 256, 128)
    TK = _pick_tile(K, 512, 128)
    scale2 = scale.reshape(1, N).astype(jnp.float32)
    bias2 = bias.reshape(1, N).astype(jnp.float32)
    return pl.pallas_call(
        functools.partial(_matmul_bn_kernel, relu=relu),
        out_shape=jax.ShapeDtypeStruct((M, N), out_dtype),
        grid=(M // TM, N // TN, K // TK),
        in_specs=[
            pl.BlockSpec((TM, TK), lambda i, j, k: (i, k)),
            pl.BlockSpec((TK, TN), lambda i, j, k: (k, j)),
            pl.BlockSpec((1, TN), lambda i, j, k: (0, j)),
            pl.BlockSpec((1, TN), lambda i, j, k: (0, j)),
        ],
        out_specs=pl.BlockSpec((TM, TN), lambda i, j, k: (i, j)),
        scratch_shapes=[pltpu.VMEM((TM, TN), jnp.float32)],
        compiler_params=_cparams(
            ("parallel", "parallel", "arbitrary"),
            [((TM, TK), x.dtype), ((TK, TN), w.dtype),
             ((TM, TN), out_dtype), ((TM, TN), jnp.float32)]),
    )(x, w, scale2, bias2)


def _pad_and_phase_split(x_nhwc, stride):
    """Zero-pad spatially by 1 and split into stride*stride spatial phases.

    Returns (N * stride**2, Qh, Qw, C) where entry b*stride**2 + py*stride + px
    holds x_padded[b, py::stride, px::stride, :].  Cost: one rearrangement of
    h1's volume (vs. 9x for an HBM im2col).
    """
    N, H, W, C = x_nhwc.shape
    s = stride
    Hp, Wp = H + 2, W + 2
    Qh, Qw = -(-Hp // s), -(-Wp // s)
    xp = jnp.pad(x_nhwc,
                 ((0, 0), (1, 1 + Qh * s - Hp), (1, 1 + Qw * s - Wp), (0, 0)))
    xp = xp.reshape(N, Qh, s, Qw, s, C)
    xp = jnp.transpose(xp, (0, 2, 4, 1, 3, 5))      # (N, s, s, Qh, Qw, C)
    return xp.reshape(N * s * s, Qh, Qw, C), Qh, Qw


def conv3x3_bn_relu(xph, w9, scale, bias, *, stride, Ho, Wo, out_dtype):
    """3x3 conv + BN + ReLU; grid over (image, out-channel tile)."""
    nph = stride * stride
    NB = xph.shape[0] // nph
    _, Qh, Qw, C = xph.shape
    Cmid = w9.shape[-1]
    TN = _pick_tile(Cmid, 256, 128)
    scale2 = scale.reshape(1, Cmid).astype(jnp.float32)
    bias2 = bias.reshape(1, Cmid).astype(jnp.float32)
    return pl.pallas_call(
        functools.partial(_conv3x3_bn_relu_kernel, stride=stride),
        out_shape=jax.ShapeDtypeStruct((NB, Ho, Wo, Cmid), out_dtype),
        grid=(NB, Cmid // TN),
        in_specs=[
            pl.BlockSpec((nph, Qh, Qw, C), lambda b, j: (b, 0, 0, 0)),
            pl.BlockSpec((9, C, TN), lambda b, j: (0, 0, j)),
            pl.BlockSpec((1, TN), lambda b, j: (0, j)),
            pl.BlockSpec((1, TN), lambda b, j: (0, j)),
        ],
        out_specs=pl.BlockSpec((1, Ho, Wo, TN), lambda b, j: (b, 0, 0, j)),
        compiler_params=_cparams(
            ("parallel", "parallel"),
            [((nph, Qh, Qw, C), xph.dtype), ((9, C, TN), w9.dtype),
             ((Ho, Wo, TN), out_dtype), ((Ho * Wo, TN), jnp.float32)]),
    )(xph, w9, scale2, bias2)


def conv3_bn_proj_add_relu(h2, w3, s3, b3, xs, wsc, ssc, bsc, *, out_dtype=jnp.float32):
    """Final stage, projection shortcut: both matmuls fused in one kernel."""
    M, Km = h2.shape
    _, N = w3.shape
    Kp = xs.shape[1]
    TM = _pick_tile(M, 256, 8)
    TN = _pick_tile(N, 256, 128)
    s3v = s3.reshape(1, N).astype(jnp.float32)
    b3v = b3.reshape(1, N).astype(jnp.float32)
    sscv = ssc.reshape(1, N).astype(jnp.float32)
    bscv = bsc.reshape(1, N).astype(jnp.float32)
    return pl.pallas_call(
        _conv3_bn_proj_add_relu_kernel,
        out_shape=jax.ShapeDtypeStruct((M, N), out_dtype),
        grid=(M // TM, N // TN),
        in_specs=[
            pl.BlockSpec((TM, Km), lambda i, j: (i, 0)),
            pl.BlockSpec((Km, TN), lambda i, j: (0, j)),
            pl.BlockSpec((1, TN), lambda i, j: (0, j)),
            pl.BlockSpec((1, TN), lambda i, j: (0, j)),
            pl.BlockSpec((TM, Kp), lambda i, j: (i, 0)),
            pl.BlockSpec((Kp, TN), lambda i, j: (0, j)),
            pl.BlockSpec((1, TN), lambda i, j: (0, j)),
            pl.BlockSpec((1, TN), lambda i, j: (0, j)),
        ],
        out_specs=pl.BlockSpec((TM, TN), lambda i, j: (i, j)),
        compiler_params=_cparams(
            ("parallel", "parallel"),
            [((TM, Km), h2.dtype), ((Km, TN), w3.dtype),
             ((TM, Kp), xs.dtype), ((Kp, TN), wsc.dtype), ((TM, TN), out_dtype)]),
    )(h2, w3, s3v, b3v, xs, wsc, sscv, bscv)


def conv3_bn_ident_add_relu(h2, w3, s3, b3, res, *, out_dtype=jnp.float32):
    """Final stage, identity shortcut: residual tile streamed into the kernel."""
    M, Km = h2.shape
    _, N = w3.shape
    TM = _pick_tile(M, 256, 8)
    TN = _pick_tile(N, 256, 128)
    s3v = s3.reshape(1, N).astype(jnp.float32)
    b3v = b3.reshape(1, N).astype(jnp.float32)
    return pl.pallas_call(
        _conv3_bn_ident_add_relu_kernel,
        out_shape=jax.ShapeDtypeStruct((M, N), out_dtype),
        grid=(M // TM, N // TN),
        in_specs=[
            pl.BlockSpec((TM, Km), lambda i, j: (i, 0)),
            pl.BlockSpec((Km, TN), lambda i, j: (0, j)),
            pl.BlockSpec((1, TN), lambda i, j: (0, j)),
            pl.BlockSpec((1, TN), lambda i, j: (0, j)),
            pl.BlockSpec((TM, TN), lambda i, j: (i, j)),
        ],
        out_specs=pl.BlockSpec((TM, TN), lambda i, j: (i, j)),
        compiler_params=_cparams(
            ("parallel", "parallel"),
            [((TM, Km), h2.dtype), ((Km, TN), w3.dtype),
             ((TM, TN), res.dtype), ((TM, TN), out_dtype)]),
    )(h2, w3, s3v, b3v, res)


# ------------------------------- forward pass --------------------------------

def bottleneck_forward(x_nchw, params, stride, compute_dtype=jnp.float32):
    """Bottleneck forward (eval-mode BN), NCHW in / NCHW out.

    `compute_dtype` feeds the MXU (bf16 recommended on v6e/v7x); accumulation,
    BN affine, residual add and ReLU stay in f32.
    """
    x = jnp.transpose(x_nchw, (0, 2, 3, 1))             # NHWC
    N, H, W, Cin = x.shape
    Cmid = params["w1"].shape[1]
    Cout = params["w3"].shape[1]
    cd = compute_dtype
    x_c = x.astype(cd)
    Ho = (H - 1) // stride + 1
    Wo = (W - 1) // stride + 1

    # conv1 (1x1) + bn1 + relu — tiled MXU matmul over (pixels, Cin).
    s1, b1 = _fold_bn(*params["bn1"])
    h1 = matmul_bn(x_c.reshape(N * H * W, Cin), params["w1"].astype(cd),
                   s1, b1, relu=True, out_dtype=cd)

    # conv2 (3x3, stride, pad=1) + bn2 + relu — 9-tap in-kernel reduction over
    # a single padded / phase-split copy of h1 (no HBM im2col).
    xph, _, _ = _pad_and_phase_split(h1.reshape(N, H, W, Cmid), stride)
    s2, b2 = _fold_bn(*params["bn2"])
    h2 = conv3x3_bn_relu(xph, params["w2"].astype(cd), s2, b2,
                         stride=stride, Ho=Ho, Wo=Wo, out_dtype=cd)
    h2 = h2.reshape(N * Ho * Wo, Cmid)

    # conv3 (1x1) + bn3 + shortcut + residual add + relu — single fused kernel.
    s3, b3 = _fold_bn(*params["bn3"])
    if stride != 1 or Cin != Cout:
        # TODO(synk): the stride-s pixel subsampling below is an XLA strided
        #             slice; it could be pushed into the kernel's index_map.
        xs = x_c[:, ::stride, ::stride, :].reshape(N * Ho * Wo, Cin)
        ssc, bsc = _fold_bn(*params["bn_sc"])
        out = conv3_bn_proj_add_relu(h2, params["w3"].astype(cd), s3, b3,
                                     xs, params["w_sc"].astype(cd), ssc, bsc)
    else:
        out = conv3_bn_ident_add_relu(h2, params["w3"].astype(cd), s3, b3,
                                      x_c.reshape(N * Ho * Wo, Cout))

    return jnp.transpose(out.reshape(N, Ho, Wo, Cout), (0, 3, 1, 2))


# --------------------------- reference (pure JAX) ---------------------------

def _conv_nhwc(x, w_hwio, stride, padding):
    return lax.conv_general_dilated(
        x, w_hwio, window_strides=(stride, stride), padding=padding,
        dimension_numbers=("NHWC", "HWIO", "NHWC"))


def bottleneck_reference(x_nchw, torch_weights, params, stride):
    x = jnp.transpose(x_nchw, (0, 2, 3, 1)).astype(jnp.float32)

    def bn(h, stats):
        s, b = _fold_bn(*stats)
        return h * s + b

    w1, w2, w3, wsc = torch_weights
    h = jax.nn.relu(bn(_conv_nhwc(x, jnp.transpose(w1, (2, 3, 1, 0)), 1, "VALID"),
                       params["bn1"]))
    h = jax.nn.relu(bn(_conv_nhwc(h, jnp.transpose(w2, (2, 3, 1, 0)), stride,
                                  [(1, 1), (1, 1)]), params["bn2"]))
    h = bn(_conv_nhwc(h, jnp.transpose(w3, (2, 3, 1, 0)), 1, "VALID"), params["bn3"])
    if wsc is not None:
        ident = bn(_conv_nhwc(x, jnp.transpose(wsc, (2, 3, 1, 0)), stride, "VALID"),
                   params["bn_sc"])
    else:
        ident = x
    return jnp.transpose(jax.nn.relu(h + ident), (0, 3, 1, 2))


# --------------------------------- main -------------------------------------

def make_case(key, in_channels, out_channels, stride, N=2, H=16, W=16, expansion=4):
    Cmid = out_channels
    Cout = expansion * out_channels
    keys = jax.random.split(key, 10)
    w1_t = jax.random.normal(keys[0], (Cmid, in_channels, 1, 1), jnp.float32) * 0.2
    w2_t = jax.random.normal(keys[1], (Cmid, Cmid, 3, 3), jnp.float32) * 0.2
    w3_t = jax.random.normal(keys[2], (Cout, Cmid, 1, 1), jnp.float32) * 0.2
    need_proj = (stride != 1) or (in_channels != Cout)
    wsc_t = (jax.random.normal(keys[3], (Cout, in_channels, 1, 1), jnp.float32) * 0.2
             if need_proj else None)

    def bn_stats(k, c):
        kg, kb, km, kv = jax.random.split(k, 4)
        return (1.0 + 0.1 * jax.random.normal(kg, (c,), jnp.float32),
                0.1 * jax.random.normal(kb, (c,), jnp.float32),
                0.1 * jax.random.normal(km, (c,), jnp.float32),
                jax.random.uniform(kv, (c,), jnp.float32, 0.5, 1.5))

    params = {
        "w1": jnp.transpose(w1_t[:, :, 0, 0], (1, 0)),                   # (Cin, Cmid)
        "w2": jnp.transpose(w2_t, (2, 3, 1, 0)).reshape(9, Cmid, Cmid),  # (tap, C, Cmid)
        "w3": jnp.transpose(w3_t[:, :, 0, 0], (1, 0)),                   # (Cmid, Cout)
        "w_sc": (jnp.transpose(wsc_t[:, :, 0, 0], (1, 0)) if need_proj else None),
        "bn1": bn_stats(keys[4], Cmid),
        "bn2": bn_stats(keys[5], Cmid),
        "bn3": bn_stats(keys[6], Cout),
        "bn_sc": (bn_stats(keys[7], Cout) if need_proj else None),
    }
    x = jax.random.normal(keys[8], (N, in_channels, H, W), jnp.float32)
    return x, params, (w1_t, w2_t, w3_t, wsc_t)


if __name__ == "__main__":
    root = jax.random.PRNGKey(0)
    cases = [
        # (in_ch, out_ch, stride, compute_dtype, atol, rtol)
        (4, 4, 2, jnp.float32, 2e-4, 2e-4),     # projection (downsample) shortcut
        (16, 4, 1, jnp.float32, 2e-4, 2e-4),    # identity shortcut
        (4, 4, 2, jnp.bfloat16, 5e-2, 5e-2),    # bf16-fed MXU, f32 epilogue
    ]
    for idx, (cin, cmid, stride, cd, atol, rtol) in enumerate(cases):
        x, params, torch_w = make_case(jax.random.fold_in(root, idx), cin, cmid, stride)
        fwd = jax.jit(functools.partial(bottleneck_forward, params=params,
                                        stride=stride, compute_dtype=cd))
        out = jax.block_until_ready(fwd(x))
        ref = jax.block_until_ready(bottleneck_reference(x, torch_w, params, stride))

        N, _, H, W = x.shape
        Cout = params["w3"].shape[1]
        Ho, Wo = (H - 1) // stride + 1, (W - 1) // stride + 1
        assert out.shape == (N, Cout, Ho, Wo), (idx, out.shape)
        assert bool(jnp.allclose(out, ref, atol=atol, rtol=rtol)), (
            idx, float(jnp.max(jnp.abs(out - ref))))
    print("KERNEL_OK")
</pallas_src>

<mosaic_0001>
module attributes {stable_mosaic.version = 11 : i64} {
  func.func @_matmul_bn_kernel(%arg0: i32, %arg1: i32, %arg2: i32, %arg3: memref<256x4xf32, #tpu.memory_space<vmem>>, %arg4: memref<4x4xf32, #tpu.memory_space<vmem>>, %arg5: memref<1x4xf32, #tpu.memory_space<vmem>>, %arg6: memref<1x4xf32, #tpu.memory_space<vmem>>, %arg7: memref<256x4xf32, #tpu.memory_space<vmem>>, %arg8: memref<256x4xf32, #tpu.memory_space<vmem>>) attributes {dimension_semantics = [#tpu.dimension_semantics<parallel>, #tpu.dimension_semantics<parallel>, #tpu.dimension_semantics<arbitrary>], iteration_bounds = array<i64: 2, 1, 1>, scalar_prefetch = 0 : i64, scratch_operands = 1 : i64, tpu.core_type = #tpu.core_type<tc>, window_params = [{transform_indices = @transform_0, window_bounds = array<i64: 256, 4>}, {transform_indices = @transform_1, window_bounds = array<i64: 4, 4>}, {transform_indices = @transform_2, window_bounds = array<i64: 1, 4>}, {transform_indices = @transform_3, window_bounds = array<i64: 1, 4>}, {transform_indices = @transform_4, window_bounds = array<i64: 256, 4>}]} {
    %c0_i32 = arith.constant 0 : i32
    %0 = arith.cmpi eq, %arg2, %c0_i32 : i32
    %1 = arith.extui %0 : i1 to i32
    %c0_i32_0 = arith.constant 0 : i32
    %2 = arith.cmpi ne, %1, %c0_i32_0 : i32
    scf.if %2 {
      %cst_10 = arith.constant 0.000000e+00 : f32
      %12 = vector.broadcast %cst_10 : f32 to vector<256x4xf32>
      %c0_11 = arith.constant 0 : index
      %c0_12 = arith.constant 0 : index
      %13 = vector.load %arg8[%c0_11, %c0_12] : memref<256x4xf32, #tpu.memory_space<vmem>>, vector<256x4xf32>
      tpu.vector_store %arg8[%c0_11, %c0_12], %12 {strides = array<i32>} : memref<256x4xf32, #tpu.memory_space<vmem>>, vector<256x4xf32>,
    } else {
    }
    %c0 = arith.constant 0 : index
    %c0_1 = arith.constant 0 : index
    %3 = vector.load %arg8[%c0, %c0_1] : memref<256x4xf32, #tpu.memory_space<vmem>>, vector<256x4xf32>
    %c0_2 = arith.constant 0 : index
    %c0_3 = arith.constant 0 : index
    %4 = vector.load %arg3[%c0_2, %c0_3] : memref<256x4xf32, #tpu.memory_space<vmem>>, vector<256x4xf32>
    %c0_4 = arith.constant 0 : index
    %c0_5 = arith.constant 0 : index
    %5 = vector.load %arg4[%c0_4, %c0_5] : memref<4x4xf32, #tpu.memory_space<vmem>>, vector<4x4xf32>
    %cst = arith.constant dense<0.000000e+00> : vector<256x4xf32>
    %6 = tpu.matmul %4, %5, %cst {dimension_numbers = #tpu.dot_dimension_numbers<[1], [0], [0], [1], [0, 0, 1, 1], [], []>} : vector<256x4xf32>, vector<4x4xf32>, vector<256x4xf32> -> vector<256x4xf32>
    %7 = arith.addf %3, %6 : vector<256x4xf32>
    %c0_6 = arith.constant 0 : index
    %c0_7 = arith.constant 0 : index
    %8 = vector.load %arg8[%c0_6, %c0_7] : memref<256x4xf32, #tpu.memory_space<vmem>>, vector<256x4xf32>
    tpu.vector_store %arg8[%c0_6, %c0_7], %7 {strides = array<i32>} : memref<256x4xf32, #tpu.memory_space<vmem>>, vector<256x4xf32>,
    %c0_i32_8 = arith.constant 0 : i32
    %9 = arith.cmpi eq, %arg2, %c0_i32_8 : i32
    %10 = arith.extui %9 : i1 to i32
    %c0_i32_9 = arith.constant 0 : i32
    %11 = arith.cmpi ne, %10, %c0_i32_9 : i32
    scf.if %11 {
      %c0_10 = arith.constant 0 : index
      %c0_11 = arith.constant 0 : index
      %12 = vector.load %arg8[%c0_10, %c0_11] : memref<256x4xf32, #tpu.memory_space<vmem>>, vector<256x4xf32>
      %c0_12 = arith.constant 0 : index
      %c0_13 = arith.constant 0 : index
      %13 = vector.load %arg5[%c0_12, %c0_13] : memref<1x4xf32, #tpu.memory_space<vmem>>, vector<1x4xf32>
      %14 = vector.broadcast %13 : vector<1x4xf32> to vector<256x4xf32>
      %15 = arith.mulf %12, %14 : vector<256x4xf32>
      %c0_14 = arith.constant 0 : index
      %c0_15 = arith.constant 0 : index
      %16 = vector.load %arg6[%c0_14, %c0_15] : memref<1x4xf32, #tpu.memory_space<vmem>>, vector<1x4xf32>
      %17 = vector.broadcast %16 : vector<1x4xf32> to vector<256x4xf32>
      %18 = arith.addf %15, %17 : vector<256x4xf32>
      %cst_16 = arith.constant 0.000000e+00 : f32
      %19 = vector.broadcast %cst_16 : f32 to vector<256x4xf32>
      %20 = arith.maximumf %18, %19 : vector<256x4xf32>
      %c0_17 = arith.constant 0 : index
      %c0_18 = arith.constant 0 : index
      %21 = vector.load %arg7[%c0_17, %c0_18] : memref<256x4xf32, #tpu.memory_space<vmem>>, vector<256x4xf32>
      tpu.vector_store %arg7[%c0_17, %c0_18], %20 {strides = array<i32>} : memref<256x4xf32, #tpu.memory_space<vmem>>, vector<256x4xf32>,
    } else {
    }
    return
  }
  func.func @transform_0(%arg0: i32, %arg1: i32, %arg2: i32) -> (i32, i32) {
    %c0_i32 = arith.constant 0 : i32
    return %arg0, %arg2 : i32, i32
  }
  func.func @transform_1(%arg0: i32, %arg1: i32, %arg2: i32) -> (i32, i32) {
    %c0_i32 = arith.constant 0 : i32
    return %arg2, %arg1 : i32, i32
  }
  func.func @transform_2(%arg0: i32, %arg1: i32, %arg2: i32) -> (i32, i32) {
    %c0_i32 = arith.constant 0 : i32
    %c0_i32_0 = arith.constant 0 : i32
    return %c0_i32, %arg1 : i32, i32
  }
  func.func @transform_3(%arg0: i32, %arg1: i32, %arg2: i32) -> (i32, i32) {
    %c0_i32 = arith.constant 0 : i32
    %c0_i32_0 = arith.constant 0 : i32
    return %c0_i32, %arg1 : i32, i32
  }
  func.func @transform_4(%arg0: i32, %arg1: i32, %arg2: i32) -> (i32, i32) {
    %c0_i32 = arith.constant 0 : i32
    return %arg0, %arg1 : i32, i32
  }
}

module attributes {stable_mosaic.version = 11 : i64} {
  func.func @_conv3x3_bn_relu_kernel(%arg0: i32, %arg1: i32, %arg2: memref<4x9x9x4xf32, #tpu.memory_space<vmem>>, %arg3: memref<9x4x4xf32, #tpu.memory_space<vmem>>, %arg4: memref<1x4xf32, #tpu.memory_space<vmem>>, %arg5: memref<1x4xf32, #tpu.memory_space<vmem>>, %arg6: memref<1x8x8x4xf32, #tpu.memory_space<vmem>>) attributes {dimension_semantics = [#tpu.dimension_semantics<parallel>, #tpu.dimension_semantics<parallel>], iteration_bounds = array<i64: 2, 1>, scalar_prefetch = 0 : i64, scratch_operands = 0 : i64, tpu.core_type = #tpu.core_type<tc>, window_params = [{transform_indices = @transform_0, window_bounds = array<i64: 4, 9, 9, 4>}, {transform_indices = @transform_1, window_bounds = array<i64: 9, 4, 4>}, {transform_indices = @transform_2, window_bounds = array<i64: 1, 4>}, {transform_indices = @transform_3, window_bounds = array<i64: 1, 4>}, {transform_indices = @transform_4, window_bounds = array<i64: 1, 8, 8, 4>}]} {
    %cst = arith.constant 0.000000e+00 : f32
    %0 = vector.broadcast %cst : f32 to vector<64x4xf32>
    %c0 = arith.constant 0 : index
    %c0_0 = arith.constant 0 : index
    %c0_1 = arith.constant 0 : index
    %c0_2 = arith.constant 0 : index
    %1 = vector.load %arg2[%c0, %c0_0, %c0_1, %c0_2] : memref<4x9x9x4xf32, #tpu.memory_space<vmem>>, vector<1x8x8x4xf32>
    %2 = vector.shape_cast %1 : vector<1x8x8x4xf32> to vector<8x8x4xf32>
    %3 = vector.shape_cast %2 : vector<8x8x4xf32> to vector<64x4xf32>
    %c0_3 = arith.constant 0 : index
    %c0_4 = arith.constant 0 : index
    %c0_5 = arith.constant 0 : index
    %4 = vector.load %arg3[%c0_3, %c0_4, %c0_5] : memref<9x4x4xf32, #tpu.memory_space<vmem>>, vector<1x4x4xf32>
    %5 = vector.shape_cast %4 : vector<1x4x4xf32> to vector<4x4xf32>
    %cst_6 = arith.constant dense<0.000000e+00> : vector<64x4xf32>
    %6 = tpu.matmul %3, %5, %cst_6 {dimension_numbers = #tpu.dot_dimension_numbers<[1], [0], [0], [1], [0, 0, 1, 1], [], []>} : vector<64x4xf32>, vector<4x4xf32>, vector<64x4xf32> -> vector<64x4xf32>
    %7 = arith.addf %0, %6 : vector<64x4xf32>
    %c1 = arith.constant 1 : index
    %c0_7 = arith.constant 0 : index
    %c0_8 = arith.constant 0 : index
    %c0_9 = arith.constant 0 : index
    %8 = vector.load %arg2[%c1, %c0_7, %c0_8, %c0_9] : memref<4x9x9x4xf32, #tpu.memory_space<vmem>>, vector<1x8x8x4xf32>
    %9 = vector.shape_cast %8 : vector<1x8x8x4xf32> to vector<8x8x4xf32>
    %10 = vector.shape_cast %9 : vector<8x8x4xf32> to vector<64x4xf32>
    %c1_10 = arith.constant 1 : index
    %c0_11 = arith.constant 0 : index
    %c0_12 = arith.constant 0 : index
    %11 = vector.load %arg3[%c1_10, %c0_11, %c0_12] : memref<9x4x4xf32, #tpu.memory_space<vmem>>, vector<1x4x4xf32>
    %12 = vector.shape_cast %11 : vector<1x4x4xf32> to vector<4x4xf32>
    %cst_13 = arith.constant dense<0.000000e+00> : vector<64x4xf32>
    %13 = tpu.matmul %10, %12, %cst_13 {dimension_numbers = #tpu.dot_dimension_numbers<[1], [0], [0], [1], [0, 0, 1, 1], [], []>} : vector<64x4xf32>, vector<4x4xf32>, vector<64x4xf32> -> vector<64x4xf32>
    %14 = arith.addf %7, %13 : vector<64x4xf32>
    %c0_14 = arith.constant 0 : index
    %c0_15 = arith.constant 0 : index
    %c1_16 = arith.constant 1 : index
    %c0_17 = arith.constant 0 : index
    %15 = vector.load %arg2[%c0_14, %c0_15, %c1_16, %c0_17] : memref<4x9x9x4xf32, #tpu.memory_space<vmem>>, vector<1x8x8x4xf32>
    %16 = vector.shape_cast %15 : vector<1x8x8x4xf32> to vector<8x8x4xf32>
    %17 = vector.shape_cast %16 : vector<8x8x4xf32> to vector<64x4xf32>
    %c2 = arith.constant 2 : index
    %c0_18 = arith.constant 0 : index
    %c0_19 = arith.constant 0 : index
    %18 = vector.load %arg3[%c2, %c0_18, %c0_19] : memref<9x4x4xf32, #tpu.memory_space<vmem>>, vector<1x4x4xf32>
    %19 = vector.shape_cast %18 : vector<1x4x4xf32> to vector<4x4xf32>
    %cst_20 = arith.constant dense<0.000000e+00> : vector<64x4xf32>
    %20 = tpu.matmul %17, %19, %cst_20 {dimension_numbers = #tpu.dot_dimension_numbers<[1], [0], [0], [1], [0, 0, 1, 1], [], []>} : vector<64x4xf32>, vector<4x4xf32>, vector<64x4xf32> -> vector<64x4xf32>
    %21 = arith.addf %14, %20 : vector<64x4xf32>
    %c2_21 = arith.constant 2 : index
    %c0_22 = arith.constant 0 : index
    %c0_23 = arith.constant 0 : index
    %c0_24 = arith.constant 0 : index
    %22 = vector.load %arg2[%c2_21, %c0_22, %c0_23, %c0_24] : memref<4x9x9x4xf32, #tpu.memory_space<vmem>>, vector<1x8x8x4xf32>
    %23 = vector.shape_cast %22 : vector<1x8x8x4xf32> to vector<8x8x4xf32>
    %24 = vector.shape_cast %23 : vector<8x8x4xf32> to vector<64x4xf32>
    %c3 = arith.constant 3 : index
    %c0_25 = arith.constant 0 : index
    %c0_26 = arith.constant 0 : index
    %25 = vector.load %arg3[%c3, %c0_25, %c0_26] : memref<9x4x4xf32, #tpu.memory_space<vmem>>, vector<1x4x4xf32>
    %26 = vector.shape_cast %25 : vector<1x4x4xf32> to vector<4x4xf32>
    %cst_27 = arith.constant dense<0.000000e+00> : vector<64x4xf32>
    %27 = tpu.matmul %24, %26, %cst_27 {dimension_numbers = #tpu.dot_dimension_numbers<[1], [0], [0], [1], [0, 0, 1, 1], [], []>} : vector<64x4xf32>, vector<4x4xf32>, vector<64x4xf32> -> vector<64x4xf32>
    %28 = arith.addf %21, %27 : vector<64x4xf32>
    %c3_28 = arith.constant 3 : index
    %c0_29 = arith.constant 0 : index
    %c0_30 = arith.constant 0 : index
    %c0_31 = arith.constant 0 : index
    %29 = vector.load %arg2[%c3_28, %c0_29, %c0_30, %c0_31] : memref<4x9x9x4xf32, #tpu.memory_space<vmem>>, vector<1x8x8x4xf32>
    %30 = vector.shape_cast %29 : vector<1x8x8x4xf32> to vector<8x8x4xf32>
    %31 = vector.shape_cast %30 : vector<8x8x4xf32> to vector<64x4xf32>
    %c4 = arith.constant 4 : index
    %c0_32 = arith.constant 0 : index
    %c0_33 = arith.constant 0 : index
    %32 = vector.load %arg3[%c4, %c0_32, %c0_33] : memref<9x4x4xf32, #tpu.memory_space<vmem>>, vector<1x4x4xf32>
    %33 = vector.shape_cast %32 : vector<1x4x4xf32> to vector<4x4xf32>
    %cst_34 = arith.constant dense<0.000000e+00> : vector<64x4xf32>
    %34 = tpu.matmul %31, %33, %cst_34 {dimension_numbers = #tpu.dot_dimension_numbers<[1], [0], [0], [1], [0, 0, 1, 1], [], []>} : vector<64x4xf32>, vector<4x4xf32>, vector<64x4xf32> -> vector<64x4xf32>
    %35 = arith.addf %28, %34 : vector<64x4xf32>
    %c2_35 = arith.constant 2 : index
    %c0_36 = arith.constant 0 : index
    %c1_37 = arith.constant 1 : index
    %c0_38 = arith.constant 0 : index
    %36 = vector.load %arg2[%c2_35, %c0_36, %c1_37, %c0_38] : memref<4x9x9x4xf32, #tpu.memory_space<vmem>>, vector<1x8x8x4xf32>
    %37 = vector.shape_cast %36 : vector<1x8x8x4xf32> to vector<8x8x4xf32>
    %38 = vector.shape_cast %37 : vector<8x8x4xf32> to vector<64x4xf32>
    %c5 = arith.constant 5 : index
    %c0_39 = arith.constant 0 : index
    %c0_40 = arith.constant 0 : index
    %39 = vector.load %arg3[%c5, %c0_39, %c0_40] : memref<9x4x4xf32, #tpu.memory_space<vmem>>, vector<1x4x4xf32>
    %40 = vector.shape_cast %39 : vector<1x4x4xf32> to vector<4x4xf32>
    %cst_41 = arith.constant dense<0.000000e+00> : vector<64x4xf32>
    %41 = tpu.matmul %38, %40, %cst_41 {dimension_numbers = #tpu.dot_dimension_numbers<[1], [0], [0], [1], [0, 0, 1, 1], [], []>} : vector<64x4xf32>, vector<4x4xf32>, vector<64x4xf32> -> vector<64x4xf32>
    %42 = arith.addf %35, %41 : vector<64x4xf32>
    %c0_42 = arith.constant 0 : index
    %c1_43 = arith.constant 1 : index
    %c0_44 = arith.constant 0 : index
    %c0_45 = arith.constant 0 : index
    %43 = vector.load %arg2[%c0_42, %c1_43, %c0_44, %c0_45] : memref<4x9x9x4xf32, #tpu.memory_space<vmem>>, vector<1x8x8x4xf32>
    %44 = vector.shape_cast %43 : vector<1x8x8x4xf32> to vector<8x8x4xf32>
    %45 = vector.shape_cast %44 : vector<8x8x4xf32> to vector<64x4xf32>
    %c6 = arith.constant 6 : index
    %c0_46 = arith.constant 0 : index
    %c0_47 = arith.constant 0 : index
    %46 = vector.load %arg3[%c6, %c0_46, %c0_47] : memref<9x4x4xf32, #tpu.memory_space<vmem>>, vector<1x4x4xf32>
    %47 = vector.shape_cast %46 : vector<1x4x4xf32> to vector<4x4xf32>
    %cst_48 = arith.constant dense<0.000000e+00> : vector<64x4xf32>
    %48 = tpu.matmul %45, %47, %cst_48 {dimension_numbers = #tpu.dot_dimension_numbers<[1], [0], [0], [1], [0, 0, 1, 1], [], []>} : vector<64x4xf32>, vector<4x4xf32>, vector<64x4xf32> -> vector<64x4xf32>
    %49 = arith.addf %42, %48 : vector<64x4xf32>
    %c1_49 = arith.constant 1 : index
    %c1_50 = arith.constant 1 : index
    %c0_51 = arith.constant 0 : index
    %c0_52 = arith.constant 0 : index
    %50 = vector.load %arg2[%c1_49, %c1_50, %c0_51, %c0_52] : memref<4x9x9x4xf32, #tpu.memory_space<vmem>>, vector<1x8x8x4xf32>
    %51 = vector.shape_cast %50 : vector<1x8x8x4xf32> to vector<8x8x4xf32>
    %52 = vector.shape_cast %51 : vector<8x8x4xf32> to vector<64x4xf32>
    %c7 = arith.constant 7 : index
    %c0_53 = arith.constant 0 : index
    %c0_54 = arith.constant 0 : index
    %53 = vector.load %arg3[%c7, %c0_53, %c0_54] : memref<9x4x4xf32, #tpu.memory_space<vmem>>, vector<1x4x4xf32>
    %54 = vector.shape_cast %53 : vector<1x4x4xf32> to vector<4x4xf32>
    %cst_55 = arith.constant dense<0.000000e+00> : vector<64x4xf32>
    %55 = tpu.matmul %52, %54, %cst_55 {dimension_numbers = #tpu.dot_dimension_numbers<[1], [0], [0], [1], [0, 0, 1, 1], [], []>} : vector<64x4xf32>, vector<4x4xf32>, vector<64x4xf32> -> vector<64x4xf32>
    %56 = arith.addf %49, %55 : vector<64x4xf32>
    %c0_56 = arith.constant 0 : index
    %c1_57 = arith.constant 1 : index
    %c1_58 = arith.constant 1 : index
    %c0_59 = arith.constant 0 : index
    %57 = vector.load %arg2[%c0_56, %c1_57, %c1_58, %c0_59] : memref<4x9x9x4xf32, #tpu.memory_space<vmem>>, vector<1x8x8x4xf32>
    %58 = vector.shape_cast %57 : vector<1x8x8x4xf32> to vector<8x8x4xf32>
    %59 = vector.shape_cast %58 : vector<8x8x4xf32> to vector<64x4xf32>
    %c8 = arith.constant 8 : index
    %c0_60 = arith.constant 0 : index
    %c0_61 = arith.constant 0 : index
    %60 = vector.load %arg3[%c8, %c0_60, %c0_61] : memref<9x4x4xf32, #tpu.memory_space<vmem>>, vector<1x4x4xf32>
    %61 = vector.shape_cast %60 : vector<1x4x4xf32> to vector<4x4xf32>
    %cst_62 = arith.constant dense<0.000000e+00> : vector<64x4xf32>
    %62 = tpu.matmul %59, %61, %cst_62 {dimension_numbers = #tpu.dot_dimension_numbers<[1], [0], [0], [1], [0, 0, 1, 1], [], []>} : vector<64x4xf32>, vector<4x4xf32>, vector<64x4xf32> -> vector<64x4xf32>
    %63 = arith.addf %56, %62 : vector<64x4xf32>
    %c0_63 = arith.constant 0 : index
    %c0_64 = arith.constant 0 : index
    %64 = vector.load %arg4[%c0_63, %c0_64] : memref<1x4xf32, #tpu.memory_space<vmem>>, vector<1x4xf32>
    %65 = vector.broadcast %64 : vector<1x4xf32> to vector<64x4xf32>
    %66 = arith.mulf %63, %65 : vector<64x4xf32>
    %c0_65 = arith.constant 0 : index
    %c0_66 = arith.constant 0 : index
    %67 = vector.load %arg5[%c0_65, %c0_66] : memref<1x4xf32, #tpu.memory_space<vmem>>, vector<1x4xf32>
    %68 = vector.broadcast %67 : vector<1x4xf32> to vector<64x4xf32>
    %69 = arith.addf %66, %68 : vector<64x4xf32>
    %cst_67 = arith.constant 0.000000e+00 : f32
    %70 = vector.broadcast %cst_67 : f32 to vector<64x4xf32>
    %71 = arith.maximumf %69, %70 : vector<64x4xf32>
    %72 = vector.shape_cast %71 : vector<64x4xf32> to vector<1x8x8x4xf32>
    %c0_68 = arith.constant 0 : index
    %c0_69 = arith.constant 0 : index
    %c0_70 = arith.constant 0 : index
    %c0_71 = arith.constant 0 : index
    %73 = vector.load %arg6[%c0_68, %c0_69, %c0_70, %c0_71] : memref<1x8x8x4xf32, #tpu.memory_space<vmem>>, vector<1x8x8x4xf32>
    tpu.vector_store %arg6[%c0_68, %c0_69, %c0_70, %c0_71], %72 {strides = array<i32>} : memref<1x8x8x4xf32, #tpu.memory_space<vmem>>, vector<1x8x8x4xf32>,
    return
  }
  func.func @transform_0(%arg0: i32, %arg1: i32) -> (i32, i32, i32, i32) {
    %c0_i32 = arith.constant 0 : i32
    %c0_i32_0 = arith.constant 0 : i32
    %c0_i32_1 = arith.constant 0 : i32
    %c0_i32_2 = arith.constant 0 : i32
    return %arg0, %c0_i32, %c0_i32_0, %c0_i32_1 : i32, i32, i32, i32
  }
  func.func @transform_1(%arg0: i32, %arg1: i32) -> (i32, i32, i32) {
    %c0_i32 = arith.constant 0 : i32
    %c0_i32_0 = arith.constant 0 : i32
    %c0_i32_1 = arith.constant 0 : i32
    return %c0_i32, %c0_i32_0, %arg1 : i32, i32, i32
  }
  func.func @transform_2(%arg0: i32, %arg1: i32) -> (i32, i32) {
    %c0_i32 = arith.constant 0 : i32
    %c0_i32_0 = arith.constant 0 : i32
    return %c0_i32, %arg1 : i32, i32
  }
  func.func @transform_3(%arg0: i32, %arg1: i32) -> (i32, i32) {
    %c0_i32 = arith.constant 0 : i32
    %c0_i32_0 = arith.constant 0 : i32
    return %c0_i32, %arg1 : i32, i32
  }
  func.func @transform_4(%arg0: i32, %arg1: i32) -> (i32, i32, i32, i32) {
    %c0_i32 = arith.constant 0 : i32
    %c0_i32_0 = arith.constant 0 : i32
    %c0_i32_1 = arith.constant 0 : i32
    return %arg0, %c0_i32, %c0_i32_0, %arg1 : i32, i32, i32, i32
  }
}

module attributes {stable_mosaic.version = 11 : i64} {
  func.func @_conv3_bn_proj_add_relu_kernel(%arg0: i32, %arg1: i32, %arg2: memref<128x4xf32, #tpu.memory_space<vmem>>, %arg3: memref<4x16xf32, #tpu.memory_space<vmem>>, %arg4: memref<1x16xf32, #tpu.memory_space<vmem>>, %arg5: memref<1x16xf32, #tpu.memory_space<vmem>>, %arg6: memref<128x4xf32, #tpu.memory_space<vmem>>, %arg7: memref<4x16xf32, #tpu.memory_space<vmem>>, %arg8: memref<1x16xf32, #tpu.memory_space<vmem>>, %arg9: memref<1x16xf32, #tpu.memory_space<vmem>>, %arg10: memref<128x16xf32, #tpu.memory_space<vmem>>) attributes {dimension_semantics = [#tpu.dimension_semantics<parallel>, #tpu.dimension_semantics<parallel>], iteration_bounds = array<i64: 1, 1>, scalar_prefetch = 0 : i64, scratch_operands = 0 : i64, tpu.core_type = #tpu.core_type<tc>, window_params = [{transform_indices = @transform_0, window_bounds = array<i64: 128, 4>}, {transform_indices = @transform_1, window_bounds = array<i64: 4, 16>}, {transform_indices = @transform_2, window_bounds = array<i64: 1, 16>}, {transform_indices = @transform_3, window_bounds = array<i64: 1, 16>}, {transform_indices = @transform_4, window_bounds = array<i64: 128, 4>}, {transform_indices = @transform_5, window_bounds = array<i64: 4, 16>}, {transform_indices = @transform_6, window_bounds = array<i64: 1, 16>}, {transform_indices = @transform_7, window_bounds = array<i64: 1, 16>}, {transform_indices = @transform_8, window_bounds = array<i64: 128, 16>}]} {
    %c0 = arith.constant 0 : index
    %c0_0 = arith.constant 0 : index
    %0 = vector.load %arg2[%c0, %c0_0] : memref<128x4xf32, #tpu.memory_space<vmem>>, vector<128x4xf32>
    %c0_1 = arith.constant 0 : index
    %c0_2 = arith.constant 0 : index
    %1 = vector.load %arg3[%c0_1, %c0_2] : memref<4x16xf32, #tpu.memory_space<vmem>>, vector<4x16xf32>
    %cst = arith.constant dense<0.000000e+00> : vector<128x16xf32>
    %2 = tpu.matmul %0, %1, %cst {dimension_numbers = #tpu.dot_dimension_numbers<[1], [0], [0], [1], [0, 0, 1, 1], [], []>} : vector<128x4xf32>, vector<4x16xf32>, vector<128x16xf32> -> vector<128x16xf32>
    %c0_3 = arith.constant 0 : index
    %c0_4 = arith.constant 0 : index
    %3 = vector.load %arg4[%c0_3, %c0_4] : memref<1x16xf32, #tpu.memory_space<vmem>>, vector<1x16xf32>
    %4 = vector.broadcast %3 : vector<1x16xf32> to vector<128x16xf32>
    %5 = arith.mulf %2, %4 : vector<128x16xf32>
    %c0_5 = arith.constant 0 : index
    %c0_6 = arith.constant 0 : index
    %6 = vector.load %arg5[%c0_5, %c0_6] : memref<1x16xf32, #tpu.memory_space<vmem>>, vector<1x16xf32>
    %7 = vector.broadcast %6 : vector<1x16xf32> to vector<128x16xf32>
    %8 = arith.addf %5, %7 : vector<128x16xf32>
    %c0_7 = arith.constant 0 : index
    %c0_8 = arith.constant 0 : index
    %9 = vector.load %arg6[%c0_7, %c0_8] : memref<128x4xf32, #tpu.memory_space<vmem>>, vector<128x4xf32>
    %c0_9 = arith.constant 0 : index
    %c0_10 = arith.constant 0 : index
    %10 = vector.load %arg7[%c0_9, %c0_10] : memref<4x16xf32, #tpu.memory_space<vmem>>, vector<4x16xf32>
    %cst_11 = arith.constant dense<0.000000e+00> : vector<128x16xf32>
    %11 = tpu.matmul %9, %10, %cst_11 {dimension_numbers = #tpu.dot_dimension_numbers<[1], [0], [0], [1], [0, 0, 1, 1], [], []>} : vector<128x4xf32>, vector<4x16xf32>, vector<128x16xf32> -> vector<128x16xf32>
    %c0_12 = arith.constant 0 : index
    %c0_13 = arith.constant 0 : index
    %12 = vector.load %arg8[%c0_12, %c0_13] : memref<1x16xf32, #tpu.memory_space<vmem>>, vector<1x16xf32>
    %13 = vector.broadcast %12 : vector<1x16xf32> to vector<128x16xf32>
    %14 = arith.mulf %11, %13 : vector<128x16xf32>
    %c0_14 = arith.constant 0 : index
    %c0_15 = arith.constant 0 : index
    %15 = vector.load %arg9[%c0_14, %c0_15] : memref<1x16xf32, #tpu.memory_space<vmem>>, vector<1x16xf32>
    %16 = vector.broadcast %15 : vector<1x16xf32> to vector<128x16xf32>
    %17 = arith.addf %14, %16 : vector<128x16xf32>
    %18 = arith.addf %8, %17 : vector<128x16xf32>
    %cst_16 = arith.constant 0.000000e+00 : f32
    %19 = vector.broadcast %cst_16 : f32 to vector<128x16xf32>
    %20 = arith.maximumf %18, %19 : vector<128x16xf32>
    %c0_17 = arith.constant 0 : index
    %c0_18 = arith.constant 0 : index
    %21 = vector.load %arg10[%c0_17, %c0_18] : memref<128x16xf32, #tpu.memory_space<vmem>>, vector<128x16xf32>
    tpu.vector_store %arg10[%c0_17, %c0_18], %20 {strides = array<i32>} : memref<128x16xf32, #tpu.memory_space<vmem>>, vector<128x16xf32>,
    return
  }
  func.func @transform_0(%arg0: i32, %arg1: i32) -> (i32, i32) {
    %c0_i32 = arith.constant 0 : i32
    %c0_i32_0 = arith.constant 0 : i32
    return %arg0, %c0_i32 : i32, i32
  }
  func.func @transform_1(%arg0: i32, %arg1: i32) -> (i32, i32) {
    %c0_i32 = arith.constant 0 : i32
    %c0_i32_0 = arith.constant 0 : i32
    return %c0_i32, %arg1 : i32, i32
  }
  func.func @transform_2(%arg0: i32, %arg1: i32) -> (i32, i32) {
    %c0_i32 = arith.constant 0 : i32
    %c0_i32_0 = arith.constant 0 : i32
    return %c0_i32, %arg1 : i32, i32
  }
  func.func @transform_3(%arg0: i32, %arg1: i32) -> (i32, i32) {
    %c0_i32 = arith.constant 0 : i32
    %c0_i32_0 = arith.constant 0 : i32
    return %c0_i32, %arg1 : i32, i32
  }
  func.func @transform_4(%arg0: i32, %arg1: i32) -> (i32, i32) {
    %c0_i32 = arith.constant 0 : i32
    %c0_i32_0 = arith.constant 0 : i32
    return %arg0, %c0_i32 : i32, i32
  }
  func.func @transform_5(%arg0: i32, %arg1: i32) -> (i32, i32) {
    %c0_i32 = arith.constant 0 : i32
    %c0_i32_0 = arith.constant 0 : i32
    return %c0_i32, %arg1 : i32, i32
  }
  func.func @transform_6(%arg0: i32, %arg1: i32) -> (i32, i32) {
    %c0_i32 = arith.constant 0 : i32
    %c0_i32_0 = arith.constant 0 : i32
    return %c0_i32, %arg1 : i32, i32
  }
  func.func @transform_7(%arg0: i32, %arg1: i32) -> (i32, i32) {
    %c0_i32 = arith.constant 0 : i32
    %c0_i32_0 = arith.constant 0 : i32
    return %c0_i32, %arg1 : i32, i32
  }
  func.func @transform_8(%arg0: i32, %arg1: i32) -> (i32, i32) {
    %c0_i32 = arith.constant 0 : i32
    return %arg0, %arg1 : i32, i32
  }
}

</mosaic_0001>

<llo_original>
// kernel: bottleneck_forward.3
$region0: #{bottleneck_forward.3}
  #allocation0 [shape = 'u32[]', space=smem, size = 0x4, offset = 0x4, fixed_abs, tag = 'smem constant byte address 0x4 - core index']
  #allocation1 [shape = 'u32[144,128]{1,0:T(1,128)}', space=vmem, size = 0x12000, scoped, tag = 'internal scratch']
  #allocation2 [shape = 'f32[256,4]{1,0:T(8,128)}', space=vmem, size = 0x20000, scoped, tag = 'scratch operand']
  %s0 = inlined_call_operand.vmem [shape: f32[512,4], index: 0, kind: input, shape index: {}]
  %s1 = inlined_call_operand.vmem [shape: f32[4,4], index: 1, kind: input, shape index: {}]
  %s2 = inlined_call_operand.vmem [shape: f32[1,4], index: 2, kind: input, shape index: {}]
  %s3 = inlined_call_operand.vmem [shape: f32[1,4], index: 3, kind: input, shape index: {}]
  %s4 = inlined_call_operand.vmem [shape: f32[512,4], index: 4, kind: output, shape index: {}]
  %s5 = sld [smem:[#allocation0]]
  $region57: #{bottleneck_forward.3} parent=0
    _
  %s7 = ssub.s32 1, %s5
  %s8 = scalar_select 0, %s7, %s5
  loop: start=0, step=1, limit=4
  $region2: #{bottleneck_forward.3} parent=0 // loop_pre_header
    _
  $region3: #{bottleneck_forward.3} parent=0 // loop_header
    %s10 = sphi 0, %s14
    %p11 = scmp.ge.s32.totalorder %s10, 4
    %s17 = sphi 0, %s36
    %s18 = sphi 0, %s32
    %s19 = sphi 0, %s28
    %s20 = sphi 0, %s17
    %s21 = sphi 0, %s18
    %s22 = sphi 0, %s19
    %s23 = sphi 0, %s20
    %s24 = sphi 0, %s21
    %s25 = sphi 0, %s22
    %s41 = sphi 0, %s43
    %s44 = sphi 0, %s41
    %s45 = sphi 0, %s44
    %s61 = sphi 0, %s45
    %s69 = sphi 0, %s71
    %s72 = sphi 0, %s69
    %s73 = sphi 0, %s72
    %s89 = sphi 0, %s73
    %s95 = sphi 0, %s97
    %s98 = sphi 0, %s95
    %s99 = sphi 0, %s98
    %s115 = sphi 0, %s99
    %s121 = sphi 0, %s123
    %s124 = sphi 0, %s121
    %s125 = sphi 0, %s124
    %s141 = sphi 0, %s125
    %s149 = sphi 0, %s151
    %s152 = sphi 0, %s149
    %s153 = sphi 0, %s152
    %s169 = sphi 0, %s153
  $region4: #{bottleneck_forward.3} parent=0 // loop_header_branch
    %13 = sbr.rel (%p11) target = $region8
  $region5: #{bottleneck_forward.3} parent=0 // loop_body
    %s15 = ssub.s32 %s10, 1
    %s16 = ssub.s32 %s10, 2
    %s26 = sadd.s32 1, %s19
    %p27 = scmp.ge.s32.totalorder %s26, 1
    %s28 = scalar_select %p27, 0, %s26
    %s29 = sadd.s32 1, %s18
    %s30 = scalar_select %p27, %s29, %s18
    %p31 = scmp.ge.s32.totalorder %s30, 1
    %s32 = scalar_select %p31, 0, %s30
    %s33 = sadd.s32 1, %s17
    %s34 = scalar_select %p31, %s33, %s17
    %p35 = scmp.ge.s32.totalorder %s34, 2
    %s36 = scalar_select %p35, 0, %s34
    %s37 = ssub.s32 %s17, %s36
    %s38 = ssub.s32 %s19, %s28
    %s39 = sor.u32 %s37, %s38
    %p40 = scmp.eq.s32.totalorder %s39, 0
    %s42 = sadd.s32 %s41, 1
    %s43 = scalar_select %p40, %s41, %s42
    %p46 = pneg %p40
    %p47 = scmp.eq.s32.totalorder %s10, 1
    %p48 = por %p46, %p47
    %p49 = scmp.ne.s32.totalorder %s41, %s44
    %p50 = scmp.eq.s32.totalorder %s10, 0
    %p51 = por %p49, %p50
    %p52 = scmp.ne.s32.totalorder %s41, %s44
    %p53 = scmp.eq.s32.totalorder %s15, 1
    %p54 = por %p52, %p53
    %p55 = scmp.ne.s32.totalorder %s44, %s45
    %p56 = scmp.eq.s32.totalorder %s15, 0
    %p57 = por %p55, %p56
    %p58 = scmp.ne.s32.totalorder %s44, %s45
    %p59 = scmp.eq.s32.totalorder %s16, 1
    %p60 = por %p58, %p59
    %p62 = scmp.ne.s32.totalorder %s45, %s61
    %p63 = scmp.eq.s32.totalorder %s16, 0
    %p64 = por %p62, %p63
    %s65 = ssub.s32 %s19, %s28
    %s66 = ssub.s32 %s18, %s32
    %s67 = sor.u32 %s65, %s66
    %p68 = scmp.eq.s32.totalorder %s67, 0
    %s70 = sadd.s32 %s69, 1
    %s71 = scalar_select %p68, %s69, %s70
    %p74 = pneg %p68
    %p75 = scmp.eq.s32.totalorder %s10, 1
    %p76 = por %p74, %p75
    %p77 = scmp.ne.s32.totalorder %s69, %s72
    %p78 = scmp.eq.s32.totalorder %s10, 0
    %p79 = por %p77, %p78
    %p80 = scmp.ne.s32.totalorder %s69, %s72
    %p81 = scmp.eq.s32.totalorder %s15, 1
    %p82 = por %p80, %p81
    %p83 = scmp.ne.s32.totalorder %s72, %s73
    %p84 = scmp.eq.s32.totalorder %s15, 0
    %p85 = por %p83, %p84
    %p86 = scmp.ne.s32.totalorder %s72, %s73
    %p87 = scmp.eq.s32.totalorder %s16, 1
    %p88 = por %p86, %p87
    %p90 = scmp.ne.s32.totalorder %s73, %s89
    %p91 = scmp.eq.s32.totalorder %s16, 0
    %p92 = por %p90, %p91
    %s93 = ssub.s32 %s18, %s32
    %p94 = scmp.eq.s32.totalorder %s93, 0
    %s96 = sadd.s32 %s95, 1
    %s97 = scalar_select %p94, %s95, %s96
    %p100 = pneg %p94
    %p101 = scmp.eq.s32.totalorder %s10, 1
    %p102 = por %p100, %p101
    %p103 = scmp.ne.s32.totalorder %s95, %s98
    %p104 = scmp.eq.s32.totalorder %s10, 0
    %p105 = por %p103, %p104
    %p106 = scmp.ne.s32.totalorder %s95, %s98
    %p107 = scmp.eq.s32.totalorder %s15, 1
    %p108 = por %p106, %p107
    %p109 = scmp.ne.s32.totalorder %s98, %s99
    %p110 = scmp.eq.s32.totalorder %s15, 0
    %p111 = por %p109, %p110
    %p112 = scmp.ne.s32.totalorder %s98, %s99
    %p113 = scmp.eq.s32.totalorder %s16, 1
    %p114 = por %p112, %p113
    %p116 = scmp.ne.s32.totalorder %s99, %s115
    %p117 = scmp.eq.s32.totalorder %s16, 0
    %p118 = por %p116, %p117
    %s119 = ssub.s32 %s18, %s32
    %p120 = scmp.eq.s32.totalorder %s119, 0
    %s122 = sadd.s32 %s121, 1
    %s123 = scalar_select %p120, %s121, %s122
    %p126 = pneg %p120
    %p127 = scmp.eq.s32.totalorder %s10, 1
    %p128 = por %p126, %p127
    %p129 = scmp.ne.s32.totalorder %s121, %s124
    %p130 = scmp.eq.s32.totalorder %s10, 0
    %p131 = por %p129, %p130
    %p132 = scmp.ne.s32.totalorder %s121, %s124
    %p133 = scmp.eq.s32.totalorder %s15, 1
    %p134 = por %p132, %p133
    %p135 = scmp.ne.s32.totalorder %s124, %s125
    %p136 = scmp.eq.s32.totalorder %s15, 0
    %p137 = por %p135, %p136
    %p138 = scmp.ne.s32.totalorder %s124, %s125
    %p139 = scmp.eq.s32.totalorder %s16, 1
    %p140 = por %p138, %p139
    %p142 = scmp.ne.s32.totalorder %s125, %s141
    %p143 = scmp.eq.s32.totalorder %s16, 0
    %p144 = por %p142, %p143
    %s145 = ssub.s32 %s17, %s36
    %s146 = ssub.s32 %s18, %s32
    %s147 = sor.u32 %s145, %s146
    %p148 = scmp.eq.s32.totalorder %s147, 0
    %s150 = sadd.s32 %s149, 1
    %s151 = scalar_select %p148, %s149, %s150
    %p154 = pneg %p148
    %p155 = scmp.eq.s32.totalorder %s10, 1
    %p156 = por %p154, %p155
    %p157 = scmp.ne.s32.totalorder %s149, %s152
    %p158 = scmp.eq.s32.totalorder %s10, 0
    %p159 = por %p157, %p158
    %p160 = scmp.ne.s32.totalorder %s149, %s152
    %p161 = scmp.eq.s32.totalorder %s15, 1
    %p162 = por %p160, %p161
    %p163 = scmp.ne.s32.totalorder %s152, %s153
    %p164 = scmp.eq.s32.totalorder %s15, 0
    %p165 = por %p163, %p164
    %p166 = scmp.ne.s32.totalorder %s152, %s153
    %p167 = scmp.eq.s32.totalorder %s16, 1
    %p168 = por %p166, %p167
    %p170 = scmp.ne.s32.totalorder %s153, %s169
    %p171 = scmp.eq.s32.totalorder %s16, 0
    %p172 = por %p170, %p171
    %p173 = scmp.le.s32.totalorder 1, %s10
    %p174 = scmp.lt.s32.totalorder %s10, 3
    %p175 = pnand %p173, %p174
    %p176 = pneg %p175
    // Predicated region
    $region9: #{bottleneck_forward.3} parent=5 // pred_check
      _
    $region10: #{bottleneck_forward.3} parent=5 // pred_check_branch
      %178 = sbr.rel (%p175) target = $region12
    $region11: #{bottleneck_forward.3} parent=5 // pred_region
      %s179 = ssub.s32 %s10, 1
      // Predicated region
      $region13: #{bottleneck_forward.3} parent=11 // pred_check
        %p180 = pneg %p85
      $region14: #{bottleneck_forward.3} parent=11 // pred_check_branch
        %182 = sbr.rel (%p180) target = $region16
      $region15: #{bottleneck_forward.3} parent=11 // pred_region
        %p183 = scmp.lt.s32.totalorder %s22, 0
        %s184 = scalar_select %p183, %s22, 0
        %p185 = scmp.lt.s32.totalorder %s21, 0
        %s186 = scalar_select %p185, %s21, 0
        %s187 = sadd.s32 %s186, %s184
        %s188 = smul.addr %s187, 4
        %s189 = scalar_lea.vmem %s1, %s188
      $region16: #{bottleneck_forward.3} parent=11 // pred_fallthru
        _
      // Predicated region
      $region17: #{bottleneck_forward.3} parent=11 // pred_check
        %p190 = pneg %p111
      $region18: #{bottleneck_forward.3} parent=11 // pred_check_branch
        %192 = sbr.rel (%p190) target = $region20
      $region19: #{bottleneck_forward.3} parent=11 // pred_region
        %p193 = scmp.lt.s32.totalorder %s21, 0
        %s194 = scalar_select %p193, %s21, 0
        %s195 = scalar_lea.vmem %s2, %s194
      $region20: #{bottleneck_forward.3} parent=11 // pred_fallthru
        _
      // Predicated region
      $region21: #{bottleneck_forward.3} parent=11 // pred_check
        %p196 = pneg %p137
      $region22: #{bottleneck_forward.3} parent=11 // pred_check_branch
        %198 = sbr.rel (%p196) target = $region24
      $region23: #{bottleneck_forward.3} parent=11 // pred_region
        %p199 = scmp.lt.s32.totalorder %s21, 0
        %s200 = scalar_select %p199, %s21, 0
        %s201 = scalar_lea.vmem %s3, %s200
      $region24: #{bottleneck_forward.3} parent=11 // pred_fallthru
        _
    $region12: #{bottleneck_forward.3} parent=5 // pred_fallthru
      _
    %p202 = scmp.lt.s32.totalorder %s10, 2
    // Predicated region
    $region25: #{bottleneck_forward.3} parent=5 // pred_check
      %p203 = pneg %p202
    $region26: #{bottleneck_forward.3} parent=5 // pred_check_branch
      %205 = sbr.rel (%p203) target = $region28
    $region27: #{bottleneck_forward.3} parent=5 // pred_region
      // Predicated region
      $region29: #{bottleneck_forward.3} parent=27 // pred_check
        %p206 = pneg %p51
      $region30: #{bottleneck_forward.3} parent=27 // pred_check_branch
        %208 = sbr.rel (%p206) target = $region32
      $region31: #{bottleneck_forward.3} parent=27 // pred_region
        %s209 = smul.u32 32, %s17
        %p210 = scmp.lt.s32.totalorder %s209, 63
        %s211 = scalar_select %p210, %s209, 63
        %p212 = scmp.lt.s32.totalorder %s19, 0
        %s213 = scalar_select %p212, %s19, 0
        %s214 = sadd.s32 %s213, %s211
        %s215 = smul.addr %s214, 8
        %s216 = scalar_lea.vmem %s0, %s215
        %s217 = smul.u32 32, %s17
      $region32: #{bottleneck_forward.3} parent=27 // pred_fallthru
        _
    $region28: #{bottleneck_forward.3} parent=5 // pred_fallthru
      _
    %p218 = scmp.le.s32.totalorder 1, %s10
    %p219 = scmp.lt.s32.totalorder %s10, 3
    %p220 = pnand %p218, %p219
    %p221 = pneg %p220
    // Predicated region
    $region33: #{bottleneck_forward.3} parent=5 // pred_check
      _
    $region34: #{bottleneck_forward.3} parent=5 // pred_check_branch
      %223 = sbr.rel (%p220) target = $region36
    $region35: #{bottleneck_forward.3} parent=5 // pred_region
      %s224 = ssub.s32 %s10, 1
      %s225 = smul.u32 32, %s20
      %p226 = scmp.lt.s32.totalorder %s225, 63
      %s227 = scalar_select %p226, %s225, 63
      %p228 = scmp.lt.s32.totalorder %s22, 0
      %s229 = scalar_select %p228, %s22, 0
      %s230 = sadd.s32 %s229, %s227
      %s231 = smul.addr %s230, 8
      %s232 = scalar_lea.vmem %s0, %s231
      %p233 = pneg %p57
      %p234 = pneg %p54
      %p235 = scmp.lt.s32.totalorder %s22, 0
      %s236 = scalar_select %p235, %s22, 0
      %p237 = scmp.lt.s32.totalorder %s21, 0
      %s238 = scalar_select %p237, %s21, 0
      %s239 = sadd.s32 %s238, %s236
      %s240 = smul.addr %s239, 4
      %s241 = scalar_lea.vmem %s1, %s240
      %p242 = pneg %p85
      %p243 = pneg %p82
      %p244 = scmp.lt.s32.totalorder %s21, 0
      %s245 = scalar_select %p244, %s21, 0
      %s246 = scalar_lea.vmem %s2, %s245
      %p247 = pneg %p111
      %p248 = pneg %p108
      %p249 = scmp.lt.s32.totalorder %s21, 0
      %s250 = scalar_select %p249, %s21, 0
      %s251 = scalar_lea.vmem %s3, %s250
      %p252 = pneg %p137
      %p253 = pneg %p134
      %p254 = pneg %p165
      %p255 = pneg %p162
      %s256 = smul.u32 32, %s20
      %p257 = scmp.lt.s32.totalorder %s256, 63
      %s258 = scalar_select %p257, %s256, 63
      %p259 = scmp.lt.s32.totalorder %s21, 0
      %s260 = scalar_select %p259, %s21, 0
      %s261 = sadd.s32 %s260, %s258
      %s262 = smul.addr %s261, 8
      %s263 = scalar_lea.vmem %s4, %s262
      %s264 = smul.u32 32, %s20
      %p265 = scmp.lt.s32.totalorder %s264, 63
      %s266 = scalar_select %p265, %s264, 63
      %p267 = scmp.lt.s32.totalorder %s22, 0
      %s268 = scalar_select %p267, %s22, 0
      %s269 = sadd.s32 %s268, %s266
      %s270 = smul.addr %s269, 8
      %s271 = scalar_lea.vmem %s0, %s270
      %s272 = smul.u32 32, %s20
      %p273 = scmp.lt.s32.totalorder %s22, 0
      %s274 = scalar_select %p273, %s22, 0
      %p275 = scmp.lt.s32.totalorder %s21, 0
      %s276 = scalar_select %p275, %s21, 0
      %s277 = sadd.s32 %s276, %s274
      %s278 = smul.addr %s277, 4
      %s279 = scalar_lea.vmem %s1, %s278
      %p280 = scmp.lt.s32.totalorder %s21, 0
      %s281 = scalar_select %p280, %s21, 0
      %s282 = scalar_lea.vmem %s2, %s281
      %p283 = scmp.lt.s32.totalorder %s21, 0
      %s284 = scalar_select %p283, %s21, 0
      %s285 = scalar_lea.vmem %s3, %s284
      %s286 = smul.u32 32, %s20
      %p287 = scmp.lt.s32.totalorder %s286, 63
      %s288 = scalar_select %p287, %s286, 63
      %p289 = scmp.lt.s32.totalorder %s21, 0
      %s290 = scalar_select %p289, %s21, 0
      %s291 = sadd.s32 %s290, %s288
      %s292 = smul.addr %s291, 8
      %s293 = scalar_lea.vmem %s4, %s292
      %s294 = smul.u32 32, %s20
      %p295 = scmp.eq.s32.totalorder %s22, 0
      // Predicated region
      $region37: #{bottleneck_forward.3} parent=35 // pred_check
        %p296 = pneg %p295
      $region38: #{bottleneck_forward.3} parent=35 // pred_check_branch
        %298 = sbr.rel (%p296) target = $region40
      $region39: #{bottleneck_forward.3} parent=35 // pred_region
        %vm299 = vcmask 31744
        %300 = vst.msk [vmem:[#allocation2] sm:$0xff] %vm299, 0.0
        %301 = vst.msk [vmem:[#allocation2 + $0x8] sm:$0xff] %vm299, 0.0
        %302 = vst.msk [vmem:[#allocation2 + $0x10] sm:$0xff] %vm299, 0.0
        %303 = vst.msk [vmem:[#allocation2 + $0x18] sm:$0xff] %vm299, 0.0
        %304 = vst.msk [vmem:[#allocation2 + $0x20] sm:$0xff] %vm299, 0.0
        %305 = vst.msk [vmem:[#allocation2 + $0x28] sm:$0xff] %vm299, 0.0
        %306 = vst.msk [vmem:[#allocation2 + $0x30] sm:$0xff] %vm299, 0.0
        %307 = vst.msk [vmem:[#allocation2 + $0x38] sm:$0xff] %vm299, 0.0
        %308 = vst.msk [vmem:[#allocation2 + $0x40] sm:$0xff] %vm299, 0.0
        %309 = vst.msk [vmem:[#allocation2 + $0x48] sm:$0xff] %vm299, 0.0
        %310 = vst.msk [vmem:[#allocation2 + $0x50] sm:$0xff] %vm299, 0.0
        %311 = vst.msk [vmem:[#allocation2 + $0x58] sm:$0xff] %vm299, 0.0
        %312 = vst.msk [vmem:[#allocation2 + $0x60] sm:$0xff] %vm299, 0.0
        %313 = vst.msk [vmem:[#allocation2 + $0x68] sm:$0xff] %vm299, 0.0
        %314 = vst.msk [vmem:[#allocation2 + $0x70] sm:$0xff] %vm299, 0.0
        %315 = vst.msk [vmem:[#allocation2 + $0x78] sm:$0xff] %vm299, 0.0
        %316 = vst.msk [vmem:[#allocation2 + $0x80] sm:$0xff] %vm299, 0.0
        %317 = vst.msk [vmem:[#allocation2 + $0x88] sm:$0xff] %vm299, 0.0
        %318 = vst.msk [vmem:[#allocation2 + $0x90] sm:$0xff] %vm299, 0.0
        %319 = vst.msk [vmem:[#allocation2 + $0x98] sm:$0xff] %vm299, 0.0
        %320 = vst.msk [vmem:[#allocation2 + $0xa0] sm:$0xff] %vm299, 0.0
        %321 = vst.msk [vmem:[#allocation2 + $0xa8] sm:$0xff] %vm299, 0.0
        %322 = vst.msk [vmem:[#allocation2 + $0xb0] sm:$0xff] %vm299, 0.0
        %323 = vst.msk [vmem:[#allocation2 + $0xb8] sm:$0xff] %vm299, 0.0
        %324 = vst.msk [vmem:[#allocation2 + $0xc0] sm:$0xff] %vm299, 0.0
        %325 = vst.msk [vmem:[#allocation2 + $0xc8] sm:$0xff] %vm299, 0.0
        %326 = vst.msk [vmem:[#allocation2 + $0xd0] sm:$0xff] %vm299, 0.0
        %327 = vst.msk [vmem:[#allocation2 + $0xd8] sm:$0xff] %vm299, 0.0
        %328 = vst.msk [vmem:[#allocation2 + $0xe0] sm:$0xff] %vm299, 0.0
        %329 = vst.msk [vmem:[#allocation2 + $0xe8] sm:$0xff] %vm299, 0.0
        %330 = vst.msk [vmem:[#allocation2 + $0xf0] sm:$0xff] %vm299, 0.0
        %331 = vst.msk [vmem:[#allocation2 + $0xf8] sm:$0xff] %vm299, 0.0
      $region40: #{bottleneck_forward.3} parent=35 // pred_fallthru
        _
      %v332 = vld [vmem:[#allocation2] sm:$0xff]
      %v333 = vld [vmem:[#allocation2 + $0x8] sm:$0xff]
      %v334 = vld [vmem:[#allocation2 + $0x10] sm:$0xff]
      %v335 = vld [vmem:[#allocation2 + $0x18] sm:$0xff]
      %v336 = vld [vmem:[#allocation2 + $0x20] sm:$0xff]
      %v337 = vld [vmem:[#allocation2 + $0x28] sm:$0xff]
      %v338 = vld [vmem:[#allocation2 + $0x30] sm:$0xff]
      %v339 = vld [vmem:[#allocation2 + $0x38] sm:$0xff]
      %v340 = vld [vmem:[#allocation2 + $0x40] sm:$0xff]
      %v341 = vld [vmem:[#allocation2 + $0x48] sm:$0xff]
      %v342 = vld [vmem:[#allocation2 + $0x50] sm:$0xff]
      %v343 = vld [vmem:[#allocation2 + $0x58] sm:$0xff]
      %v344 = vld [vmem:[#allocation2 + $0x60] sm:$0xff]
      %v345 = vld [vmem:[#allocation2 + $0x68] sm:$0xff]
      %v346 = vld [vmem:[#allocation2 + $0x70] sm:$0xff]
      %v347 = vld [vmem:[#allocation2 + $0x78] sm:$0xff]
      %v348 = vld [vmem:[#allocation2 + $0x80] sm:$0xff]
      %v349 = vld [vmem:[#allocation2 + $0x88] sm:$0xff]
      %v350 = vld [vmem:[#allocation2 + $0x90] sm:$0xff]
      %v351 = vld [vmem:[#allocation2 + $0x98] sm:$0xff]
      %v352 = vld [vmem:[#allocation2 + $0xa0] sm:$0xff]
      %v353 = vld [vmem:[#allocation2 + $0xa8] sm:$0xff]
      %v354 = vld [vmem:[#allocation2 + $0xb0] sm:$0xff]
      %v355 = vld [vmem:[#allocation2 + $0xb8] sm:$0xff]
      %v356 = vld [vmem:[#allocation2 + $0xc0] sm:$0xff]
      %v357 = vld [vmem:[#allocation2 + $0xc8] sm:$0xff]
      %v358 = vld [vmem:[#allocation2 + $0xd0] sm:$0xff]
      %v359 = vld [vmem:[#allocation2 + $0xd8] sm:$0xff]
      %v360 = vld [vmem:[#allocation2 + $0xe0] sm:$0xff]
      %v361 = vld [vmem:[#allocation2 + $0xe8] sm:$0xff]
      %v362 = vld [vmem:[#allocation2 + $0xf0] sm:$0xff]
      %v363 = vld [vmem:[#allocation2 + $0xf8] sm:$0xff]
      %v364 = vld [vmem:[%s271] sm:$0xff]
      %v365 = vld [vmem:[%s271 + $0x8] sm:$0xff]
      %v366 = vld [vmem:[%s271 + $0x10] sm:$0xff]
      %v367 = vld [vmem:[%s271 + $0x18] sm:$0xff]
      %v368 = vld [vmem:[%s271 + $0x20] sm:$0xff]
      %v369 = vld [vmem:[%s271 + $0x28] sm:$0xff]
      %v370 = vld [vmem:[%s271 + $0x30] sm:$0xff]
      %v371 = vld [vmem:[%s271 + $0x38] sm:$0xff]
      %v372 = vld [vmem:[%s271 + $0x40] sm:$0xff]
      %v373 = vld [vmem:[%s271 + $0x48] sm:$0xff]
      %v374 = vld [vmem:[%s271 + $0x50] sm:$0xff]
      %v375 = vld [vmem:[%s271 + $0x58] sm:$0xff]
      %v376 = vld [vmem:[%s271 + $0x60] sm:$0xff]
      %v377 = vld [vmem:[%s271 + $0x68] sm:$0xff]
      %v378 = vld [vmem:[%s271 + $0x70] sm:$0xff]
      %v379 = vld [vmem:[%s271 + $0x78] sm:$0xff]
      %v380 = vld [vmem:[%s271 + $0x80] sm:$0xff]
      %v381 = vld [vmem:[%s271 + $0x88] sm:$0xff]
      %v382 = vld [vmem:[%s271 + $0x90] sm:$0xff]
      %v383 = vld [vmem:[%s271 + $0x98] sm:$0xff]
      %v384 = vld [vmem:[%s271 + $0xa0] sm:$0xff]
      %v385 = vld [vmem:[%s271 + $0xa8] sm:$0xff]
      %v386 = vld [vmem:[%s271 + $0xb0] sm:$0xff]
      %v387 = vld [vmem:[%s271 + $0xb8] sm:$0xff]
      %v388 = vld [vmem:[%s271 + $0xc0] sm:$0xff]
      %v389 = vld [vmem:[%s271 + $0xc8] sm:$0xff]
      %v390 = vld [vmem:[%s271 + $0xd0] sm:$0xff]
      %v391 = vld [vmem:[%s271 + $0xd8] sm:$0xff]
      %v392 = vld [vmem:[%s271 + $0xe0] sm:$0xff]
      %v393 = vld [vmem:[%s271 + $0xe8] sm:$0xff]
      %v394 = vld [vmem:[%s271 + $0xf0] sm:$0xff]
      %v395 = vld [vmem:[%s271 + $0xf8] sm:$0xff]
      %v396 = vld [vmem:[%s279] sm:$0xf]
      %vm397 = vcmask 31744
      %v399 = vsel %vm397, %v364, 0
      %v402 = vsel %vm397, %v365, 0
      %v405 = vsel %vm397, %v366, 0
      %v408 = vsel %vm397, %v367, 0
      %v411 = vsel %vm397, %v368, 0
      %v414 = vsel %vm397, %v369, 0
      %v417 = vsel %vm397, %v370, 0
      %v420 = vsel %vm397, %v371, 0
      %v423 = vsel %vm397, %v372, 0
      %v426 = vsel %vm397, %v373, 0
      %v429 = vsel %vm397, %v374, 0
      %v432 = vsel %vm397, %v375, 0
      %v435 = vsel %vm397, %v376, 0
      %v438 = vsel %vm397, %v377, 0
      %v441 = vsel %vm397, %v378, 0
      %v444 = vsel %vm397, %v379, 0
      %v447 = vsel %vm397, %v380, 0
      %v450 = vsel %vm397, %v381, 0
      %v453 = vsel %vm397, %v382, 0
      %v456 = vsel %vm397, %v383, 0
      %v459 = vsel %vm397, %v384, 0
      %v462 = vsel %vm397, %v385, 0
      %v465 = vsel %vm397, %v386, 0
      %v468 = vsel %vm397, %v387, 0
      %v471 = vsel %vm397, %v388, 0
      %v474 = vsel %vm397, %v389, 0
      %v477 = vsel %vm397, %v390, 0
      %v480 = vsel %vm397, %v391, 0
      %v483 = vsel %vm397, %v392, 0
      %v486 = vsel %vm397, %v393, 0
      %v489 = vsel %vm397, %v394, 0
      %v492 = vsel %vm397, %v395, 0
      %vm494 = vcmask 1043456
      %v496 = vsel %vm494, %v396, 0
      %498 = vmatprep.subr.mxu0 0.0
      %499 = vmatpush1.msra.mxu0 %v496
      %500 = vmatprep.subr.mxu0 0.0
      %501 = vmatpush1.msra.mxu0 0.0
      %502 = vmatprep.subr.mxu0 0.0
      %503 = vmatpush1.msra.mxu0 0.0
      %504 = vmatprep.subr.mxu0 0.0
      %505 = vmatpush1.msra.mxu0 0.0
      %506 = vmatprep.subr.mxu0 0.0
      %507 = vmatpush1.msra.mxu0 0.0
      %508 = vmatprep.subr.mxu0 0.0
      %509 = vmatpush1.msra.mxu0 0.0
      %510 = vmatprep.subr.mxu0 0.0
      %511 = vmatpush1.msra.mxu0 0.0
      %512 = vmatprep.subr.mxu0 0.0
      %513 = vmatpush1.msra.mxu0 0.0
      %514 = vmatprep.subr.mxu0 0.0
      %515 = vmatpush1.msra.mxu0 0.0
      %516 = vmatprep.subr.mxu0 0.0
      %517 = vmatpush1.msra.mxu0 0.0
      %518 = vmatprep.subr.mxu0 0.0
      %519 = vmatpush1.msra.mxu0 0.0
      %520 = vmatprep.subr.mxu0 0.0
      %521 = vmatpush1.msra.mxu0 0.0
      %522 = vmatprep.subr.mxu0 0.0
      %523 = vmatpush1.msra.mxu0 0.0
      %524 = vmatprep.subr.mxu0 0.0
      %525 = vmatpush1.msra.mxu0 0.0
      %526 = vmatprep.subr.mxu0 0.0
      %527 = vmatpush1.msra.mxu0 0.0
      %528 = vmatprep.subr.mxu0 0.0
      %529 = vmatpush1.msra.mxu0 0.0
      %530 = vmatprep.subr.mxu0 0.0
      %531 = vmatpush1.msra.mxu0 0.0
      %532 = vmatprep.subr.mxu0 0.0
      %533 = vmatpush1.msra.mxu0 0.0
      %534 = vmatprep.subr.mxu0 0.0
      %535 = vmatpush1.msra.mxu0 0.0
      %536 = vmatprep.subr.mxu0 0.0
      %537 = vmatpush1.msra.mxu0 0.0
      %538 = vmatprep.subr.mxu0 0.0
      %539 = vmatpush1.msra.mxu0 0.0
      %540 = vmatprep.subr.mxu0 0.0
      %541 = vmatpush1.msra.mxu0 0.0
      %542 = vmatprep.subr.mxu0 0.0
      %543 = vmatpush1.msra.mxu0 0.0
      %544 = vmatprep.subr.mxu0 0.0
      %545 = vmatpush1.msra.mxu0 0.0
      %546 = vmatprep.subr.mxu0 0.0
      %547 = vmatpush1.msra.mxu0 0.0
      %548 = vmatprep.subr.mxu0 0.0
      %549 = vmatpush1.msra.mxu0 0.0
      %550 = vmatprep.subr.mxu0 0.0
      %551 = vmatpush1.msra.mxu0 0.0
      %552 = vmatprep.subr.mxu0 0.0
      %553 = vmatpush1.msra.mxu0 0.0
      %554 = vmatprep.subr.mxu0 0.0
      %555 = vmatpush1.msra.mxu0 0.0
      %556 = vmatprep.subr.mxu0 0.0
      %557 = vmatpush1.msra.mxu0 0.0
      %558 = vmatprep.subr.mxu0 0.0
      %559 = vmatpush1.msra.mxu0 0.0
      %560 = vmatprep.subr.mxu0 0.0
      %561 = vmatpush1.msra.mxu0 0.0
      %562 = vmatprep.mubr.f32.mxu0 0.0
      %563 = vmatmul.mubr.f32.gmra.mrb[0].mxu0 %v399
      %v564 = vpop.f32.mrb[0].mxu0
      %v565 = vadd.f32 0.0, %v564
      %v566 = vpop.f32.mrb[0].mxu0
      %567 = vmatprep.mubr.f32.mxu0 0.0
      %568 = vmatmul.mubr.f32.gmra.mrb[0].mxu0 %v402
      %v569 = vpop.f32.mrb[0].mxu0
      %v570 = vadd.f32 0.0, %v569
      %v571 = vpop.f32.mrb[0].mxu0
      %572 = vmatprep.mubr.f32.mxu0 0.0
      %573 = vmatmul.mubr.f32.gmra.mrb[0].mxu0 %v405
      %v574 = vpop.f32.mrb[0].mxu0
      %v575 = vadd.f32 0.0, %v574
      %v576 = vpop.f32.mrb[0].mxu0
      %577 = vmatprep.mubr.f32.mxu0 0.0
      %578 = vmatmul.mubr.f32.gmra.mrb[0].mxu0 %v408
      %v579 = vpop.f32.mrb[0].mxu0
      %v580 = vadd.f32 0.0, %v579
      %v581 = vpop.f32.mrb[0].mxu0
      %582 = vmatprep.mubr.f32.mxu0 0.0
      %583 = vmatmul.mubr.f32.gmra.mrb[0].mxu0 %v411
      %v584 = vpop.f32.mrb[0].mxu0
      %v585 = vadd.f32 0.0, %v584
      %v586 = vpop.f32.mrb[0].mxu0
      %587 = vmatprep.mubr.f32.mxu0 0.0
      %588 = vmatmul.mubr.f32.gmra.mrb[0].mxu0 %v414
      %v589 = vpop.f32.mrb[0].mxu0
      %v590 = vadd.f32 0.0, %v589
      %v591 = vpop.f32.mrb[0].mxu0
      %592 = vmatprep.mubr.f32.mxu0 0.0
      %593 = vmatmul.mubr.f32.gmra.mrb[0].mxu0 %v417
      %v594 = vpop.f32.mrb[0].mxu0
      %v595 = vadd.f32 0.0, %v594
      %v596 = vpop.f32.mrb[0].mxu0
      %597 = vmatprep.mubr.f32.mxu0 0.0
      %598 = vmatmul.mubr.f32.gmra.mrb[0].mxu0 %v420
      %v599 = vpop.f32.mrb[0].mxu0
      %v600 = vadd.f32 0.0, %v599
      %v601 = vpop.f32.mrb[0].mxu0
      %602 = vmatprep.mubr.f32.mxu0 0.0
      %603 = vmatmul.mubr.f32.gmra.mrb[0].mxu0 %v423
      %v604 = vpop.f32.mrb[0].mxu0
      %v605 = vadd.f32 0.0, %v604
      %v606 = vpop.f32.mrb[0].mxu0
      %607 = vmatprep.mubr.f32.mxu0 0.0
      %608 = vmatmul.mubr.f32.gmra.mrb[0].mxu0 %v426
      %v609 = vpop.f32.mrb[0].mxu0
      %v610 = vadd.f32 0.0, %v609
      %v611 = vpop.f32.mrb[0].mxu0
      %612 = vmatprep.mubr.f32.mxu0 0.0
      %613 = vmatmul.mubr.f32.gmra.mrb[0].mxu0 %v429
      %v614 = vpop.f32.mrb[0].mxu0
      %v615 = vadd.f32 0.0, %v614
      %v616 = vpop.f32.mrb[0].mxu0
      %617 = vmatprep.mubr.f32.mxu0 0.0
      %618 = vmatmul.mubr.f32.gmra.mrb[0].mxu0 %v432
      %v619 = vpop.f32.mrb[0].mxu0
      %v620 = vadd.f32 0.0, %v619
      %v621 = vpop.f32.mrb[0].mxu0
      %622 = vmatprep.mubr.f32.mxu0 0.0
      %623 = vmatmul.mubr.f32.gmra.mrb[0].mxu0 %v435
      %v624 = vpop.f32.mrb[0].mxu0
      %v625 = vadd.f32 0.0, %v624
      %v626 = vpop.f32.mrb[0].mxu0
      %627 = vmatprep.mubr.f32.mxu0 0.0
      %628 = vmatmul.mubr.f32.gmra.mrb[0].mxu0 %v438
      %v629 = vpop.f32.mrb[0].mxu0
      %v630 = vadd.f32 0.0, %v629
      %v631 = vpop.f32.mrb[0].mxu0
      %632 = vmatprep.mubr.f32.mxu0 0.0
      %633 = vmatmul.mubr.f32.gmra.mrb[0].mxu0 %v441
      %v634 = vpop.f32.mrb[0].mxu0
      %v635 = vadd.f32 0.0, %v634
      %v636 = vpop.f32.mrb[0].mxu0
      %637 = vmatprep.mubr.f32.mxu0 0.0
      %638 = vmatmul.mubr.f32.gmra.mrb[0].mxu0 %v444
      %v639 = vpop.f32.mrb[0].mxu0
      %v640 = vadd.f32 0.0, %v639
      %v641 = vpop.f32.mrb[0].mxu0
      %642 = vmatprep.mubr.f32.mxu0 0.0
      %643 = vmatmul.mubr.f32.gmra.mrb[0].mxu0 %v447
      %v644 = vpop.f32.mrb[0].mxu0
      %v645 = vadd.f32 0.0, %v644
      %v646 = vpop.f32.mrb[0].mxu0
      %647 = vmatprep.mubr.f32.mxu0 0.0
      %648 = vmatmul.mubr.f32.gmra.mrb[0].mxu0 %v450
      %v649 = vpop.f32.mrb[0].mxu0
      %v650 = vadd.f32 0.0, %v649
      %v651 = vpop.f32.mrb[0].mxu0
      %652 = vmatprep.mubr.f32.mxu0 0.0
      %653 = vmatmul.mubr.f32.gmra.mrb[0].mxu0 %v453
      %v654 = vpop.f32.mrb[0].mxu0
      %v655 = vadd.f32 0.0, %v654
      %v656 = vpop.f32.mrb[0].mxu0
      %657 = vmatprep.mubr.f32.mxu0 0.0
      %658 = vmatmul.mubr.f32.gmra.mrb[0].mxu0 %v456
      %v659 = vpop.f32.mrb[0].mxu0
      %v660 = vadd.f32 0.0, %v659
      %v661 = vpop.f32.mrb[0].mxu0
      %662 = vmatprep.mubr.f32.mxu0 0.0
      %663 = vmatmul.mubr.f32.gmra.mrb[0].mxu0 %v459
      %v664 = vpop.f32.mrb[0].mxu0
      %v665 = vadd.f32 0.0, %v664
      %v666 = vpop.f32.mrb[0].mxu0
      %667 = vmatprep.mubr.f32.mxu0 0.0
      %668 = vmatmul.mubr.f32.gmra.mrb[0].mxu0 %v462
      %v669 = vpop.f32.mrb[0].mxu0
      %v670 = vadd.f32 0.0, %v669
      %v671 = vpop.f32.mrb[0].mxu0
      %672 = vmatprep.mubr.f32.mxu0 0.0
      %673 = vmatmul.mubr.f32.gmra.mrb[0].mxu0 %v465
      %v674 = vpop.f32.mrb[0].mxu0
      %v675 = vadd.f32 0.0, %v674
      %v676 = vpop.f32.mrb[0].mxu0
      %677 = vmatprep.mubr.f32.mxu0 0.0
      %678 = vmatmul.mubr.f32.gmra.mrb[0].mxu0 %v468
      %v679 = vpop.f32.mrb[0].mxu0
      %v680 = vadd.f32 0.0, %v679
      %v681 = vpop.f32.mrb[0].mxu0
      %682 = vmatprep.mubr.f32.mxu0 0.0
      %683 = vmatmul.mubr.f32.gmra.mrb[0].mxu0 %v471
      %v684 = vpop.f32.mrb[0].mxu0
      %v685 = vadd.f32 0.0, %v684
      %v686 = vpop.f32.mrb[0].mxu0
      %687 = vmatprep.mubr.f32.mxu0 0.0
      %688 = vmatmul.mubr.f32.gmra.mrb[0].mxu0 %v474
      %v689 = vpop.f32.mrb[0].mxu0
      %v690 = vadd.f32 0.0, %v689
      %v691 = vpop.f32.mrb[0].mxu0
      %692 = vmatprep.mubr.f32.mxu0 0.0
      %693 = vmatmul.mubr.f32.gmra.mrb[0].mxu0 %v477
      %v694 = vpop.f32.mrb[0].mxu0
      %v695 = vadd.f32 0.0, %v694
      %v696 = vpop.f32.mrb[0].mxu0
      %697 = vmatprep.mubr.f32.mxu0 0.0
      %698 = vmatmul.mubr.f32.gmra.mrb[0].mxu0 %v480
      %v699 = vpop.f32.mrb[0].mxu0
      %v700 = vadd.f32 0.0, %v699
      %v701 = vpop.f32.mrb[0].mxu0
      %702 = vmatprep.mubr.f32.mxu0 0.0
      %703 = vmatmul.mubr.f32.gmra.mrb[0].mxu0 %v483
      %v704 = vpop.f32.mrb[0].mxu0
      %v705 = vadd.f32 0.0, %v704
      %v706 = vpop.f32.mrb[0].mxu0
      %707 = vmatprep.mubr.f32.mxu0 0.0
      %708 = vmatmul.mubr.f32.gmra.mrb[0].mxu0 %v486
      %v709 = vpop.f32.mrb[0].mxu0
      %v710 = vadd.f32 0.0, %v709
      %v711 = vpop.f32.mrb[0].mxu0
      %712 = vmatprep.mubr.f32.mxu0 0.0
      %713 = vmatmul.mubr.f32.gmra.mrb[0].mxu0 %v489
      %v714 = vpop.f32.mrb[0].mxu0
      %v715 = vadd.f32 0.0, %v714
      %v716 = vpop.f32.mrb[0].mxu0
      %717 = vmatprep.mubr.f32.mxu0 0.0
      %718 = vmatmul.mubr.f32.gmra.mrb[0].mxu0 %v492
      %v719 = vpop.f32.mrb[0].mxu0
      %v720 = vadd.f32 0.0, %v719
      %v721 = vpop.f32.mrb[0].mxu0
      %722 = vdwg.mxu0
      %v723 = vadd.f32 %v332, %v565
      %v724 = vadd.f32 %v333, %v570
      %v725 = vadd.f32 %v334, %v575
      %v726 = vadd.f32 %v335, %v580
      %v727 = vadd.f32 %v336, %v585
      %v728 = vadd.f32 %v337, %v590
      %v729 = vadd.f32 %v338, %v595
      %v730 = vadd.f32 %v339, %v600
      %v731 = vadd.f32 %v340, %v605
      %v732 = vadd.f32 %v341, %v610
      %v733 = vadd.f32 %v342, %v615
      %v734 = vadd.f32 %v343, %v620
      %v735 = vadd.f32 %v344, %v625
      %v736 = vadd.f32 %v345, %v630
      %v737 = vadd.f32 %v346, %v635
      %v738 = vadd.f32 %v347, %v640
      %v739 = vadd.f32 %v348, %v645
      %v740 = vadd.f32 %v349, %v650
      %v741 = vadd.f32 %v350, %v655
      %v742 = vadd.f32 %v351, %v660
      %v743 = vadd.f32 %v352, %v665
      %v744 = vadd.f32 %v353, %v670
      %v745 = vadd.f32 %v354, %v675
      %v746 = vadd.f32 %v355, %v680
      %v747 = vadd.f32 %v356, %v685
      %v748 = vadd.f32 %v357, %v690
      %v749 = vadd.f32 %v358, %v695
      %v750 = vadd.f32 %v359, %v700
      %v751 = vadd.f32 %v360, %v705
      %v752 = vadd.f32 %v361, %v710
      %v753 = vadd.f32 %v362, %v715
      %v754 = vadd.f32 %v363, %v720
      %755 = vst.msk [vmem:[#allocation2] sm:$0xff] %vm397, %v723
      %756 = vst.msk [vmem:[#allocation2 + $0x8] sm:$0xff] %vm397, %v724
      %757 = vst.msk [vmem:[#allocation2 + $0x10] sm:$0xff] %vm397, %v725
      %758 = vst.msk [vmem:[#allocation2 + $0x18] sm:$0xff] %vm397, %v726
      %759 = vst.msk [vmem:[#allocation2 + $0x20] sm:$0xff] %vm397, %v727
      %760 = vst.msk [vmem:[#allocation2 + $0x28] sm:$0xff] %vm397, %v728
      %761 = vst.msk [vmem:[#allocation2 + $0x30] sm:$0xff] %vm397, %v729
      %762 = vst.msk [vmem:[#allocation2 + $0x38] sm:$0xff] %vm397, %v730
      %763 = vst.msk [vmem:[#allocation2 + $0x40] sm:$0xff] %vm397, %v731
      %764 = vst.msk [vmem:[#allocation2 + $0x48] sm:$0xff] %vm397, %v732
      %765 = vst.msk [vmem:[#allocation2 + $0x50] sm:$0xff] %vm397, %v733
      %766 = vst.msk [vmem:[#allocation2 + $0x58] sm:$0xff] %vm397, %v734
      %767 = vst.msk [vmem:[#allocation2 + $0x60] sm:$0xff] %vm397, %v735
      %768 = vst.msk [vmem:[#allocation2 + $0x68] sm:$0xff] %vm397, %v736
      %769 = vst.msk [vmem:[#allocation2 + $0x70] sm:$0xff] %vm397, %v737
      %770 = vst.msk [vmem:[#allocation2 + $0x78] sm:$0xff] %vm397, %v738
      %771 = vst.msk [vmem:[#allocation2 + $0x80] sm:$0xff] %vm397, %v739
      %772 = vst.msk [vmem:[#allocation2 + $0x88] sm:$0xff] %vm397, %v740
      %773 = vst.msk [vmem:[#allocation2 + $0x90] sm:$0xff] %vm397, %v741
      %774 = vst.msk [vmem:[#allocation2 + $0x98] sm:$0xff] %vm397, %v742
      %775 = vst.msk [vmem:[#allocation2 + $0xa0] sm:$0xff] %vm397, %v743
      %776 = vst.msk [vmem:[#allocation2 + $0xa8] sm:$0xff] %vm397, %v744
      %777 = vst.msk [vmem:[#allocation2 + $0xb0] sm:$0xff] %vm397, %v745
      %778 = vst.msk [vmem:[#allocation2 + $0xb8] sm:$0xff] %vm397, %v746
      %779 = vst.msk [vmem:[#allocation2 + $0xc0] sm:$0xff] %vm397, %v747
      %780 = vst.msk [vmem:[#allocation2 + $0xc8] sm:$0xff] %vm397, %v748
      %781 = vst.msk [vmem:[#allocation2 + $0xd0] sm:$0xff] %vm397, %v749
      %782 = vst.msk [vmem:[#allocation2 + $0xd8] sm:$0xff] %vm397, %v750
      %783 = vst.msk [vmem:[#allocation2 + $0xe0] sm:$0xff] %vm397, %v751
      %784 = vst.msk [vmem:[#allocation2 + $0xe8] sm:$0xff] %vm397, %v752
      %785 = vst.msk [vmem:[#allocation2 + $0xf0] sm:$0xff] %vm397, %v753
      %786 = vst.msk [vmem:[#allocation2 + $0xf8] sm:$0xff] %vm397, %v754
      // Predicated region
      $region41: #{bottleneck_forward.3} parent=35 // pred_check
        %p787 = pneg %p295
      $region42: #{bottleneck_forward.3} parent=35 // pred_check_branch
        %789 = sbr.rel (%p787) target = $region44
      $region43: #{bottleneck_forward.3} parent=35 // pred_region
        %v790 = vld [vmem:[#allocation2] sm:$0xff]
        %v791 = vld [vmem:[#allocation2 + $0x8] sm:$0xff]
        %v792 = vld [vmem:[#allocation2 + $0x10] sm:$0xff]
        %v793 = vld [vmem:[#allocation2 + $0x18] sm:$0xff]
        %v794 = vld [vmem:[#allocation2 + $0x20] sm:$0xff]
        %v795 = vld [vmem:[#allocation2 + $0x28] sm:$0xff]
        %v796 = vld [vmem:[#allocation2 + $0x30] sm:$0xff]
        %v797 = vld [vmem:[#allocation2 + $0x38] sm:$0xff]
        %v798 = vld [vmem:[#allocation2 + $0x40] sm:$0xff]
        %v799 = vld [vmem:[#allocation2 + $0x48] sm:$0xff]
        %v800 = vld [vmem:[#allocation2 + $0x50] sm:$0xff]
        %v801 = vld [vmem:[#allocation2 + $0x58] sm:$0xff]
        %v802 = vld [vmem:[#allocation2 + $0x60] sm:$0xff]
        %v803 = vld [vmem:[#allocation2 + $0x68] sm:$0xff]
        %v804 = vld [vmem:[#allocation2 + $0x70] sm:$0xff]
        %v805 = vld [vmem:[#allocation2 + $0x78] sm:$0xff]
        %v806 = vld [vmem:[#allocation2 + $0x80] sm:$0xff]
        %v807 = vld [vmem:[#allocation2 + $0x88] sm:$0xff]
        %v808 = vld [vmem:[#allocation2 + $0x90] sm:$0xff]
        %v809 = vld [vmem:[#allocation2 + $0x98] sm:$0xff]
        %v810 = vld [vmem:[#allocation2 + $0xa0] sm:$0xff]
        %v811 = vld [vmem:[#allocation2 + $0xa8] sm:$0xff]
        %v812 = vld [vmem:[#allocation2 + $0xb0] sm:$0xff]
        %v813 = vld [vmem:[#allocation2 + $0xb8] sm:$0xff]
        %v814 = vld [vmem:[#allocation2 + $0xc0] sm:$0xff]
        %v815 = vld [vmem:[#allocation2 + $0xc8] sm:$0xff]
        %v816 = vld [vmem:[#allocation2 + $0xd0] sm:$0xff]
        %v817 = vld [vmem:[#allocation2 + $0xd8] sm:$0xff]
        %v818 = vld [vmem:[#allocation2 + $0xe0] sm:$0xff]
        %v819 = vld [vmem:[#allocation2 + $0xe8] sm:$0xff]
        %v820 = vld [vmem:[#allocation2 + $0xf0] sm:$0xff]
        %v821 = vld [vmem:[#allocation2 + $0xf8] sm:$0xff]
        %v822 = vld [vmem:[%s282] sm:$0x1]
        %v824 = vlaneseq
        %v825 = vshrl.u32 %v824, 7
        %v826 = vsub.s32 0, %v825
        %v827 = vrot.slane %v822, %v826
        %v829 = vmul.f32 %v790, %v827
        %v830 = vmul.f32 %v791, %v827
        %v831 = vmul.f32 %v792, %v827
        %v832 = vmul.f32 %v793, %v827
        %v833 = vmul.f32 %v794, %v827
        %v834 = vmul.f32 %v795, %v827
        %v835 = vmul.f32 %v796, %v827
        %v836 = vmul.f32 %v797, %v827
        %v837 = vmul.f32 %v798, %v827
        %v838 = vmul.f32 %v799, %v827
        %v839 = vmul.f32 %v800, %v827
        %v840 = vmul.f32 %v801, %v827
        %v841 = vmul.f32 %v802, %v827
        %v842 = vmul.f32 %v803, %v827
        %v843 = vmul.f32 %v804, %v827
        %v844 = vmul.f32 %v805, %v827
        %v845 = vmul.f32 %v806, %v827
        %v846 = vmul.f32 %v807, %v827
        %v847 = vmul.f32 %v808, %v827
        %v848 = vmul.f32 %v809, %v827
        %v849 = vmul.f32 %v810, %v827
        %v850 = vmul.f32 %v811, %v827
        %v851 = vmul.f32 %v812, %v827
        %v852 = vmul.f32 %v813, %v827
        %v853 = vmul.f32 %v814, %v827
        %v854 = vmul.f32 %v815, %v827
        %v855 = vmul.f32 %v816, %v827
        %v856 = vmul.f32 %v817, %v827
        %v857 = vmul.f32 %v818, %v827
        %v858 = vmul.f32 %v819, %v827
        %v859 = vmul.f32 %v820, %v827
        %v860 = vmul.f32 %v821, %v827
        %v861 = vld [vmem:[%s285] sm:$0x1]
        %v863 = vlaneseq
        %v864 = vshrl.u32 %v863, 7
        %v865 = vsub.s32 0, %v864
        %v866 = vrot.slane %v861, %v865
        %v868 = vadd.f32 %v829, %v866
        %v869 = vadd.f32 %v830, %v866
        %v870 = vadd.f32 %v831, %v866
        %v871 = vadd.f32 %v832, %v866
        %v872 = vadd.f32 %v833, %v866
        %v873 = vadd.f32 %v834, %v866
        %v874 = vadd.f32 %v835, %v866
        %v875 = vadd.f32 %v836, %v866
        %v876 = vadd.f32 %v837, %v866
        %v877 = vadd.f32 %v838, %v866
        %v878 = vadd.f32 %v839, %v866
        %v879 = vadd.f32 %v840, %v866
        %v880 = vadd.f32 %v841, %v866
        %v881 = vadd.f32 %v842, %v866
        %v882 = vadd.f32 %v843, %v866
        %v883 = vadd.f32 %v844, %v866
        %v884 = vadd.f32 %v845, %v866
        %v885 = vadd.f32 %v846, %v866
        %v886 = vadd.f32 %v847, %v866
        %v887 = vadd.f32 %v848, %v866
        %v888 = vadd.f32 %v849, %v866
        %v889 = vadd.f32 %v850, %v866
        %v890 = vadd.f32 %v851, %v866
        %v891 = vadd.f32 %v852, %v866
        %v892 = vadd.f32 %v853, %v866
        %v893 = vadd.f32 %v854, %v866
        %v894 = vadd.f32 %v855, %v866
        %v895 = vadd.f32 %v856, %v866
        %v896 = vadd.f32 %v857, %v866
        %v897 = vadd.f32 %v858, %v866
        %v898 = vadd.f32 %v859, %v866
        %v899 = vadd.f32 %v860, %v866
        %v900 = vmax.f32 %v868, 0.0
        %v901 = vmax.f32 %v869, 0.0
        %v902 = vmax.f32 %v870, 0.0
        %v903 = vmax.f32 %v871, 0.0
        %v904 = vmax.f32 %v872, 0.0
        %v905 = vmax.f32 %v873, 0.0
        %v906 = vmax.f32 %v874, 0.0
        %v907 = vmax.f32 %v875, 0.0
        %v908 = vmax.f32 %v876, 0.0
        %v909 = vmax.f32 %v877, 0.0
        %v910 = vmax.f32 %v878, 0.0
        %v911 = vmax.f32 %v879, 0.0
        %v912 = vmax.f32 %v880, 0.0
        %v913 = vmax.f32 %v881, 0.0
        %v914 = vmax.f32 %v882, 0.0
        %v915 = vmax.f32 %v883, 0.0
        %v916 = vmax.f32 %v884, 0.0
        %v917 = vmax.f32 %v885, 0.0
        %v918 = vmax.f32 %v886, 0.0
        %v919 = vmax.f32 %v887, 0.0
        %v920 = vmax.f32 %v888, 0.0
        %v921 = vmax.f32 %v889, 0.0
        %v922 = vmax.f32 %v890, 0.0
        %v923 = vmax.f32 %v891, 0.0
        %v924 = vmax.f32 %v892, 0.0
        %v925 = vmax.f32 %v893, 0.0
        %v926 = vmax.f32 %v894, 0.0
        %v927 = vmax.f32 %v895, 0.0
        %v928 = vmax.f32 %v896, 0.0
        %v929 = vmax.f32 %v897, 0.0
        %v930 = vmax.f32 %v898, 0.0
        %v931 = vmax.f32 %v899, 0.0
        %932 = vst.msk [vmem:[%s293] sm:$0xff] %vm397, %v900
        %933 = vst.msk [vmem:[%s293 + $0x8] sm:$0xff] %vm397, %v901
        %934 = vst.msk [vmem:[%s293 + $0x10] sm:$0xff] %vm397, %v902
        %935 = vst.msk [vmem:[%s293 + $0x18] sm:$0xff] %vm397, %v903
        %936 = vst.msk [vmem:[%s293 + $0x20] sm:$0xff] %vm397, %v904
        %937 = vst.msk [vmem:[%s293 + $0x28] sm:$0xff] %vm397, %v905
        %938 = vst.msk [vmem:[%s293 + $0x30] sm:$0xff] %vm397, %v906
        %939 = vst.msk [vmem:[%s293 + $0x38] sm:$0xff] %vm397, %v907
        %940 = vst.msk [vmem:[%s293 + $0x40] sm:$0xff] %vm397, %v908
        %941 = vst.msk [vmem:[%s293 + $0x48] sm:$0xff] %vm397, %v909
        %942 = vst.msk [vmem:[%s293 + $0x50] sm:$0xff] %vm397, %v910
        %943 = vst.msk [vmem:[%s293 + $0x58] sm:$0xff] %vm397, %v911
        %944 = vst.msk [vmem:[%s293 + $0x60] sm:$0xff] %vm397, %v912
        %945 = vst.msk [vmem:[%s293 + $0x68] sm:$0xff] %vm397, %v913
        %946 = vst.msk [vmem:[%s293 + $0x70] sm:$0xff] %vm397, %v914
        %947 = vst.msk [vmem:[%s293 + $0x78] sm:$0xff] %vm397, %v915
        %948 = vst.msk [vmem:[%s293 + $0x80] sm:$0xff] %vm397, %v916
        %949 = vst.msk [vmem:[%s293 + $0x88] sm:$0xff] %vm397, %v917
        %950 = vst.msk [vmem:[%s293 + $0x90] sm:$0xff] %vm397, %v918
        %951 = vst.msk [vmem:[%s293 + $0x98] sm:$0xff] %vm397, %v919
        %952 = vst.msk [vmem:[%s293 + $0xa0] sm:$0xff] %vm397, %v920
        %953 = vst.msk [vmem:[%s293 + $0xa8] sm:$0xff] %vm397, %v921
        %954 = vst.msk [vmem:[%s293 + $0xb0] sm:$0xff] %vm397, %v922
        %955 = vst.msk [vmem:[%s293 + $0xb8] sm:$0xff] %vm397, %v923
        %956 = vst.msk [vmem:[%s293 + $0xc0] sm:$0xff] %vm397, %v924
        %957 = vst.msk [vmem:[%s293 + $0xc8] sm:$0xff] %vm397, %v925
        %958 = vst.msk [vmem:[%s293 + $0xd0] sm:$0xff] %vm397, %v926
        %959 = vst.msk [vmem:[%s293 + $0xd8] sm:$0xff] %vm397, %v927
        %960 = vst.msk [vmem:[%s293 + $0xe0] sm:$0xff] %vm397, %v928
        %961 = vst.msk [vmem:[%s293 + $0xe8] sm:$0xff] %vm397, %v929
        %962 = vst.msk [vmem:[%s293 + $0xf0] sm:$0xff] %vm397, %v930
        %963 = vst.msk [vmem:[%s293 + $0xf8] sm:$0xff] %vm397, %v931
      $region44: #{bottleneck_forward.3} parent=35 // pred_fallthru
        _
      %s964 = smul.u32 32, %s20
      %p965 = scmp.lt.s32.totalorder %s964, 63
      %s966 = scalar_select %p965, %s964, 63
      %p967 = scmp.lt.s32.totalorder %s21, 0
      %s968 = scalar_select %p967, %s21, 0
      %s969 = sadd.s32 %s968, %s966
      %s970 = smul.addr %s969, 8
      %s971 = scalar_lea.vmem %s4, %s970
      // Predicated region
      $region45: #{bottleneck_forward.3} parent=35 // pred_check
        %p972 = pneg %p162
      $region46: #{bottleneck_forward.3} parent=35 // pred_check_branch
        %974 = sbr.rel (%p972) target = $region48
      $region47: #{bottleneck_forward.3} parent=35 // pred_region
        %s975 = smul.u32 32, %s20
      $region48: #{bottleneck_forward.3} parent=35 // pred_fallthru
        _
    $region36: #{bottleneck_forward.3} parent=5 // pred_fallthru
      _
    %p976 = scmp.le.s32.totalorder 2, %s10
    // Predicated region
    $region49: #{bottleneck_forward.3} parent=5 // pred_check
      %p977 = pneg %p976
    $region50: #{bottleneck_forward.3} parent=5 // pred_check_branch
      %979 = sbr.rel (%p977) target = $region52
    $region51: #{bottleneck_forward.3} parent=5 // pred_region
      %s980 = ssub.s32 %s10, 2
      // Predicated region
      $region53: #{bottleneck_forward.3} parent=51 // pred_check
        %p981 = pneg %p168
      $region54: #{bottleneck_forward.3} parent=51 // pred_check_branch
        %983 = sbr.rel (%p981) target = $region56
      $region55: #{bottleneck_forward.3} parent=51 // pred_region
        %s984 = smul.u32 32, %s23
        %p985 = scmp.lt.s32.totalorder %s984, 63
        %s986 = scalar_select %p985, %s984, 63
        %p987 = scmp.lt.s32.totalorder %s24, 0
        %s988 = scalar_select %p987, %s24, 0
        %s989 = sadd.s32 %s988, %s986
        %s990 = smul.addr %s989, 8
        %s991 = scalar_lea.vmem %s4, %s990
      $region56: #{bottleneck_forward.3} parent=51 // pred_fallthru
        _
    $region52: #{bottleneck_forward.3} parent=5 // pred_fallthru
      _
  $region6: #{bottleneck_forward.3} parent=0 // loop_footer
    %s14 = sadd.s32 1, %s10
  $region7: #{bottleneck_forward.3} parent=0 // loop_footer_branch
    %9 = sbr.rel target = $region3
  $region8: #{bottleneck_forward.3} parent=0 // loop_exit
    _

// kernel: bottleneck_forward.5
$region0: #{bottleneck_forward.5}
  #allocation0 [shape = 'u32[]', space=smem, size = 0x4, offset = 0x4, fixed_abs, tag = 'smem constant byte address 0x4 - core index']
  #allocation1 [shape = 'u32[144,128]{1,0:T(1,128)}', space=vmem, size = 0x12000, scoped, tag = 'internal scratch']
  %s0 = inlined_call_operand.vmem [shape: f32[128,4], index: 0, kind: input, shape index: {}]
  %s1 = inlined_call_operand.vmem [shape: f32[4,16], index: 1, kind: input, shape index: {}]
  %s2 = inlined_call_operand.vmem [shape: f32[1,16], index: 2, kind: input, shape index: {}]
  %s3 = inlined_call_operand.vmem [shape: f32[1,16], index: 3, kind: input, shape index: {}]
  %s4 = inlined_call_operand.vmem [shape: f32[128,4], index: 4, kind: input, shape index: {}]
  %s5 = inlined_call_operand.vmem [shape: f32[4,16], index: 5, kind: input, shape index: {}]
  %s6 = inlined_call_operand.vmem [shape: f32[1,16], index: 6, kind: input, shape index: {}]
  %s7 = inlined_call_operand.vmem [shape: f32[1,16], index: 7, kind: input, shape index: {}]
  %s8 = inlined_call_operand.hbm [shape: f32[128,16], index: 8, kind: output, shape index: {}]
  %s9 = sld [smem:[#allocation0]]
  $region42: #{bottleneck_forward.5} parent=0
    _
  %s11 = ssub.s32 1, %s9
  %s12 = scalar_select 0, %s11, %s9
  $region1: #{bottleneck_forward.5} parent=0
    #allocation2 [shape = 'u8[65536]{0}', space=vmem, size = 0x10000, scoped, tag = 'output window, operand 0, single buffered']
    #allocation3 [shape = 's32[1]{0}', space=sflag, size = 0x4, scoped, tag = 'scoped memory for bottleneck_forward.5']
    %13 = vsyncpa [#allocation3], 0
    // Predicated region
    $region2: #{bottleneck_forward.5} parent=1 // pred_check
      _
    $region3: #{bottleneck_forward.5} parent=1 // pred_check_branch
      %15 = sbr.rel (0) target = $region5
    $region4: #{bottleneck_forward.5} parent=1 // pred_region
      _
    $region5: #{bottleneck_forward.5} parent=1 // pred_fallthru
      _
    // Predicated region
    $region6: #{bottleneck_forward.5} parent=1 // pred_check
      _
    $region7: #{bottleneck_forward.5} parent=1 // pred_check_branch
      %17 = sbr.rel (0) target = $region9
    $region8: #{bottleneck_forward.5} parent=1 // pred_region
      _
    $region9: #{bottleneck_forward.5} parent=1 // pred_fallthru
      _
    // Predicated region
    $region10: #{bottleneck_forward.5} parent=1 // pred_check
      _
    $region11: #{bottleneck_forward.5} parent=1 // pred_check_branch
      %19 = sbr.rel (0) target = $region13
    $region12: #{bottleneck_forward.5} parent=1 // pred_region
      _
    $region13: #{bottleneck_forward.5} parent=1 // pred_fallthru
      _
    // Predicated region
    $region14: #{bottleneck_forward.5} parent=1 // pred_check
      _
    $region15: #{bottleneck_forward.5} parent=1 // pred_check_branch
      %21 = sbr.rel (0) target = $region17
    $region16: #{bottleneck_forward.5} parent=1 // pred_region
      _
    $region17: #{bottleneck_forward.5} parent=1 // pred_fallthru
      _
    // Predicated region
    $region18: #{bottleneck_forward.5} parent=1 // pred_check
      _
    $region19: #{bottleneck_forward.5} parent=1 // pred_check_branch
      %23 = sbr.rel (0) target = $region21
    $region20: #{bottleneck_forward.5} parent=1 // pred_region
      _
    $region21: #{bottleneck_forward.5} parent=1 // pred_fallthru
      _
    // Predicated region
    $region22: #{bottleneck_forward.5} parent=1 // pred_check
      _
    $region23: #{bottleneck_forward.5} parent=1 // pred_check_branch
      %25 = sbr.rel (0) target = $region25
    $region24: #{bottleneck_forward.5} parent=1 // pred_region
      _
    $region25: #{bottleneck_forward.5} parent=1 // pred_fallthru
      _
    // Predicated region
    $region26: #{bottleneck_forward.5} parent=1 // pred_check
      _
    $region27: #{bottleneck_forward.5} parent=1 // pred_check_branch
      %27 = sbr.rel (0) target = $region29
    $region28: #{bottleneck_forward.5} parent=1 // pred_region
      _
    $region29: #{bottleneck_forward.5} parent=1 // pred_fallthru
      _
    // Predicated region
    $region30: #{bottleneck_forward.5} parent=1 // pred_check
      _
    $region31: #{bottleneck_forward.5} parent=1 // pred_check_branch
      %29 = sbr.rel (0) target = $region33
    $region32: #{bottleneck_forward.5} parent=1 // pred_region
      _
    $region33: #{bottleneck_forward.5} parent=1 // pred_fallthru
      _
    %v30 = vld [vmem:[%s0] sm:$0xff]
    %v31 = vld [vmem:[%s0 + $0x8] sm:$0xff]
    %v32 = vld [vmem:[%s0 + $0x10] sm:$0xff]
    %v33 = vld [vmem:[%s0 + $0x18] sm:$0xff]
    %v34 = vld [vmem:[%s0 + $0x20] sm:$0xff]
    %v35 = vld [vmem:[%s0 + $0x28] sm:$0xff]
    %v36 = vld [vmem:[%s0 + $0x30] sm:$0xff]
    %v37 = vld [vmem:[%s0 + $0x38] sm:$0xff]
    %v38 = vld [vmem:[%s0 + $0x40] sm:$0xff]
    %v39 = vld [vmem:[%s0 + $0x48] sm:$0xff]
    %v40 = vld [vmem:[%s0 + $0x50] sm:$0xff]
    %v41 = vld [vmem:[%s0 + $0x58] sm:$0xff]
    %v42 = vld [vmem:[%s0 + $0x60] sm:$0xff]
    %v43 = vld [vmem:[%s0 + $0x68] sm:$0xff]
    %v44 = vld [vmem:[%s0 + $0x70] sm:$0xff]
    %v45 = vld [vmem:[%s0 + $0x78] sm:$0xff]
    %v46 = vld [vmem:[%s1] sm:$0xf]
    %vm47 = vcmask 31744
    %v49 = vsel %vm47, %v30, 0
    %v52 = vsel %vm47, %v31, 0
    %v55 = vsel %vm47, %v32, 0
    %v58 = vsel %vm47, %v33, 0
    %v61 = vsel %vm47, %v34, 0
    %v64 = vsel %vm47, %v35, 0
    %v67 = vsel %vm47, %v36, 0
    %v70 = vsel %vm47, %v37, 0
    %v73 = vsel %vm47, %v38, 0
    %v76 = vsel %vm47, %v39, 0
    %v79 = vsel %vm47, %v40, 0
    %v82 = vsel %vm47, %v41, 0
    %v85 = vsel %vm47, %v42, 0
    %v88 = vsel %vm47, %v43, 0
    %v91 = vsel %vm47, %v44, 0
    %v94 = vsel %vm47, %v45, 0
    %vm96 = vcmask 1043456
    %v98 = vsel %vm96, %v46, 0
    %100 = vmatprep.subr.mxu0 0.0
    %101 = vmatpush1.msra.mxu0 %v98
    %102 = vmatprep.subr.mxu0 0.0
    %103 = vmatpush1.msra.mxu0 0.0
    %104 = vmatprep.subr.mxu0 0.0
    %105 = vmatpush1.msra.mxu0 0.0
    %106 = vmatprep.subr.mxu0 0.0
    %107 = vmatpush1.msra.mxu0 0.0
    %108 = vmatprep.subr.mxu0 0.0
    %109 = vmatpush1.msra.mxu0 0.0
    %110 = vmatprep.subr.mxu0 0.0
    %111 = vmatpush1.msra.mxu0 0.0
    %112 = vmatprep.subr.mxu0 0.0
    %113 = vmatpush1.msra.mxu0 0.0
    %114 = vmatprep.subr.mxu0 0.0
    %115 = vmatpush1.msra.mxu0 0.0
    %116 = vmatprep.subr.mxu0 0.0
    %117 = vmatpush1.msra.mxu0 0.0
    %118 = vmatprep.subr.mxu0 0.0
    %119 = vmatpush1.msra.mxu0 0.0
    %120 = vmatprep.subr.mxu0 0.0
    %121 = vmatpush1.msra.mxu0 0.0
    %122 = vmatprep.subr.mxu0 0.0
    %123 = vmatpush1.msra.mxu0 0.0
    %124 = vmatprep.subr.mxu0 0.0
    %125 = vmatpush1.msra.mxu0 0.0
    %126 = vmatprep.subr.mxu0 0.0
    %127 = vmatpush1.msra.mxu0 0.0
    %128 = vmatprep.subr.mxu0 0.0
    %129 = vmatpush1.msra.mxu0 0.0
    %130 = vmatprep.subr.mxu0 0.0
    %131 = vmatpush1.msra.mxu0 0.0
    %132 = vmatprep.subr.mxu0 0.0
    %133 = vmatpush1.msra.mxu0 0.0
    %134 = vmatprep.subr.mxu0 0.0
    %135 = vmatpush1.msra.mxu0 0.0
    %136 = vmatprep.subr.mxu0 0.0
    %137 = vmatpush1.msra.mxu0 0.0
    %138 = vmatprep.subr.mxu0 0.0
    %139 = vmatpush1.msra.mxu0 0.0
    %140 = vmatprep.subr.mxu0 0.0
    %141 = vmatpush1.msra.mxu0 0.0
    %142 = vmatprep.subr.mxu0 0.0
    %143 = vmatpush1.msra.mxu0 0.0
    %144 = vmatprep.subr.mxu0 0.0
    %145 = vmatpush1.msra.mxu0 0.0
    %146 = vmatprep.subr.mxu0 0.0
    %147 = vmatpush1.msra.mxu0 0.0
    %148 = vmatprep.subr.mxu0 0.0
    %149 = vmatpush1.msra.mxu0 0.0
    %150 = vmatprep.subr.mxu0 0.0
    %151 = vmatpush1.msra.mxu0 0.0
    %152 = vmatprep.subr.mxu0 0.0
    %153 = vmatpush1.msra.mxu0 0.0
    %154 = vmatprep.subr.mxu0 0.0
    %155 = vmatpush1.msra.mxu0 0.0
    %156 = vmatprep.subr.mxu0 0.0
    %157 = vmatpush1.msra.mxu0 0.0
    %158 = vmatprep.subr.mxu0 0.0
    %159 = vmatpush1.msra.mxu0 0.0
    %160 = vmatprep.subr.mxu0 0.0
    %161 = vmatpush1.msra.mxu0 0.0
    %162 = vmatprep.subr.mxu0 0.0
    %163 = vmatpush1.msra.mxu0 0.0
    %164 = vmatprep.mubr.f32.mxu0 0.0
    %165 = vmatmul.mubr.f32.gmra.mrb[0].mxu0 %v49
    %v166 = vpop.f32.mrb[0].mxu0
    %v167 = vadd.f32 0.0, %v166
    %v168 = vpop.f32.mrb[0].mxu0
    %169 = vmatprep.mubr.f32.mxu0 0.0
    %170 = vmatmul.mubr.f32.gmra.mrb[0].mxu0 %v52
    %v171 = vpop.f32.mrb[0].mxu0
    %v172 = vadd.f32 0.0, %v171
    %v173 = vpop.f32.mrb[0].mxu0
    %174 = vmatprep.mubr.f32.mxu0 0.0
    %175 = vmatmul.mubr.f32.gmra.mrb[0].mxu0 %v55
    %v176 = vpop.f32.mrb[0].mxu0
    %v177 = vadd.f32 0.0, %v176
    %v178 = vpop.f32.mrb[0].mxu0
    %179 = vmatprep.mubr.f32.mxu0 0.0
    %180 = vmatmul.mubr.f32.gmra.mrb[0].mxu0 %v58
    %v181 = vpop.f32.mrb[0].mxu0
    %v182 = vadd.f32 0.0, %v181
    %v183 = vpop.f32.mrb[0].mxu0
    %184 = vmatprep.mubr.f32.mxu0 0.0
    %185 = vmatmul.mubr.f32.gmra.mrb[0].mxu0 %v61
    %v186 = vpop.f32.mrb[0].mxu0
    %v187 = vadd.f32 0.0, %v186
    %v188 = vpop.f32.mrb[0].mxu0
    %189 = vmatprep.mubr.f32.mxu0 0.0
    %190 = vmatmul.mubr.f32.gmra.mrb[0].mxu0 %v64
    %v191 = vpop.f32.mrb[0].mxu0
    %v192 = vadd.f32 0.0, %v191
    %v193 = vpop.f32.mrb[0].mxu0
    %194 = vmatprep.mubr.f32.mxu0 0.0
    %195 = vmatmul.mubr.f32.gmra.mrb[0].mxu0 %v67
    %v196 = vpop.f32.mrb[0].mxu0
    %v197 = vadd.f32 0.0, %v196
    %v198 = vpop.f32.mrb[0].mxu0
    %199 = vmatprep.mubr.f32.mxu0 0.0
    %200 = vmatmul.mubr.f32.gmra.mrb[0].mxu0 %v70
    %v201 = vpop.f32.mrb[0].mxu0
    %v202 = vadd.f32 0.0, %v201
    %v203 = vpop.f32.mrb[0].mxu0
    %204 = vmatprep.mubr.f32.mxu0 0.0
    %205 = vmatmul.mubr.f32.gmra.mrb[0].mxu0 %v73
    %v206 = vpop.f32.mrb[0].mxu0
    %v207 = vadd.f32 0.0, %v206
    %v208 = vpop.f32.mrb[0].mxu0
    %209 = vmatprep.mubr.f32.mxu0 0.0
    %210 = vmatmul.mubr.f32.gmra.mrb[0].mxu0 %v76
    %v211 = vpop.f32.mrb[0].mxu0
    %v212 = vadd.f32 0.0, %v211
    %v213 = vpop.f32.mrb[0].mxu0
    %214 = vmatprep.mubr.f32.mxu0 0.0
    %215 = vmatmul.mubr.f32.gmra.mrb[0].mxu0 %v79
    %v216 = vpop.f32.mrb[0].mxu0
    %v217 = vadd.f32 0.0, %v216
    %v218 = vpop.f32.mrb[0].mxu0
    %219 = vmatprep.mubr.f32.mxu0 0.0
    %220 = vmatmul.mubr.f32.gmra.mrb[0].mxu0 %v82
    %v221 = vpop.f32.mrb[0].mxu0
    %v222 = vadd.f32 0.0, %v221
    %v223 = vpop.f32.mrb[0].mxu0
    %224 = vmatprep.mubr.f32.mxu0 0.0
    %225 = vmatmul.mubr.f32.gmra.mrb[0].mxu0 %v85
    %v226 = vpop.f32.mrb[0].mxu0
    %v227 = vadd.f32 0.0, %v226
    %v228 = vpop.f32.mrb[0].mxu0
    %229 = vmatprep.mubr.f32.mxu0 0.0
    %230 = vmatmul.mubr.f32.gmra.mrb[0].mxu0 %v88
    %v231 = vpop.f32.mrb[0].mxu0
    %v232 = vadd.f32 0.0, %v231
    %v233 = vpop.f32.mrb[0].mxu0
    %234 = vmatprep.mubr.f32.mxu0 0.0
    %235 = vmatmul.mubr.f32.gmra.mrb[0].mxu0 %v91
    %v236 = vpop.f32.mrb[0].mxu0
    %v237 = vadd.f32 0.0, %v236
    %v238 = vpop.f32.mrb[0].mxu0
    %239 = vmatprep.mubr.f32.mxu0 0.0
    %240 = vmatmul.mubr.f32.gmra.mrb[0].mxu0 %v94
    %v241 = vpop.f32.mrb[0].mxu0
    %v242 = vadd.f32 0.0, %v241
    %v243 = vpop.f32.mrb[0].mxu0
    %244 = vdwg.mxu0
    %v245 = vld [vmem:[%s2] sm:$0x1]
    %v247 = vlaneseq
    %v248 = vshrl.u32 %v247, 7
    %v249 = vsub.s32 0, %v248
    %v250 = vrot.slane %v245, %v249
    %v252 = vmul.f32 %v167, %v250
    %v253 = vmul.f32 %v172, %v250
    %v254 = vmul.f32 %v177, %v250
    %v255 = vmul.f32 %v182, %v250
    %v256 = vmul.f32 %v187, %v250
    %v257 = vmul.f32 %v192, %v250
    %v258 = vmul.f32 %v197, %v250
    %v259 = vmul.f32 %v202, %v250
    %v260 = vmul.f32 %v207, %v250
    %v261 = vmul.f32 %v212, %v250
    %v262 = vmul.f32 %v217, %v250
    %v263 = vmul.f32 %v222, %v250
    %v264 = vmul.f32 %v227, %v250
    %v265 = vmul.f32 %v232, %v250
    %v266 = vmul.f32 %v237, %v250
    %v267 = vmul.f32 %v242, %v250
    %v268 = vld [vmem:[%s3] sm:$0x1]
    %v270 = vlaneseq
    %v271 = vshrl.u32 %v270, 7
    %v272 = vsub.s32 0, %v271
    %v273 = vrot.slane %v268, %v272
    %v275 = vadd.f32 %v252, %v273
    %v276 = vadd.f32 %v253, %v273
    %v277 = vadd.f32 %v254, %v273
    %v278 = vadd.f32 %v255, %v273
    %v279 = vadd.f32 %v256, %v273
    %v280 = vadd.f32 %v257, %v273
    %v281 = vadd.f32 %v258, %v273
    %v282 = vadd.f32 %v259, %v273
    %v283 = vadd.f32 %v260, %v273
    %v284 = vadd.f32 %v261, %v273
    %v285 = vadd.f32 %v262, %v273
    %v286 = vadd.f32 %v263, %v273
    %v287 = vadd.f32 %v264, %v273
    %v288 = vadd.f32 %v265, %v273
    %v289 = vadd.f32 %v266, %v273
    %v290 = vadd.f32 %v267, %v273
    %v291 = vld [vmem:[%s4] sm:$0xff]
    %v292 = vld [vmem:[%s4 + $0x8] sm:$0xff]
    %v293 = vld [vmem:[%s4 + $0x10] sm:$0xff]
    %v294 = vld [vmem:[%s4 + $0x18] sm:$0xff]
    %v295 = vld [vmem:[%s4 + $0x20] sm:$0xff]
    %v296 = vld [vmem:[%s4 + $0x28] sm:$0xff]
    %v297 = vld [vmem:[%s4 + $0x30] sm:$0xff]
    %v298 = vld [vmem:[%s4 + $0x38] sm:$0xff]
    %v299 = vld [vmem:[%s4 + $0x40] sm:$0xff]
    %v300 = vld [vmem:[%s4 + $0x48] sm:$0xff]
    %v301 = vld [vmem:[%s4 + $0x50] sm:$0xff]
    %v302 = vld [vmem:[%s4 + $0x58] sm:$0xff]
    %v303 = vld [vmem:[%s4 + $0x60] sm:$0xff]
    %v304 = vld [vmem:[%s4 + $0x68] sm:$0xff]
    %v305 = vld [vmem:[%s4 + $0x70] sm:$0xff]
    %v306 = vld [vmem:[%s4 + $0x78] sm:$0xff]
    %v307 = vld [vmem:[%s5] sm:$0xf]
    %v309 = vsel %vm47, %v291, 0
    %v312 = vsel %vm47, %v292, 0
    %v315 = vsel %vm47, %v293, 0
    %v318 = vsel %vm47, %v294, 0
    %v321 = vsel %vm47, %v295, 0
    %v324 = vsel %vm47, %v296, 0
    %v327 = vsel %vm47, %v297, 0
    %v330 = vsel %vm47, %v298, 0
    %v333 = vsel %vm47, %v299, 0
    %v336 = vsel %vm47, %v300, 0
    %v339 = vsel %vm47, %v301, 0
    %v342 = vsel %vm47, %v302, 0
    %v345 = vsel %vm47, %v303, 0
    %v348 = vsel %vm47, %v304, 0
    %v351 = vsel %vm47, %v305, 0
    %v354 = vsel %vm47, %v306, 0
    %v357 = vsel %vm96, %v307, 0
    %359 = vmatprep.subr.mxu0 0.0
    %360 = vmatpush1.msra.mxu0 %v357
    %361 = vmatprep.subr.mxu0 0.0
    %362 = vmatpush1.msra.mxu0 0.0
    %363 = vmatprep.subr.mxu0 0.0
    %364 = vmatpush1.msra.mxu0 0.0
    %365 = vmatprep.subr.mxu0 0.0
    %366 = vmatpush1.msra.mxu0 0.0
    %367 = vmatprep.subr.mxu0 0.0
    %368 = vmatpush1.msra.mxu0 0.0
    %369 = vmatprep.subr.mxu0 0.0
    %370 = vmatpush1.msra.mxu0 0.0
    %371 = vmatprep.subr.mxu0 0.0
    %372 = vmatpush1.msra.mxu0 0.0
    %373 = vmatprep.subr.mxu0 0.0
    %374 = vmatpush1.msra.mxu0 0.0
    %375 = vmatprep.subr.mxu0 0.0
    %376 = vmatpush1.msra.mxu0 0.0
    %377 = vmatprep.subr.mxu0 0.0
    %378 = vmatpush1.msra.mxu0 0.0
    %379 = vmatprep.subr.mxu0 0.0
    %380 = vmatpush1.msra.mxu0 0.0
    %381 = vmatprep.subr.mxu0 0.0
    %382 = vmatpush1.msra.mxu0 0.0
    %383 = vmatprep.subr.mxu0 0.0
    %384 = vmatpush1.msra.mxu0 0.0
    %385 = vmatprep.subr.mxu0 0.0
    %386 = vmatpush1.msra.mxu0 0.0
    %387 = vmatprep.subr.mxu0 0.0
    %388 = vmatpush1.msra.mxu0 0.0
    %389 = vmatprep.subr.mxu0 0.0
    %390 = vmatpush1.msra.mxu0 0.0
    %391 = vmatprep.subr.mxu0 0.0
    %392 = vmatpush1.msra.mxu0 0.0
    %393 = vmatprep.subr.mxu0 0.0
    %394 = vmatpush1.msra.mxu0 0.0
    %395 = vmatprep.subr.mxu0 0.0
    %396 = vmatpush1.msra.mxu0 0.0
    %397 = vmatprep.subr.mxu0 0.0
    %398 = vmatpush1.msra.mxu0 0.0
    %399 = vmatprep.subr.mxu0 0.0
    %400 = vmatpush1.msra.mxu0 0.0
    %401 = vmatprep.subr.mxu0 0.0
    %402 = vmatpush1.msra.mxu0 0.0
    %403 = vmatprep.subr.mxu0 0.0
    %404 = vmatpush1.msra.mxu0 0.0
    %405 = vmatprep.subr.mxu0 0.0
    %406 = vmatpush1.msra.mxu0 0.0
    %407 = vmatprep.subr.mxu0 0.0
    %408 = vmatpush1.msra.mxu0 0.0
    %409 = vmatprep.subr.mxu0 0.0
    %410 = vmatpush1.msra.mxu0 0.0
    %411 = vmatprep.subr.mxu0 0.0
    %412 = vmatpush1.msra.mxu0 0.0
    %413 = vmatprep.subr.mxu0 0.0
    %414 = vmatpush1.msra.mxu0 0.0
    %415 = vmatprep.subr.mxu0 0.0
    %416 = vmatpush1.msra.mxu0 0.0
    %417 = vmatprep.subr.mxu0 0.0
    %418 = vmatpush1.msra.mxu0 0.0
    %419 = vmatprep.subr.mxu0 0.0
    %420 = vmatpush1.msra.mxu0 0.0
    %421 = vmatprep.subr.mxu0 0.0
    %422 = vmatpush1.msra.mxu0 0.0
    %423 = vmatprep.mubr.f32.mxu0 0.0
    %424 = vmatmul.mubr.f32.gmra.mrb[0].mxu0 %v309
    %v425 = vpop.f32.mrb[0].mxu0
    %v426 = vadd.f32 0.0, %v425
    %v427 = vpop.f32.mrb[0].mxu0
    %428 = vmatprep.mubr.f32.mxu0 0.0
    %429 = vmatmul.mubr.f32.gmra.mrb[0].mxu0 %v312
    %v430 = vpop.f32.mrb[0].mxu0
    %v431 = vadd.f32 0.0, %v430
    %v432 = vpop.f32.mrb[0].mxu0
    %433 = vmatprep.mubr.f32.mxu0 0.0
    %434 = vmatmul.mubr.f32.gmra.mrb[0].mxu0 %v315
    %v435 = vpop.f32.mrb[0].mxu0
    %v436 = vadd.f32 0.0, %v435
    %v437 = vpop.f32.mrb[0].mxu0
    %438 = vmatprep.mubr.f32.mxu0 0.0
    %439 = vmatmul.mubr.f32.gmra.mrb[0].mxu0 %v318
    %v440 = vpop.f32.mrb[0].mxu0
    %v441 = vadd.f32 0.0, %v440
    %v442 = vpop.f32.mrb[0].mxu0
    %443 = vmatprep.mubr.f32.mxu0 0.0
    %444 = vmatmul.mubr.f32.gmra.mrb[0].mxu0 %v321
    %v445 = vpop.f32.mrb[0].mxu0
    %v446 = vadd.f32 0.0, %v445
    %v447 = vpop.f32.mrb[0].mxu0
    %448 = vmatprep.mubr.f32.mxu0 0.0
    %449 = vmatmul.mubr.f32.gmra.mrb[0].mxu0 %v324
    %v450 = vpop.f32.mrb[0].mxu0
    %v451 = vadd.f32 0.0, %v450
    %v452 = vpop.f32.mrb[0].mxu0
    %453 = vmatprep.mubr.f32.mxu0 0.0
    %454 = vmatmul.mubr.f32.gmra.mrb[0].mxu0 %v327
    %v455 = vpop.f32.mrb[0].mxu0
    %v456 = vadd.f32 0.0, %v455
    %v457 = vpop.f32.mrb[0].mxu0
    %458 = vmatprep.mubr.f32.mxu0 0.0
    %459 = vmatmul.mubr.f32.gmra.mrb[0].mxu0 %v330
    %v460 = vpop.f32.mrb[0].mxu0
    %v461 = vadd.f32 0.0, %v460
    %v462 = vpop.f32.mrb[0].mxu0
    %463 = vmatprep.mubr.f32.mxu0 0.0
    %464 = vmatmul.mubr.f32.gmra.mrb[0].mxu0 %v333
    %v465 = vpop.f32.mrb[0].mxu0
    %v466 = vadd.f32 0.0, %v465
    %v467 = vpop.f32.mrb[0].mxu0
    %468 = vmatprep.mubr.f32.mxu0 0.0
    %469 = vmatmul.mubr.f32.gmra.mrb[0].mxu0 %v336
    %v470 = vpop.f32.mrb[0].mxu0
    %v471 = vadd.f32 0.0, %v470
    %v472 = vpop.f32.mrb[0].mxu0
    %473 = vmatprep.mubr.f32.mxu0 0.0
    %474 = vmatmul.mubr.f32.gmra.mrb[0].mxu0 %v339
    %v475 = vpop.f32.mrb[0].mxu0
    %v476 = vadd.f32 0.0, %v475
    %v477 = vpop.f32.mrb[0].mxu0
    %478 = vmatprep.mubr.f32.mxu0 0.0
    %479 = vmatmul.mubr.f32.gmra.mrb[0].mxu0 %v342
    %v480 = vpop.f32.mrb[0].mxu0
    %v481 = vadd.f32 0.0, %v480
    %v482 = vpop.f32.mrb[0].mxu0
    %483 = vmatprep.mubr.f32.mxu0 0.0
    %484 = vmatmul.mubr.f32.gmra.mrb[0].mxu0 %v345
    %v485 = vpop.f32.mrb[0].mxu0
    %v486 = vadd.f32 0.0, %v485
    %v487 = vpop.f32.mrb[0].mxu0
    %488 = vmatprep.mubr.f32.mxu0 0.0
    %489 = vmatmul.mubr.f32.gmra.mrb[0].mxu0 %v348
    %v490 = vpop.f32.mrb[0].mxu0
    %v491 = vadd.f32 0.0, %v490
    %v492 = vpop.f32.mrb[0].mxu0
    %493 = vmatprep.mubr.f32.mxu0 0.0
    %494 = vmatmul.mubr.f32.gmra.mrb[0].mxu0 %v351
    %v495 = vpop.f32.mrb[0].mxu0
    %v496 = vadd.f32 0.0, %v495
    %v497 = vpop.f32.mrb[0].mxu0
    %498 = vmatprep.mubr.f32.mxu0 0.0
    %499 = vmatmul.mubr.f32.gmra.mrb[0].mxu0 %v354
    %v500 = vpop.f32.mrb[0].mxu0
    %v501 = vadd.f32 0.0, %v500
    %v502 = vpop.f32.mrb[0].mxu0
    %503 = vdwg.mxu0
    %v504 = vld [vmem:[%s6] sm:$0x1]
    %v506 = vlaneseq
    %v507 = vshrl.u32 %v506, 7
    %v508 = vsub.s32 0, %v507
    %v509 = vrot.slane %v504, %v508
    %v511 = vmul.f32 %v426, %v509
    %v512 = vmul.f32 %v431, %v509
    %v513 = vmul.f32 %v436, %v509
    %v514 = vmul.f32 %v441, %v509
    %v515 = vmul.f32 %v446, %v509
    %v516 = vmul.f32 %v451, %v509
    %v517 = vmul.f32 %v456, %v509
    %v518 = vmul.f32 %v461, %v509
    %v519 = vmul.f32 %v466, %v509
    %v520 = vmul.f32 %v471, %v509
    %v521 = vmul.f32 %v476, %v509
    %v522 = vmul.f32 %v481, %v509
    %v523 = vmul.f32 %v486, %v509
    %v524 = vmul.f32 %v491, %v509
    %v525 = vmul.f32 %v496, %v509
    %v526 = vmul.f32 %v501, %v509
    %v527 = vld [vmem:[%s7] sm:$0x1]
    %v529 = vlaneseq
    %v530 = vshrl.u32 %v529, 7
    %v531 = vsub.s32 0, %v530
    %v532 = vrot.slane %v527, %v531
    %v534 = vadd.f32 %v511, %v532
    %v535 = vadd.f32 %v512, %v532
    %v536 = vadd.f32 %v513, %v532
    %v537 = vadd.f32 %v514, %v532
    %v538 = vadd.f32 %v515, %v532
    %v539 = vadd.f32 %v516, %v532
    %v540 = vadd.f32 %v517, %v532
    %v541 = vadd.f32 %v518, %v532
    %v542 = vadd.f32 %v519, %v532
    %v543 = vadd.f32 %v520, %v532
    %v544 = vadd.f32 %v521, %v532
    %v545 = vadd.f32 %v522, %v532
    %v546 = vadd.f32 %v523, %v532
    %v547 = vadd.f32 %v524, %v532
    %v548 = vadd.f32 %v525, %v532
    %v549 = vadd.f32 %v526, %v532
    %v550 = vadd.f32 %v275, %v534
    %v551 = vadd.f32 %v276, %v535
    %v552 = vadd.f32 %v277, %v536
    %v553 = vadd.f32 %v278, %v537
    %v554 = vadd.f32 %v279, %v538
    %v555 = vadd.f32 %v280, %v539
    %v556 = vadd.f32 %v281, %v540
    %v557 = vadd.f32 %v282, %v541
    %v558 = vadd.f32 %v283, %v542
    %v559 = vadd.f32 %v284, %v543
    %v560 = vadd.f32 %v285, %v544
    %v561 = vadd.f32 %v286, %v545
    %v562 = vadd.f32 %v287, %v546
    %v563 = vadd.f32 %v288, %v547
    %v564 = vadd.f32 %v289, %v548
    %v565 = vadd.f32 %v290, %v549
    %v566 = vmax.f32 %v550, 0.0
    %v567 = vmax.f32 %v551, 0.0
    %v568 = vmax.f32 %v552, 0.0
    %v569 = vmax.f32 %v553, 0.0
    %v570 = vmax.f32 %v554, 0.0
    %v571 = vmax.f32 %v555, 0.0
    %v572 = vmax.f32 %v556, 0.0
    %v573 = vmax.f32 %v557, 0.0
    %v574 = vmax.f32 %v558, 0.0
    %v575 = vmax.f32 %v559, 0.0
    %v576 = vmax.f32 %v560, 0.0
    %v577 = vmax.f32 %v561, 0.0
    %v578 = vmax.f32 %v562, 0.0
    %v579 = vmax.f32 %v563, 0.0
    %v580 = vmax.f32 %v564, 0.0
    %v581 = vmax.f32 %v565, 0.0
    %vm582 = vcmask 130048
    %583 = vst.msk [vmem:[#allocation2] sm:$0xff] %vm582, %v566
    %584 = vst.msk [vmem:[#allocation2 + $0x8] sm:$0xff] %vm582, %v567
    %585 = vst.msk [vmem:[#allocation2 + $0x10] sm:$0xff] %vm582, %v568
    %586 = vst.msk [vmem:[#allocation2 + $0x18] sm:$0xff] %vm582, %v569
    %587 = vst.msk [vmem:[#allocation2 + $0x20] sm:$0xff] %vm582, %v570
    %588 = vst.msk [vmem:[#allocation2 + $0x28] sm:$0xff] %vm582, %v571
    %589 = vst.msk [vmem:[#allocation2 + $0x30] sm:$0xff] %vm582, %v572
    %590 = vst.msk [vmem:[#allocation2 + $0x38] sm:$0xff] %vm582, %v573
    %591 = vst.msk [vmem:[#allocation2 + $0x40] sm:$0xff] %vm582, %v574
    %592 = vst.msk [vmem:[#allocation2 + $0x48] sm:$0xff] %vm582, %v575
    %593 = vst.msk [vmem:[#allocation2 + $0x50] sm:$0xff] %vm582, %v576
    %594 = vst.msk [vmem:[#allocation2 + $0x58] sm:$0xff] %vm582, %v577
    %595 = vst.msk [vmem:[#allocation2 + $0x60] sm:$0xff] %vm582, %v578
    %596 = vst.msk [vmem:[#allocation2 + $0x68] sm:$0xff] %vm582, %v579
    %597 = vst.msk [vmem:[#allocation2 + $0x70] sm:$0xff] %vm582, %v580
    %598 = vst.msk [vmem:[#allocation2 + $0x78] sm:$0xff] %vm582, %v581
    // Predicated region
    $region34: #{bottleneck_forward.5} parent=1 // pred_check
      _
    $region35: #{bottleneck_forward.5} parent=1 // pred_check_branch
      %600 = sbr.rel (0) target = $region37
    $region36: #{bottleneck_forward.5} parent=1 // pred_region
      %s602 = ssub.s32 2048, 2048
      %603 = vsyncadd [#allocation3], %s602
      %s604 = sshll.u32 [#allocation2], 4
      %s605 = int_to_ptr.vmem [resolvable:$true] %s604
      %610 = dma.vmem_to_hbm [thread:$0]  %s605, 2048, %s8, [#allocation3], 128, 128, 8
    $region37: #{bottleneck_forward.5} parent=1 // pred_fallthru
      _
    // Predicated region
    $region38: #{bottleneck_forward.5} parent=1 // pred_check
      _
    $region39: #{bottleneck_forward.5} parent=1 // pred_check_branch
      %612 = sbr.rel (0) target = $region41
    $region40: #{bottleneck_forward.5} parent=1 // pred_region
      %613 = dma.done [#allocation3], 2048
    $region41: #{bottleneck_forward.5} parent=1 // pred_fallthru
      _
    %614 = vsyncpa [#allocation3], 1

// kernel: bottleneck_forward.4
$region0: #{bottleneck_forward.4}
  #allocation0 [shape = 'u32[]', space=smem, size = 0x4, offset = 0x4, fixed_abs, tag = 'smem constant byte address 0x4 - core index']
  #allocation1 [shape = 'u32[144,128]{1,0:T(1,128)}', space=vmem, size = 0x12000, scoped, tag = 'internal scratch']
  %s0 = inlined_call_operand.vmem [shape: f32[8,9,9,4], index: 0, kind: input, shape index: {}]
  %s1 = inlined_call_operand.vmem [shape: f32[9,4,4], index: 1, kind: input, shape index: {}]
  %s2 = inlined_call_operand.vmem [shape: f32[1,4], index: 2, kind: input, shape index: {}]
  %s3 = inlined_call_operand.vmem [shape: f32[1,4], index: 3, kind: input, shape index: {}]
  %s4 = inlined_call_operand.vmem [shape: f32[2,8,8,4], index: 4, kind: output, shape index: {}]
  %s5 = sld [smem:[#allocation0]]
  $region49: #{bottleneck_forward.4} parent=0
    _
  %s7 = ssub.s32 1, %s5
  %s8 = scalar_select 0, %s7, %s5
  loop: start=0, step=1, limit=4
  $region2: #{bottleneck_forward.4} parent=0 // loop_pre_header
    _
  $region3: #{bottleneck_forward.4} parent=0 // loop_header
    %s10 = sphi 0, %s14
    %p11 = scmp.ge.s32.totalorder %s10, 4
    %s17 = sphi 0, %s29
    %s18 = sphi 0, %s25
    %s19 = sphi 0, %s17
    %s20 = sphi 0, %s18
    %s21 = sphi 0, %s19
    %s22 = sphi 0, %s20
    %s32 = sphi 0, %s34
    %s35 = sphi 0, %s32
    %s36 = sphi 0, %s35
    %s52 = sphi 0, %s36
    %s58 = sphi 0, %s60
    %s61 = sphi 0, %s58
    %s62 = sphi 0, %s61
    %s78 = sphi 0, %s62
    %s84 = sphi 0, %s86
    %s87 = sphi 0, %s84
    %s88 = sphi 0, %s87
    %s104 = sphi 0, %s88
    %s110 = sphi 0, %s112
    %s113 = sphi 0, %s110
    %s114 = sphi 0, %s113
    %s130 = sphi 0, %s114
    %s138 = sphi 0, %s140
    %s141 = sphi 0, %s138
    %s142 = sphi 0, %s141
    %s158 = sphi 0, %s142
  $region4: #{bottleneck_forward.4} parent=0 // loop_header_branch
    %13 = sbr.rel (%p11) target = $region8
  $region5: #{bottleneck_forward.4} parent=0 // loop_body
    %s15 = ssub.s32 %s10, 1
    %s16 = ssub.s32 %s10, 2
    %s23 = sadd.s32 1, %s18
    %p24 = scmp.ge.s32.totalorder %s23, 1
    %s25 = scalar_select %p24, 0, %s23
    %s26 = sadd.s32 1, %s17
    %s27 = scalar_select %p24, %s26, %s17
    %p28 = scmp.ge.s32.totalorder %s27, 2
    %s29 = scalar_select %p28, 0, %s27
    %s30 = ssub.s32 %s17, %s29
    %p31 = scmp.eq.s32.totalorder %s30, 0
    %s33 = sadd.s32 %s32, 1
    %s34 = scalar_select %p31, %s32, %s33
    %p37 = pneg %p31
    %p38 = scmp.eq.s32.totalorder %s10, 1
    %p39 = por %p37, %p38
    %p40 = scmp.ne.s32.totalorder %s32, %s35
    %p41 = scmp.eq.s32.totalorder %s10, 0
    %p42 = por %p40, %p41
    %p43 = scmp.ne.s32.totalorder %s32, %s35
    %p44 = scmp.eq.s32.totalorder %s15, 1
    %p45 = por %p43, %p44
    %p46 = scmp.ne.s32.totalorder %s35, %s36
    %p47 = scmp.eq.s32.totalorder %s15, 0
    %p48 = por %p46, %p47
    %p49 = scmp.ne.s32.totalorder %s35, %s36
    %p50 = scmp.eq.s32.totalorder %s16, 1
    %p51 = por %p49, %p50
    %p53 = scmp.ne.s32.totalorder %s36, %s52
    %p54 = scmp.eq.s32.totalorder %s16, 0
    %p55 = por %p53, %p54
    %s56 = ssub.s32 %s18, %s25
    %p57 = scmp.eq.s32.totalorder %s56, 0
    %s59 = sadd.s32 %s58, 1
    %s60 = scalar_select %p57, %s58, %s59
    %p63 = pneg %p57
    %p64 = scmp.eq.s32.totalorder %s10, 1
    %p65 = por %p63, %p64
    %p66 = scmp.ne.s32.totalorder %s58, %s61
    %p67 = scmp.eq.s32.totalorder %s10, 0
    %p68 = por %p66, %p67
    %p69 = scmp.ne.s32.totalorder %s58, %s61
    %p70 = scmp.eq.s32.totalorder %s15, 1
    %p71 = por %p69, %p70
    %p72 = scmp.ne.s32.totalorder %s61, %s62
    %p73 = scmp.eq.s32.totalorder %s15, 0
    %p74 = por %p72, %p73
    %p75 = scmp.ne.s32.totalorder %s61, %s62
    %p76 = scmp.eq.s32.totalorder %s16, 1
    %p77 = por %p75, %p76
    %p79 = scmp.ne.s32.totalorder %s62, %s78
    %p80 = scmp.eq.s32.totalorder %s16, 0
    %p81 = por %p79, %p80
    %s82 = ssub.s32 %s18, %s25
    %p83 = scmp.eq.s32.totalorder %s82, 0
    %s85 = sadd.s32 %s84, 1
    %s86 = scalar_select %p83, %s84, %s85
    %p89 = pneg %p83
    %p90 = scmp.eq.s32.totalorder %s10, 1
    %p91 = por %p89, %p90
    %p92 = scmp.ne.s32.totalorder %s84, %s87
    %p93 = scmp.eq.s32.totalorder %s10, 0
    %p94 = por %p92, %p93
    %p95 = scmp.ne.s32.totalorder %s84, %s87
    %p96 = scmp.eq.s32.totalorder %s15, 1
    %p97 = por %p95, %p96
    %p98 = scmp.ne.s32.totalorder %s87, %s88
    %p99 = scmp.eq.s32.totalorder %s15, 0
    %p100 = por %p98, %p99
    %p101 = scmp.ne.s32.totalorder %s87, %s88
    %p102 = scmp.eq.s32.totalorder %s16, 1
    %p103 = por %p101, %p102
    %p105 = scmp.ne.s32.totalorder %s88, %s104
    %p106 = scmp.eq.s32.totalorder %s16, 0
    %p107 = por %p105, %p106
    %s108 = ssub.s32 %s18, %s25
    %p109 = scmp.eq.s32.totalorder %s108, 0
    %s111 = sadd.s32 %s110, 1
    %s112 = scalar_select %p109, %s110, %s111
    %p115 = pneg %p109
    %p116 = scmp.eq.s32.totalorder %s10, 1
    %p117 = por %p115, %p116
    %p118 = scmp.ne.s32.totalorder %s110, %s113
    %p119 = scmp.eq.s32.totalorder %s10, 0
    %p120 = por %p118, %p119
    %p121 = scmp.ne.s32.totalorder %s110, %s113
    %p122 = scmp.eq.s32.totalorder %s15, 1
    %p123 = por %p121, %p122
    %p124 = scmp.ne.s32.totalorder %s113, %s114
    %p125 = scmp.eq.s32.totalorder %s15, 0
    %p126 = por %p124, %p125
    %p127 = scmp.ne.s32.totalorder %s113, %s114
    %p128 = scmp.eq.s32.totalorder %s16, 1
    %p129 = por %p127, %p128
    %p131 = scmp.ne.s32.totalorder %s114, %s130
    %p132 = scmp.eq.s32.totalorder %s16, 0
    %p133 = por %p131, %p132
    %s134 = ssub.s32 %s17, %s29
    %s135 = ssub.s32 %s18, %s25
    %s136 = sor.u32 %s134, %s135
    %p137 = scmp.eq.s32.totalorder %s136, 0
    %s139 = sadd.s32 %s138, 1
    %s140 = scalar_select %p137, %s138, %s139
    %p143 = pneg %p137
    %p144 = scmp.eq.s32.totalorder %s10, 1
    %p145 = por %p143, %p144
    %p146 = scmp.ne.s32.totalorder %s138, %s141
    %p147 = scmp.eq.s32.totalorder %s10, 0
    %p148 = por %p146, %p147
    %p149 = scmp.ne.s32.totalorder %s138, %s141
    %p150 = scmp.eq.s32.totalorder %s15, 1
    %p151 = por %p149, %p150
    %p152 = scmp.ne.s32.totalorder %s141, %s142
    %p153 = scmp.eq.s32.totalorder %s15, 0
    %p154 = por %p152, %p153
    %p155 = scmp.ne.s32.totalorder %s141, %s142
    %p156 = scmp.eq.s32.totalorder %s16, 1
    %p157 = por %p155, %p156
    %p159 = scmp.ne.s32.totalorder %s142, %s158
    %p160 = scmp.eq.s32.totalorder %s16, 0
    %p161 = por %p159, %p160
    %p162 = scmp.le.s32.totalorder 1, %s10
    %p163 = scmp.lt.s32.totalorder %s10, 3
    %p164 = pnand %p162, %p163
    %p165 = pneg %p164
    // Predicated region
    $region9: #{bottleneck_forward.4} parent=5 // pred_check
      _
    $region10: #{bottleneck_forward.4} parent=5 // pred_check_branch
      %167 = sbr.rel (%p164) target = $region12
    $region11: #{bottleneck_forward.4} parent=5 // pred_region
      %s168 = ssub.s32 %s10, 1
      // Predicated region
      $region13: #{bottleneck_forward.4} parent=11 // pred_check
        %p169 = pneg %p74
      $region14: #{bottleneck_forward.4} parent=11 // pred_check_branch
        %171 = sbr.rel (%p169) target = $region16
      $region15: #{bottleneck_forward.4} parent=11 // pred_region
        %p172 = scmp.lt.s32.totalorder %s20, 0
        %s173 = scalar_select %p172, %s20, 0
        %s174 = smul.addr %s173, 4
        %s175 = scalar_lea.vmem %s1, %s174
      $region16: #{bottleneck_forward.4} parent=11 // pred_fallthru
        _
      // Predicated region
      $region17: #{bottleneck_forward.4} parent=11 // pred_check
        %p176 = pneg %p100
      $region18: #{bottleneck_forward.4} parent=11 // pred_check_branch
        %178 = sbr.rel (%p176) target = $region20
      $region19: #{bottleneck_forward.4} parent=11 // pred_region
        %p179 = scmp.lt.s32.totalorder %s20, 0
        %s180 = scalar_select %p179, %s20, 0
        %s181 = scalar_lea.vmem %s2, %s180
      $region20: #{bottleneck_forward.4} parent=11 // pred_fallthru
        _
      // Predicated region
      $region21: #{bottleneck_forward.4} parent=11 // pred_check
        %p182 = pneg %p126
      $region22: #{bottleneck_forward.4} parent=11 // pred_check_branch
        %184 = sbr.rel (%p182) target = $region24
      $region23: #{bottleneck_forward.4} parent=11 // pred_region
        %p185 = scmp.lt.s32.totalorder %s20, 0
        %s186 = scalar_select %p185, %s20, 0
        %s187 = scalar_lea.vmem %s3, %s186
      $region24: #{bottleneck_forward.4} parent=11 // pred_fallthru
        _
    $region12: #{bottleneck_forward.4} parent=5 // pred_fallthru
      _
    %p188 = scmp.lt.s32.totalorder %s10, 2
    // Predicated region
    $region25: #{bottleneck_forward.4} parent=5 // pred_check
      %p189 = pneg %p188
    $region26: #{bottleneck_forward.4} parent=5 // pred_check_branch
      %191 = sbr.rel (%p189) target = $region28
    $region27: #{bottleneck_forward.4} parent=5 // pred_region
      // Predicated region
      $region29: #{bottleneck_forward.4} parent=27 // pred_check
        %p192 = pneg %p42
      $region30: #{bottleneck_forward.4} parent=27 // pred_check_branch
        %194 = sbr.rel (%p192) target = $region32
      $region31: #{bottleneck_forward.4} parent=27 // pred_region
        %s195 = smul.u32 4, %s17
        %p196 = scmp.lt.s32.totalorder %s195, 7
        %s197 = scalar_select %p196, %s195, 7
        %s198 = smul.addr %s197, 18
        %s199 = smul.addr %s198, 8
        %s200 = scalar_lea.vmem %s0, %s199
        %s201 = smul.u32 4, %s17
      $region32: #{bottleneck_forward.4} parent=27 // pred_fallthru
        _
    $region28: #{bottleneck_forward.4} parent=5 // pred_fallthru
      _
    %p202 = scmp.le.s32.totalorder 1, %s10
    %p203 = scmp.lt.s32.totalorder %s10, 3
    %p204 = pnand %p202, %p203
    %p205 = pneg %p204
    // Predicated region
    $region33: #{bottleneck_forward.4} parent=5 // pred_check
      _
    $region34: #{bottleneck_forward.4} parent=5 // pred_check_branch
      %207 = sbr.rel (%p204) target = $region36
    $region35: #{bottleneck_forward.4} parent=5 // pred_region
      %s208 = ssub.s32 %s10, 1
      %s209 = smul.u32 4, %s19
      %p210 = scmp.lt.s32.totalorder %s209, 7
      %s211 = scalar_select %p210, %s209, 7
      %s212 = smul.addr %s211, 18
      %s213 = smul.addr %s212, 8
      %s214 = scalar_lea.vmem %s0, %s213
      %p215 = pneg %p48
      %p216 = pneg %p45
      %p217 = scmp.lt.s32.totalorder %s20, 0
      %s218 = scalar_select %p217, %s20, 0
      %s219 = smul.addr %s218, 4
      %s220 = scalar_lea.vmem %s1, %s219
      %p221 = pneg %p74
      %p222 = pneg %p71
      %p223 = scmp.lt.s32.totalorder %s20, 0
      %s224 = scalar_select %p223, %s20, 0
      %s225 = scalar_lea.vmem %s2, %s224
      %p226 = pneg %p100
      %p227 = pneg %p97
      %p228 = scmp.lt.s32.totalorder %s20, 0
      %s229 = scalar_select %p228, %s20, 0
      %s230 = scalar_lea.vmem %s3, %s229
      %p231 = pneg %p126
      %p232 = pneg %p123
      %p233 = pneg %p154
      %p234 = pneg %p151
      %p235 = scmp.lt.s32.totalorder %s19, 1
      %s236 = scalar_select %p235, %s19, 1
      %p237 = scmp.lt.s32.totalorder %s20, 0
      %s238 = scalar_select %p237, %s20, 0
      %s239 = smul.addr %s236, 8
      %s240 = sadd.s32 %s238, %s239
      %s241 = smul.addr %s240, 8
      %s242 = scalar_lea.vmem %s4, %s241
      %s243 = smul.u32 4, %s19
      %p244 = scmp.lt.s32.totalorder %s243, 7
      %s245 = scalar_select %p244, %s243, 7
      %s246 = smul.addr %s245, 18
      %s247 = smul.addr %s246, 8
      %s248 = scalar_lea.vmem %s0, %s247
      %s249 = smul.u32 4, %s19
      %p250 = scmp.lt.s32.totalorder %s20, 0
      %s251 = scalar_select %p250, %s20, 0
      %s252 = smul.addr %s251, 4
      %s253 = scalar_lea.vmem %s1, %s252
      %p254 = scmp.lt.s32.totalorder %s20, 0
      %s255 = scalar_select %p254, %s20, 0
      %s256 = scalar_lea.vmem %s2, %s255
      %p257 = scmp.lt.s32.totalorder %s20, 0
      %s258 = scalar_select %p257, %s20, 0
      %s259 = scalar_lea.vmem %s3, %s258
      %p260 = scmp.lt.s32.totalorder %s19, 1
      %s261 = scalar_select %p260, %s19, 1
      %p262 = scmp.lt.s32.totalorder %s20, 0
      %s263 = scalar_select %p262, %s20, 0
      %s264 = smul.addr %s261, 8
      %s265 = sadd.s32 %s263, %s264
      %s266 = smul.addr %s265, 8
      %s267 = scalar_lea.vmem %s4, %s266
      %v268 = vld [vmem:[%s248] sm:$0xff]
      %v269 = vld [vmem:[%s248 + $0x10] sm:$0xff]
      %v270 = vld [vmem:[%s248 + $0x20] sm:$0xff]
      %v271 = vld [vmem:[%s248 + $0x30] sm:$0xff]
      %v272 = vld [vmem:[%s248 + $0x40] sm:$0xff]
      %v273 = vld [vmem:[%s248 + $0x50] sm:$0xff]
      %v274 = vld [vmem:[%s248 + $0x60] sm:$0xff]
      %v275 = vld [vmem:[%s248 + $0x70] sm:$0xff]
      %v276 = vld [vmem:[%s253] sm:$0xf]
      %s277 = scalar_lea.vmem %s248, 144
      %v278 = vld [vmem:[%s277] sm:$0xff]
      %v279 = vld [vmem:[%s277 + $0x10] sm:$0xff]
      %v280 = vld [vmem:[%s277 + $0x20] sm:$0xff]
      %v281 = vld [vmem:[%s277 + $0x30] sm:$0xff]
      %v282 = vld [vmem:[%s277 + $0x40] sm:$0xff]
      %v283 = vld [vmem:[%s277 + $0x50] sm:$0xff]
      %v284 = vld [vmem:[%s277 + $0x60] sm:$0xff]
      %v285 = vld [vmem:[%s277 + $0x70] sm:$0xff]
      %s286 = scalar_lea.vmem %s253, 4
      %v287 = vld [vmem:[%s286] sm:$0xf]
      %vm288 = vcmask 31744
      %v290 = vsel %vm288, %v278, 0
      %v293 = vsel %vm288, %v279, 0
      %v296 = vsel %vm288, %v280, 0
      %v299 = vsel %vm288, %v281, 0
      %v302 = vsel %vm288, %v282, 0
      %v305 = vsel %vm288, %v283, 0
      %v308 = vsel %vm288, %v284, 0
      %v311 = vsel %vm288, %v285, 0
      %vm313 = vcmask 1043456
      %v315 = vsel %vm313, %v287, 0
      %317 = vmatprep.subr.mxu0 0.0
      %318 = vmatpush1.msra.mxu0 %v315
      %319 = vmatprep.subr.mxu0 0.0
      %320 = vmatpush1.msra.mxu0 0.0
      %321 = vmatprep.subr.mxu0 0.0
      %322 = vmatpush1.msra.mxu0 0.0
      %323 = vmatprep.subr.mxu0 0.0
      %324 = vmatpush1.msra.mxu0 0.0
      %325 = vmatprep.subr.mxu0 0.0
      %326 = vmatpush1.msra.mxu0 0.0
      %327 = vmatprep.subr.mxu0 0.0
      %328 = vmatpush1.msra.mxu0 0.0
      %329 = vmatprep.subr.mxu0 0.0
      %330 = vmatpush1.msra.mxu0 0.0
      %331 = vmatprep.subr.mxu0 0.0
      %332 = vmatpush1.msra.mxu0 0.0
      %333 = vmatprep.subr.mxu0 0.0
      %334 = vmatpush1.msra.mxu0 0.0
      %335 = vmatprep.subr.mxu0 0.0
      %336 = vmatpush1.msra.mxu0 0.0
      %337 = vmatprep.subr.mxu0 0.0
      %338 = vmatpush1.msra.mxu0 0.0
      %339 = vmatprep.subr.mxu0 0.0
      %340 = vmatpush1.msra.mxu0 0.0
      %341 = vmatprep.subr.mxu0 0.0
      %342 = vmatpush1.msra.mxu0 0.0
      %343 = vmatprep.subr.mxu0 0.0
      %344 = vmatpush1.msra.mxu0 0.0
      %345 = vmatprep.subr.mxu0 0.0
      %346 = vmatpush1.msra.mxu0 0.0
      %347 = vmatprep.subr.mxu0 0.0
      %348 = vmatpush1.msra.mxu0 0.0
      %349 = vmatprep.subr.mxu0 0.0
      %350 = vmatpush1.msra.mxu0 0.0
      %351 = vmatprep.subr.mxu0 0.0
      %352 = vmatpush1.msra.mxu0 0.0
      %353 = vmatprep.subr.mxu0 0.0
      %354 = vmatpush1.msra.mxu0 0.0
      %355 = vmatprep.subr.mxu0 0.0
      %356 = vmatpush1.msra.mxu0 0.0
      %357 = vmatprep.subr.mxu0 0.0
      %358 = vmatpush1.msra.mxu0 0.0
      %359 = vmatprep.subr.mxu0 0.0
      %360 = vmatpush1.msra.mxu0 0.0
      %361 = vmatprep.subr.mxu0 0.0
      %362 = vmatpush1.msra.mxu0 0.0
      %363 = vmatprep.subr.mxu0 0.0
      %364 = vmatpush1.msra.mxu0 0.0
      %365 = vmatprep.subr.mxu0 0.0
      %366 = vmatpush1.msra.mxu0 0.0
      %367 = vmatprep.subr.mxu0 0.0
      %368 = vmatpush1.msra.mxu0 0.0
      %369 = vmatprep.subr.mxu0 0.0
      %370 = vmatpush1.msra.mxu0 0.0
      %371 = vmatprep.subr.mxu0 0.0
      %372 = vmatpush1.msra.mxu0 0.0
      %373 = vmatprep.subr.mxu0 0.0
      %374 = vmatpush1.msra.mxu0 0.0
      %375 = vmatprep.subr.mxu0 0.0
      %376 = vmatpush1.msra.mxu0 0.0
      %377 = vmatprep.subr.mxu0 0.0
      %378 = vmatpush1.msra.mxu0 0.0
      %379 = vmatprep.subr.mxu0 0.0
      %380 = vmatpush1.msra.mxu0 0.0
      %381 = vmatprep.mubr.f32.mxu0 0.0
      %382 = vmatmul.mubr.f32.gmra.mrb[0].mxu0 %v290
      %v383 = vpop.f32.mrb[0].mxu0
      %v384 = vadd.f32 0.0, %v383
      %v385 = vpop.f32.mrb[0].mxu0
      %386 = vmatprep.mubr.f32.mxu0 0.0
      %387 = vmatmul.mubr.f32.gmra.mrb[0].mxu0 %v293
      %v388 = vpop.f32.mrb[0].mxu0
      %v389 = vadd.f32 0.0, %v388
      %v390 = vpop.f32.mrb[0].mxu0
      %391 = vmatprep.mubr.f32.mxu0 0.0
      %392 = vmatmul.mubr.f32.gmra.mrb[0].mxu0 %v296
      %v393 = vpop.f32.mrb[0].mxu0
      %v394 = vadd.f32 0.0, %v393
      %v395 = vpop.f32.mrb[0].mxu0
      %396 = vmatprep.mubr.f32.mxu0 0.0
      %397 = vmatmul.mubr.f32.gmra.mrb[0].mxu0 %v299
      %v398 = vpop.f32.mrb[0].mxu0
      %v399 = vadd.f32 0.0, %v398
      %v400 = vpop.f32.mrb[0].mxu0
      %401 = vmatprep.mubr.f32.mxu0 0.0
      %402 = vmatmul.mubr.f32.gmra.mrb[0].mxu0 %v302
      %v403 = vpop.f32.mrb[0].mxu0
      %v404 = vadd.f32 0.0, %v403
      %v405 = vpop.f32.mrb[0].mxu0
      %406 = vmatprep.mubr.f32.mxu0 0.0
      %407 = vmatmul.mubr.f32.gmra.mrb[0].mxu0 %v305
      %v408 = vpop.f32.mrb[0].mxu0
      %v409 = vadd.f32 0.0, %v408
      %v410 = vpop.f32.mrb[0].mxu0
      %411 = vmatprep.mubr.f32.mxu0 0.0
      %412 = vmatmul.mubr.f32.gmra.mrb[0].mxu0 %v308
      %v413 = vpop.f32.mrb[0].mxu0
      %v414 = vadd.f32 0.0, %v413
      %v415 = vpop.f32.mrb[0].mxu0
      %416 = vmatprep.mubr.f32.mxu0 0.0
      %417 = vmatmul.mubr.f32.gmra.mrb[0].mxu0 %v311
      %v418 = vpop.f32.mrb[0].mxu0
      %v419 = vadd.f32 0.0, %v418
      %v420 = vpop.f32.mrb[0].mxu0
      %421 = vdwg.mxu0
      %v423 = vsel %vm288, %v268, 0
      %v426 = vsel %vm288, %v269, 0
      %v429 = vsel %vm288, %v270, 0
      %v432 = vsel %vm288, %v271, 0
      %v435 = vsel %vm288, %v272, 0
      %v438 = vsel %vm288, %v273, 0
      %v441 = vsel %vm288, %v274, 0
      %v444 = vsel %vm288, %v275, 0
      %v447 = vsel %vm313, %v276, 0
      %449 = vmatprep.subr.mxu0 0.0
      %450 = vmatpush1.msra.mxu0 %v447
      %451 = vmatprep.subr.mxu0 0.0
      %452 = vmatpush1.msra.mxu0 0.0
      %453 = vmatprep.subr.mxu0 0.0
      %454 = vmatpush1.msra.mxu0 0.0
      %455 = vmatprep.subr.mxu0 0.0
      %456 = vmatpush1.msra.mxu0 0.0
      %457 = vmatprep.subr.mxu0 0.0
      %458 = vmatpush1.msra.mxu0 0.0
      %459 = vmatprep.subr.mxu0 0.0
      %460 = vmatpush1.msra.mxu0 0.0
      %461 = vmatprep.subr.mxu0 0.0
      %462 = vmatpush1.msra.mxu0 0.0
      %463 = vmatprep.subr.mxu0 0.0
      %464 = vmatpush1.msra.mxu0 0.0
      %465 = vmatprep.subr.mxu0 0.0
      %466 = vmatpush1.msra.mxu0 0.0
      %467 = vmatprep.subr.mxu0 0.0
      %468 = vmatpush1.msra.mxu0 0.0
      %469 = vmatprep.subr.mxu0 0.0
      %470 = vmatpush1.msra.mxu0 0.0
      %471 = vmatprep.subr.mxu0 0.0
      %472 = vmatpush1.msra.mxu0 0.0
      %473 = vmatprep.subr.mxu0 0.0
      %474 = vmatpush1.msra.mxu0 0.0
      %475 = vmatprep.subr.mxu0 0.0
      %476 = vmatpush1.msra.mxu0 0.0
      %477 = vmatprep.subr.mxu0 0.0
      %478 = vmatpush1.msra.mxu0 0.0
      %479 = vmatprep.subr.mxu0 0.0
      %480 = vmatpush1.msra.mxu0 0.0
      %481 = vmatprep.subr.mxu0 0.0
      %482 = vmatpush1.msra.mxu0 0.0
      %483 = vmatprep.subr.mxu0 0.0
      %484 = vmatpush1.msra.mxu0 0.0
      %485 = vmatprep.subr.mxu0 0.0
      %486 = vmatpush1.msra.mxu0 0.0
      %487 = vmatprep.subr.mxu0 0.0
      %488 = vmatpush1.msra.mxu0 0.0
      %489 = vmatprep.subr.mxu0 0.0
      %490 = vmatpush1.msra.mxu0 0.0
      %491 = vmatprep.subr.mxu0 0.0
      %492 = vmatpush1.msra.mxu0 0.0
      %493 = vmatprep.subr.mxu0 0.0
      %494 = vmatpush1.msra.mxu0 0.0
      %495 = vmatprep.subr.mxu0 0.0
      %496 = vmatpush1.msra.mxu0 0.0
      %497 = vmatprep.subr.mxu0 0.0
      %498 = vmatpush1.msra.mxu0 0.0
      %499 = vmatprep.subr.mxu0 0.0
      %500 = vmatpush1.msra.mxu0 0.0
      %501 = vmatprep.subr.mxu0 0.0
      %502 = vmatpush1.msra.mxu0 0.0
      %503 = vmatprep.subr.mxu0 0.0
      %504 = vmatpush1.msra.mxu0 0.0
      %505 = vmatprep.subr.mxu0 0.0
      %506 = vmatpush1.msra.mxu0 0.0
      %507 = vmatprep.subr.mxu0 0.0
      %508 = vmatpush1.msra.mxu0 0.0
      %509 = vmatprep.subr.mxu0 0.0
      %510 = vmatpush1.msra.mxu0 0.0
      %511 = vmatprep.subr.mxu0 0.0
      %512 = vmatpush1.msra.mxu0 0.0
      %513 = vmatprep.mubr.f32.mxu0 0.0
      %514 = vmatmul.mubr.f32.gmra.mrb[0].mxu0 %v423
      %v515 = vpop.f32.mrb[0].mxu0
      %v516 = vadd.f32 %v384, %v515
      %v517 = vpop.f32.mrb[0].mxu0
      %518 = vmatprep.mubr.f32.mxu0 0.0
      %519 = vmatmul.mubr.f32.gmra.mrb[0].mxu0 %v426
      %v520 = vpop.f32.mrb[0].mxu0
      %v521 = vadd.f32 %v389, %v520
      %v522 = vpop.f32.mrb[0].mxu0
      %523 = vmatprep.mubr.f32.mxu0 0.0
      %524 = vmatmul.mubr.f32.gmra.mrb[0].mxu0 %v429
      %v525 = vpop.f32.mrb[0].mxu0
      %v526 = vadd.f32 %v394, %v525
      %v527 = vpop.f32.mrb[0].mxu0
      %528 = vmatprep.mubr.f32.mxu0 0.0
      %529 = vmatmul.mubr.f32.gmra.mrb[0].mxu0 %v432
      %v530 = vpop.f32.mrb[0].mxu0
      %v531 = vadd.f32 %v399, %v530
      %v532 = vpop.f32.mrb[0].mxu0
      %533 = vmatprep.mubr.f32.mxu0 0.0
      %534 = vmatmul.mubr.f32.gmra.mrb[0].mxu0 %v435
      %v535 = vpop.f32.mrb[0].mxu0
      %v536 = vadd.f32 %v404, %v535
      %v537 = vpop.f32.mrb[0].mxu0
      %538 = vmatprep.mubr.f32.mxu0 0.0
      %539 = vmatmul.mubr.f32.gmra.mrb[0].mxu0 %v438
      %v540 = vpop.f32.mrb[0].mxu0
      %v541 = vadd.f32 %v409, %v540
      %v542 = vpop.f32.mrb[0].mxu0
      %543 = vmatprep.mubr.f32.mxu0 0.0
      %544 = vmatmul.mubr.f32.gmra.mrb[0].mxu0 %v441
      %v545 = vpop.f32.mrb[0].mxu0
      %v546 = vadd.f32 %v414, %v545
      %v547 = vpop.f32.mrb[0].mxu0
      %548 = vmatprep.mubr.f32.mxu0 0.0
      %549 = vmatmul.mubr.f32.gmra.mrb[0].mxu0 %v444
      %v550 = vpop.f32.mrb[0].mxu0
      %v551 = vadd.f32 %v419, %v550
      %v552 = vpop.f32.mrb[0].mxu0
      %553 = vdwg.mxu0
      %v554 = vld [vmem:[%s248 + $0x1] sm:$0xff]
      %v555 = vld [vmem:[%s248 + $0x11] sm:$0xff]
      %v556 = vld [vmem:[%s248 + $0x21] sm:$0xff]
      %v557 = vld [vmem:[%s248 + $0x31] sm:$0xff]
      %v558 = vld [vmem:[%s248 + $0x41] sm:$0xff]
      %v559 = vld [vmem:[%s248 + $0x51] sm:$0xff]
      %v560 = vld [vmem:[%s248 + $0x61] sm:$0xff]
      %v561 = vld [vmem:[%s248 + $0x71] sm:$0xff]
      %s562 = scalar_lea.vmem %s253, 8
      %v563 = vld [vmem:[%s562] sm:$0xf]
      %v565 = vsel %vm288, %v554, 0
      %v568 = vsel %vm288, %v555, 0
      %v571 = vsel %vm288, %v556, 0
      %v574 = vsel %vm288, %v557, 0
      %v577 = vsel %vm288, %v558, 0
      %v580 = vsel %vm288, %v559, 0
      %v583 = vsel %vm288, %v560, 0
      %v586 = vsel %vm288, %v561, 0
      %v589 = vsel %vm313, %v563, 0
      %591 = vmatprep.subr.mxu0 0.0
      %592 = vmatpush1.msra.mxu0 %v589
      %593 = vmatprep.subr.mxu0 0.0
      %594 = vmatpush1.msra.mxu0 0.0
      %595 = vmatprep.subr.mxu0 0.0
      %596 = vmatpush1.msra.mxu0 0.0
      %597 = vmatprep.subr.mxu0 0.0
      %598 = vmatpush1.msra.mxu0 0.0
      %599 = vmatprep.subr.mxu0 0.0
      %600 = vmatpush1.msra.mxu0 0.0
      %601 = vmatprep.subr.mxu0 0.0
      %602 = vmatpush1.msra.mxu0 0.0
      %603 = vmatprep.subr.mxu0 0.0
      %604 = vmatpush1.msra.mxu0 0.0
      %605 = vmatprep.subr.mxu0 0.0
      %606 = vmatpush1.msra.mxu0 0.0
      %607 = vmatprep.subr.mxu0 0.0
      %608 = vmatpush1.msra.mxu0 0.0
      %609 = vmatprep.subr.mxu0 0.0
      %610 = vmatpush1.msra.mxu0 0.0
      %611 = vmatprep.subr.mxu0 0.0
      %612 = vmatpush1.msra.mxu0 0.0
      %613 = vmatprep.subr.mxu0 0.0
      %614 = vmatpush1.msra.mxu0 0.0
      %615 = vmatprep.subr.mxu0 0.0
      %616 = vmatpush1.msra.mxu0 0.0
      %617 = vmatprep.subr.mxu0 0.0
      %618 = vmatpush1.msra.mxu0 0.0
      %619 = vmatprep.subr.mxu0 0.0
      %620 = vmatpush1.msra.mxu0 0.0
      %621 = vmatprep.subr.mxu0 0.0
      %622 = vmatpush1.msra.mxu0 0.0
      %623 = vmatprep.subr.mxu0 0.0
      %624 = vmatpush1.msra.mxu0 0.0
      %625 = vmatprep.subr.mxu0 0.0
      %626 = vmatpush1.msra.mxu0 0.0
      %627 = vmatprep.subr.mxu0 0.0
      %628 = vmatpush1.msra.mxu0 0.0
      %629 = vmatprep.subr.mxu0 0.0
      %630 = vmatpush1.msra.mxu0 0.0
      %631 = vmatprep.subr.mxu0 0.0
      %632 = vmatpush1.msra.mxu0 0.0
      %633 = vmatprep.subr.mxu0 0.0
      %634 = vmatpush1.msra.mxu0 0.0
      %635 = vmatprep.subr.mxu0 0.0
      %636 = vmatpush1.msra.mxu0 0.0
      %637 = vmatprep.subr.mxu0 0.0
      %638 = vmatpush1.msra.mxu0 0.0
      %639 = vmatprep.subr.mxu0 0.0
      %640 = vmatpush1.msra.mxu0 0.0
      %641 = vmatprep.subr.mxu0 0.0
      %642 = vmatpush1.msra.mxu0 0.0
      %643 = vmatprep.subr.mxu0 0.0
      %644 = vmatpush1.msra.mxu0 0.0
      %645 = vmatprep.subr.mxu0 0.0
      %646 = vmatpush1.msra.mxu0 0.0
      %647 = vmatprep.subr.mxu0 0.0
      %648 = vmatpush1.msra.mxu0 0.0
      %649 = vmatprep.subr.mxu0 0.0
      %650 = vmatpush1.msra.mxu0 0.0
      %651 = vmatprep.subr.mxu0 0.0
      %652 = vmatpush1.msra.mxu0 0.0
      %653 = vmatprep.subr.mxu0 0.0
      %654 = vmatpush1.msra.mxu0 0.0
      %655 = vmatprep.mubr.f32.mxu0 0.0
      %656 = vmatmul.mubr.f32.gmra.mrb[0].mxu0 %v565
      %v657 = vpop.f32.mrb[0].mxu0
      %v658 = vadd.f32 0.0, %v657
      %v659 = vpop.f32.mrb[0].mxu0
      %660 = vmatprep.mubr.f32.mxu0 0.0
      %661 = vmatmul.mubr.f32.gmra.mrb[0].mxu0 %v568
      %v662 = vpop.f32.mrb[0].mxu0
      %v663 = vadd.f32 0.0, %v662
      %v664 = vpop.f32.mrb[0].mxu0
      %665 = vmatprep.mubr.f32.mxu0 0.0
      %666 = vmatmul.mubr.f32.gmra.mrb[0].mxu0 %v571
      %v667 = vpop.f32.mrb[0].mxu0
      %v668 = vadd.f32 0.0, %v667
      %v669 = vpop.f32.mrb[0].mxu0
      %670 = vmatprep.mubr.f32.mxu0 0.0
      %671 = vmatmul.mubr.f32.gmra.mrb[0].mxu0 %v574
      %v672 = vpop.f32.mrb[0].mxu0
      %v673 = vadd.f32 0.0, %v672
      %v674 = vpop.f32.mrb[0].mxu0
      %675 = vmatprep.mubr.f32.mxu0 0.0
      %676 = vmatmul.mubr.f32.gmra.mrb[0].mxu0 %v577
      %v677 = vpop.f32.mrb[0].mxu0
      %v678 = vadd.f32 0.0, %v677
      %v679 = vpop.f32.mrb[0].mxu0
      %680 = vmatprep.mubr.f32.mxu0 0.0
      %681 = vmatmul.mubr.f32.gmra.mrb[0].mxu0 %v580
      %v682 = vpop.f32.mrb[0].mxu0
      %v683 = vadd.f32 0.0, %v682
      %v684 = vpop.f32.mrb[0].mxu0
      %685 = vmatprep.mubr.f32.mxu0 0.0
      %686 = vmatmul.mubr.f32.gmra.mrb[0].mxu0 %v583
      %v687 = vpop.f32.mrb[0].mxu0
      %v688 = vadd.f32 0.0, %v687
      %v689 = vpop.f32.mrb[0].mxu0
      %690 = vmatprep.mubr.f32.mxu0 0.0
      %691 = vmatmul.mubr.f32.gmra.mrb[0].mxu0 %v586
      %v692 = vpop.f32.mrb[0].mxu0
      %v693 = vadd.f32 0.0, %v692
      %v694 = vpop.f32.mrb[0].mxu0
      %695 = vdwg.mxu0
      %v696 = vadd.f32 %v516, %v658
      %v697 = vadd.f32 %v521, %v663
      %v698 = vadd.f32 %v526, %v668
      %v699 = vadd.f32 %v531, %v673
      %v700 = vadd.f32 %v536, %v678
      %v701 = vadd.f32 %v541, %v683
      %v702 = vadd.f32 %v546, %v688
      %v703 = vadd.f32 %v551, %v693
      %s704 = scalar_lea.vmem %s248, 288
      %v705 = vld [vmem:[%s704] sm:$0xff]
      %v706 = vld [vmem:[%s704 + $0x10] sm:$0xff]
      %v707 = vld [vmem:[%s704 + $0x20] sm:$0xff]
      %v708 = vld [vmem:[%s704 + $0x30] sm:$0xff]
      %v709 = vld [vmem:[%s704 + $0x40] sm:$0xff]
      %v710 = vld [vmem:[%s704 + $0x50] sm:$0xff]
      %v711 = vld [vmem:[%s704 + $0x60] sm:$0xff]
      %v712 = vld [vmem:[%s704 + $0x70] sm:$0xff]
      %s713 = scalar_lea.vmem %s253, 12
      %v714 = vld [vmem:[%s713] sm:$0xf]
      %v716 = vsel %vm288, %v705, 0
      %v719 = vsel %vm288, %v706, 0
      %v722 = vsel %vm288, %v707, 0
      %v725 = vsel %vm288, %v708, 0
      %v728 = vsel %vm288, %v709, 0
      %v731 = vsel %vm288, %v710, 0
      %v734 = vsel %vm288, %v711, 0
      %v737 = vsel %vm288, %v712, 0
      %v740 = vsel %vm313, %v714, 0
      %742 = vmatprep.subr.mxu0 0.0
      %743 = vmatpush1.msra.mxu0 %v740
      %744 = vmatprep.subr.mxu0 0.0
      %745 = vmatpush1.msra.mxu0 0.0
      %746 = vmatprep.subr.mxu0 0.0
      %747 = vmatpush1.msra.mxu0 0.0
      %748 = vmatprep.subr.mxu0 0.0
      %749 = vmatpush1.msra.mxu0 0.0
      %750 = vmatprep.subr.mxu0 0.0
      %751 = vmatpush1.msra.mxu0 0.0
      %752 = vmatprep.subr.mxu0 0.0
      %753 = vmatpush1.msra.mxu0 0.0
      %754 = vmatprep.subr.mxu0 0.0
      %755 = vmatpush1.msra.mxu0 0.0
      %756 = vmatprep.subr.mxu0 0.0
      %757 = vmatpush1.msra.mxu0 0.0
      %758 = vmatprep.subr.mxu0 0.0
      %759 = vmatpush1.msra.mxu0 0.0
      %760 = vmatprep.subr.mxu0 0.0
      %761 = vmatpush1.msra.mxu0 0.0
      %762 = vmatprep.subr.mxu0 0.0
      %763 = vmatpush1.msra.mxu0 0.0
      %764 = vmatprep.subr.mxu0 0.0
      %765 = vmatpush1.msra.mxu0 0.0
      %766 = vmatprep.subr.mxu0 0.0
      %767 = vmatpush1.msra.mxu0 0.0
      %768 = vmatprep.subr.mxu0 0.0
      %769 = vmatpush1.msra.mxu0 0.0
      %770 = vmatprep.subr.mxu0 0.0
      %771 = vmatpush1.msra.mxu0 0.0
      %772 = vmatprep.subr.mxu0 0.0
      %773 = vmatpush1.msra.mxu0 0.0
      %774 = vmatprep.subr.mxu0 0.0
      %775 = vmatpush1.msra.mxu0 0.0
      %776 = vmatprep.subr.mxu0 0.0
      %777 = vmatpush1.msra.mxu0 0.0
      %778 = vmatprep.subr.mxu0 0.0
      %779 = vmatpush1.msra.mxu0 0.0
      %780 = vmatprep.subr.mxu0 0.0
      %781 = vmatpush1.msra.mxu0 0.0
      %782 = vmatprep.subr.mxu0 0.0
      %783 = vmatpush1.msra.mxu0 0.0
      %784 = vmatprep.subr.mxu0 0.0
      %785 = vmatpush1.msra.mxu0 0.0
      %786 = vmatprep.subr.mxu0 0.0
      %787 = vmatpush1.msra.mxu0 0.0
      %788 = vmatprep.subr.mxu0 0.0
      %789 = vmatpush1.msra.mxu0 0.0
      %790 = vmatprep.subr.mxu0 0.0
      %791 = vmatpush1.msra.mxu0 0.0
      %792 = vmatprep.subr.mxu0 0.0
      %793 = vmatpush1.msra.mxu0 0.0
      %794 = vmatprep.subr.mxu0 0.0
      %795 = vmatpush1.msra.mxu0 0.0
      %796 = vmatprep.subr.mxu0 0.0
      %797 = vmatpush1.msra.mxu0 0.0
      %798 = vmatprep.subr.mxu0 0.0
      %799 = vmatpush1.msra.mxu0 0.0
      %800 = vmatprep.subr.mxu0 0.0
      %801 = vmatpush1.msra.mxu0 0.0
      %802 = vmatprep.subr.mxu0 0.0
      %803 = vmatpush1.msra.mxu0 0.0
      %804 = vmatprep.subr.mxu0 0.0
      %805 = vmatpush1.msra.mxu0 0.0
      %806 = vmatprep.mubr.f32.mxu0 0.0
      %807 = vmatmul.mubr.f32.gmra.mrb[0].mxu0 %v716
      %v808 = vpop.f32.mrb[0].mxu0
      %v809 = vadd.f32 0.0, %v808
      %v810 = vpop.f32.mrb[0].mxu0
      %811 = vmatprep.mubr.f32.mxu0 0.0
      %812 = vmatmul.mubr.f32.gmra.mrb[0].mxu0 %v719
      %v813 = vpop.f32.mrb[0].mxu0
      %v814 = vadd.f32 0.0, %v813
      %v815 = vpop.f32.mrb[0].mxu0
      %816 = vmatprep.mubr.f32.mxu0 0.0
      %817 = vmatmul.mubr.f32.gmra.mrb[0].mxu0 %v722
      %v818 = vpop.f32.mrb[0].mxu0
      %v819 = vadd.f32 0.0, %v818
      %v820 = vpop.f32.mrb[0].mxu0
      %821 = vmatprep.mubr.f32.mxu0 0.0
      %822 = vmatmul.mubr.f32.gmra.mrb[0].mxu0 %v725
      %v823 = vpop.f32.mrb[0].mxu0
      %v824 = vadd.f32 0.0, %v823
      %v825 = vpop.f32.mrb[0].mxu0
      %826 = vmatprep.mubr.f32.mxu0 0.0
      %827 = vmatmul.mubr.f32.gmra.mrb[0].mxu0 %v728
      %v828 = vpop.f32.mrb[0].mxu0
      %v829 = vadd.f32 0.0, %v828
      %v830 = vpop.f32.mrb[0].mxu0
      %831 = vmatprep.mubr.f32.mxu0 0.0
      %832 = vmatmul.mubr.f32.gmra.mrb[0].mxu0 %v731
      %v833 = vpop.f32.mrb[0].mxu0
      %v834 = vadd.f32 0.0, %v833
      %v835 = vpop.f32.mrb[0].mxu0
      %836 = vmatprep.mubr.f32.mxu0 0.0
      %837 = vmatmul.mubr.f32.gmra.mrb[0].mxu0 %v734
      %v838 = vpop.f32.mrb[0].mxu0
      %v839 = vadd.f32 0.0, %v838
      %v840 = vpop.f32.mrb[0].mxu0
      %841 = vmatprep.mubr.f32.mxu0 0.0
      %842 = vmatmul.mubr.f32.gmra.mrb[0].mxu0 %v737
      %v843 = vpop.f32.mrb[0].mxu0
      %v844 = vadd.f32 0.0, %v843
      %v845 = vpop.f32.mrb[0].mxu0
      %846 = vdwg.mxu0
      %v847 = vadd.f32 %v696, %v809
      %v848 = vadd.f32 %v697, %v814
      %v849 = vadd.f32 %v698, %v819
      %v850 = vadd.f32 %v699, %v824
      %v851 = vadd.f32 %v700, %v829
      %v852 = vadd.f32 %v701, %v834
      %v853 = vadd.f32 %v702, %v839
      %v854 = vadd.f32 %v703, %v844
      %s855 = scalar_lea.vmem %s248, 432
      %v856 = vld [vmem:[%s855] sm:$0xff]
      %v857 = vld [vmem:[%s855 + $0x10] sm:$0xff]
      %v858 = vld [vmem:[%s855 + $0x20] sm:$0xff]
      %v859 = vld [vmem:[%s855 + $0x30] sm:$0xff]
      %v860 = vld [vmem:[%s855 + $0x40] sm:$0xff]
      %v861 = vld [vmem:[%s855 + $0x50] sm:$0xff]
      %v862 = vld [vmem:[%s855 + $0x60] sm:$0xff]
      %v863 = vld [vmem:[%s855 + $0x70] sm:$0xff]
      %s864 = scalar_lea.vmem %s253, 16
      %v865 = vld [vmem:[%s864] sm:$0xf]
      %v867 = vsel %vm288, %v856, 0
      %v870 = vsel %vm288, %v857, 0
      %v873 = vsel %vm288, %v858, 0
      %v876 = vsel %vm288, %v859, 0
      %v879 = vsel %vm288, %v860, 0
      %v882 = vsel %vm288, %v861, 0
      %v885 = vsel %vm288, %v862, 0
      %v888 = vsel %vm288, %v863, 0
      %v891 = vsel %vm313, %v865, 0
      %893 = vmatprep.subr.mxu0 0.0
      %894 = vmatpush1.msra.mxu0 %v891
      %895 = vmatprep.subr.mxu0 0.0
      %896 = vmatpush1.msra.mxu0 0.0
      %897 = vmatprep.subr.mxu0 0.0
      %898 = vmatpush1.msra.mxu0 0.0
      %899 = vmatprep.subr.mxu0 0.0
      %900 = vmatpush1.msra.mxu0 0.0
      %901 = vmatprep.subr.mxu0 0.0
      %902 = vmatpush1.msra.mxu0 0.0
      %903 = vmatprep.subr.mxu0 0.0
      %904 = vmatpush1.msra.mxu0 0.0
      %905 = vmatprep.subr.mxu0 0.0
      %906 = vmatpush1.msra.mxu0 0.0
      %907 = vmatprep.subr.mxu0 0.0
      %908 = vmatpush1.msra.mxu0 0.0
      %909 = vmatprep.subr.mxu0 0.0
      %910 = vmatpush1.msra.mxu0 0.0
      %911 = vmatprep.subr.mxu0 0.0
      %912 = vmatpush1.msra.mxu0 0.0
      %913 = vmatprep.subr.mxu0 0.0
      %914 = vmatpush1.msra.mxu0 0.0
      %915 = vmatprep.subr.mxu0 0.0
      %916 = vmatpush1.msra.mxu0 0.0
      %917 = vmatprep.subr.mxu0 0.0
      %918 = vmatpush1.msra.mxu0 0.0
      %919 = vmatprep.subr.mxu0 0.0
      %920 = vmatpush1.msra.mxu0 0.0
      %921 = vmatprep.subr.mxu0 0.0
      %922 = vmatpush1.msra.mxu0 0.0
      %923 = vmatprep.subr.mxu0 0.0
      %924 = vmatpush1.msra.mxu0 0.0
      %925 = vmatprep.subr.mxu0 0.0
      %926 = vmatpush1.msra.mxu0 0.0
      %927 = vmatprep.subr.mxu0 0.0
      %928 = vmatpush1.msra.mxu0 0.0
      %929 = vmatprep.subr.mxu0 0.0
      %930 = vmatpush1.msra.mxu0 0.0
      %931 = vmatprep.subr.mxu0 0.0
      %932 = vmatpush1.msra.mxu0 0.0
      %933 = vmatprep.subr.mxu0 0.0
      %934 = vmatpush1.msra.mxu0 0.0
      %935 = vmatprep.subr.mxu0 0.0
      %936 = vmatpush1.msra.mxu0 0.0
      %937 = vmatprep.subr.mxu0 0.0
      %938 = vmatpush1.msra.mxu0 0.0
      %939 = vmatprep.subr.mxu0 0.0
      %940 = vmatpush1.msra.mxu0 0.0
      %941 = vmatprep.subr.mxu0 0.0
      %942 = vmatpush1.msra.mxu0 0.0
      %943 = vmatprep.subr.mxu0 0.0
      %944 = vmatpush1.msra.mxu0 0.0
      %945 = vmatprep.subr.mxu0 0.0
      %946 = vmatpush1.msra.mxu0 0.0
      %947 = vmatprep.subr.mxu0 0.0
      %948 = vmatpush1.msra.mxu0 0.0
      %949 = vmatprep.subr.mxu0 0.0
      %950 = vmatpush1.msra.mxu0 0.0
      %951 = vmatprep.subr.mxu0 0.0
      %952 = vmatpush1.msra.mxu0 0.0
      %953 = vmatprep.subr.mxu0 0.0
      %954 = vmatpush1.msra.mxu0 0.0
      %955 = vmatprep.subr.mxu0 0.0
      %956 = vmatpush1.msra.mxu0 0.0
      %957 = vmatprep.mubr.f32.mxu0 0.0
      %958 = vmatmul.mubr.f32.gmra.mrb[0].mxu0 %v867
      %v959 = vpop.f32.mrb[0].mxu0
      %v960 = vadd.f32 0.0, %v959
      %v961 = vpop.f32.mrb[0].mxu0
      %962 = vmatprep.mubr.f32.mxu0 0.0
      %963 = vmatmul.mubr.f32.gmra.mrb[0].mxu0 %v870
      %v964 = vpop.f32.mrb[0].mxu0
      %v965 = vadd.f32 0.0, %v964
      %v966 = vpop.f32.mrb[0].mxu0
      %967 = vmatprep.mubr.f32.mxu0 0.0
      %968 = vmatmul.mubr.f32.gmra.mrb[0].mxu0 %v873
      %v969 = vpop.f32.mrb[0].mxu0
      %v970 = vadd.f32 0.0, %v969
      %v971 = vpop.f32.mrb[0].mxu0
      %972 = vmatprep.mubr.f32.mxu0 0.0
      %973 = vmatmul.mubr.f32.gmra.mrb[0].mxu0 %v876
      %v974 = vpop.f32.mrb[0].mxu0
      %v975 = vadd.f32 0.0, %v974
      %v976 = vpop.f32.mrb[0].mxu0
      %977 = vmatprep.mubr.f32.mxu0 0.0
      %978 = vmatmul.mubr.f32.gmra.mrb[0].mxu0 %v879
      %v979 = vpop.f32.mrb[0].mxu0
      %v980 = vadd.f32 0.0, %v979
      %v981 = vpop.f32.mrb[0].mxu0
      %982 = vmatprep.mubr.f32.mxu0 0.0
      %983 = vmatmul.mubr.f32.gmra.mrb[0].mxu0 %v882
      %v984 = vpop.f32.mrb[0].mxu0
      %v985 = vadd.f32 0.0, %v984
      %v986 = vpop.f32.mrb[0].mxu0
      %987 = vmatprep.mubr.f32.mxu0 0.0
      %988 = vmatmul.mubr.f32.gmra.mrb[0].mxu0 %v885
      %v989 = vpop.f32.mrb[0].mxu0
      %v990 = vadd.f32 0.0, %v989
      %v991 = vpop.f32.mrb[0].mxu0
      %992 = vmatprep.mubr.f32.mxu0 0.0
      %993 = vmatmul.mubr.f32.gmra.mrb[0].mxu0 %v888
      %v994 = vpop.f32.mrb[0].mxu0
      %v995 = vadd.f32 0.0, %v994
      %v996 = vpop.f32.mrb[0].mxu0
      %997 = vdwg.mxu0
      %v998 = vadd.f32 %v847, %v960
      %v999 = vadd.f32 %v848, %v965
      %v1000 = vadd.f32 %v849, %v970
      %v1001 = vadd.f32 %v850, %v975
      %v1002 = vadd.f32 %v851, %v980
      %v1003 = vadd.f32 %v852, %v985
      %v1004 = vadd.f32 %v853, %v990
      %v1005 = vadd.f32 %v854, %v995
      %v1006 = vld [vmem:[%s704 + $0x1] sm:$0xff]
      %v1007 = vld [vmem:[%s704 + $0x11] sm:$0xff]
      %v1008 = vld [vmem:[%s704 + $0x21] sm:$0xff]
      %v1009 = vld [vmem:[%s704 + $0x31] sm:$0xff]
      %v1010 = vld [vmem:[%s704 + $0x41] sm:$0xff]
      %v1011 = vld [vmem:[%s704 + $0x51] sm:$0xff]
      %v1012 = vld [vmem:[%s704 + $0x61] sm:$0xff]
      %v1013 = vld [vmem:[%s704 + $0x71] sm:$0xff]
      %s1014 = scalar_lea.vmem %s253, 20
      %v1015 = vld [vmem:[%s1014] sm:$0xf]
      %v1017 = vsel %vm288, %v1006, 0
      %v1020 = vsel %vm288, %v1007, 0
      %v1023 = vsel %vm288, %v1008, 0
      %v1026 = vsel %vm288, %v1009, 0
      %v1029 = vsel %vm288, %v1010, 0
      %v1032 = vsel %vm288, %v1011, 0
      %v1035 = vsel %vm288, %v1012, 0
      %v1038 = vsel %vm288, %v1013, 0
      %v1041 = vsel %vm313, %v1015, 0
      %1043 = vmatprep.subr.mxu0 0.0
      %1044 = vmatpush1.msra.mxu0 %v1041
      %1045 = vmatprep.subr.mxu0 0.0
      %1046 = vmatpush1.msra.mxu0 0.0
      %1047 = vmatprep.subr.mxu0 0.0
      %1048 = vmatpush1.msra.mxu0 0.0
      %1049 = vmatprep.subr.mxu0 0.0
      %1050 = vmatpush1.msra.mxu0 0.0
      %1051 = vmatprep.subr.mxu0 0.0
      %1052 = vmatpush1.msra.mxu0 0.0
      %1053 = vmatprep.subr.mxu0 0.0
      %1054 = vmatpush1.msra.mxu0 0.0
      %1055 = vmatprep.subr.mxu0 0.0
      %1056 = vmatpush1.msra.mxu0 0.0
      %1057 = vmatprep.subr.mxu0 0.0
      %1058 = vmatpush1.msra.mxu0 0.0
      %1059 = vmatprep.subr.mxu0 0.0
      %1060 = vmatpush1.msra.mxu0 0.0
      %1061 = vmatprep.subr.mxu0 0.0
      %1062 = vmatpush1.msra.mxu0 0.0
      %1063 = vmatprep.subr.mxu0 0.0
      %1064 = vmatpush1.msra.mxu0 0.0
      %1065 = vmatprep.subr.mxu0 0.0
      %1066 = vmatpush1.msra.mxu0 0.0
      %1067 = vmatprep.subr.mxu0 0.0
      %1068 = vmatpush1.msra.mxu0 0.0
      %1069 = vmatprep.subr.mxu0 0.0
      %1070 = vmatpush1.msra.mxu0 0.0
      %1071 = vmatprep.subr.mxu0 0.0
      %1072 = vmatpush1.msra.mxu0 0.0
      %1073 = vmatprep.subr.mxu0 0.0
      %1074 = vmatpush1.msra.mxu0 0.0
      %1075 = vmatprep.subr.mxu0 0.0
      %1076 = vmatpush1.msra.mxu0 0.0
      %1077 = vmatprep.subr.mxu0 0.0
      %1078 = vmatpush1.msra.mxu0 0.0
      %1079 = vmatprep.subr.mxu0 0.0
      %1080 = vmatpush1.msra.mxu0 0.0
      %1081 = vmatprep.subr.mxu0 0.0
      %1082 = vmatpush1.msra.mxu0 0.0
      %1083 = vmatprep.subr.mxu0 0.0
      %1084 = vmatpush1.msra.mxu0 0.0
      %1085 = vmatprep.subr.mxu0 0.0
      %1086 = vmatpush1.msra.mxu0 0.0
      %1087 = vmatprep.subr.mxu0 0.0
      %1088 = vmatpush1.msra.mxu0 0.0
      %1089 = vmatprep.subr.mxu0 0.0
      %1090 = vmatpush1.msra.mxu0 0.0
      %1091 = vmatprep.subr.mxu0 0.0
      %1092 = vmatpush1.msra.mxu0 0.0
      %1093 = vmatprep.subr.mxu0 0.0
      %1094 = vmatpush1.msra.mxu0 0.0
      %1095 = vmatprep.subr.mxu0 0.0
      %1096 = vmatpush1.msra.mxu0 0.0
      %1097 = vmatprep.subr.mxu0 0.0
      %1098 = vmatpush1.msra.mxu0 0.0
      %1099 = vmatprep.subr.mxu0 0.0
      %1100 = vmatpush1.msra.mxu0 0.0
      %1101 = vmatprep.subr.mxu0 0.0
      %1102 = vmatpush1.msra.mxu0 0.0
      %1103 = vmatprep.subr.mxu0 0.0
      %1104 = vmatpush1.msra.mxu0 0.0
      %1105 = vmatprep.subr.mxu0 0.0
      %1106 = vmatpush1.msra.mxu0 0.0
      %1107 = vmatprep.mubr.f32.mxu0 0.0
      %1108 = vmatmul.mubr.f32.gmra.mrb[0].mxu0 %v1017
      %v1109 = vpop.f32.mrb[0].mxu0
      %v1110 = vadd.f32 0.0, %v1109
      %v1111 = vpop.f32.mrb[0].mxu0
      %1112 = vmatprep.mubr.f32.mxu0 0.0
      %1113 = vmatmul.mubr.f32.gmra.mrb[0].mxu0 %v1020
      %v1114 = vpop.f32.mrb[0].mxu0
      %v1115 = vadd.f32 0.0, %v1114
      %v1116 = vpop.f32.mrb[0].mxu0
      %1117 = vmatprep.mubr.f32.mxu0 0.0
      %1118 = vmatmul.mubr.f32.gmra.mrb[0].mxu0 %v1023
      %v1119 = vpop.f32.mrb[0].mxu0
      %v1120 = vadd.f32 0.0, %v1119
      %v1121 = vpop.f32.mrb[0].mxu0
      %1122 = vmatprep.mubr.f32.mxu0 0.0
      %1123 = vmatmul.mubr.f32.gmra.mrb[0].mxu0 %v1026
      %v1124 = vpop.f32.mrb[0].mxu0
      %v1125 = vadd.f32 0.0, %v1124
      %v1126 = vpop.f32.mrb[0].mxu0
      %1127 = vmatprep.mubr.f32.mxu0 0.0
      %1128 = vmatmul.mubr.f32.gmra.mrb[0].mxu0 %v1029
      %v1129 = vpop.f32.mrb[0].mxu0
      %v1130 = vadd.f32 0.0, %v1129
      %v1131 = vpop.f32.mrb[0].mxu0
      %1132 = vmatprep.mubr.f32.mxu0 0.0
      %1133 = vmatmul.mubr.f32.gmra.mrb[0].mxu0 %v1032
      %v1134 = vpop.f32.mrb[0].mxu0
      %v1135 = vadd.f32 0.0, %v1134
      %v1136 = vpop.f32.mrb[0].mxu0
      %1137 = vmatprep.mubr.f32.mxu0 0.0
      %1138 = vmatmul.mubr.f32.gmra.mrb[0].mxu0 %v1035
      %v1139 = vpop.f32.mrb[0].mxu0
      %v1140 = vadd.f32 0.0, %v1139
      %v1141 = vpop.f32.mrb[0].mxu0
      %1142 = vmatprep.mubr.f32.mxu0 0.0
      %1143 = vmatmul.mubr.f32.gmra.mrb[0].mxu0 %v1038
      %v1144 = vpop.f32.mrb[0].mxu0
      %v1145 = vadd.f32 0.0, %v1144
      %v1146 = vpop.f32.mrb[0].mxu0
      %1147 = vdwg.mxu0
      %v1148 = vadd.f32 %v998, %v1110
      %v1149 = vadd.f32 %v999, %v1115
      %v1150 = vadd.f32 %v1000, %v1120
      %v1151 = vadd.f32 %v1001, %v1125
      %v1152 = vadd.f32 %v1002, %v1130
      %v1153 = vadd.f32 %v1003, %v1135
      %v1154 = vadd.f32 %v1004, %v1140
      %v1155 = vadd.f32 %v1005, %v1145
      %s1156 = scalar_lea.vmem %s248, 16
      %v1157 = vld [vmem:[%s1156] sm:$0xff]
      %v1158 = vld [vmem:[%s1156 + $0x10] sm:$0xff]
      %v1159 = vld [vmem:[%s1156 + $0x20] sm:$0xff]
      %v1160 = vld [vmem:[%s1156 + $0x30] sm:$0xff]
      %v1161 = vld [vmem:[%s1156 + $0x40] sm:$0xff]
      %v1162 = vld [vmem:[%s1156 + $0x50] sm:$0xff]
      %v1163 = vld [vmem:[%s1156 + $0x60] sm:$0xff]
      %v1164 = vld [vmem:[%s1156 + $0x70] sm:$0xff]
      %s1165 = scalar_lea.vmem %s253, 24
      %v1166 = vld [vmem:[%s1165] sm:$0xf]
      %v1168 = vsel %vm288, %v1157, 0
      %v1171 = vsel %vm288, %v1158, 0
      %v1174 = vsel %vm288, %v1159, 0
      %v1177 = vsel %vm288, %v1160, 0
      %v1180 = vsel %vm288, %v1161, 0
      %v1183 = vsel %vm288, %v1162, 0
      %v1186 = vsel %vm288, %v1163, 0
      %v1189 = vsel %vm288, %v1164, 0
      %v1192 = vsel %vm313, %v1166, 0
      %1194 = vmatprep.subr.mxu0 0.0
      %1195 = vmatpush1.msra.mxu0 %v1192
      %1196 = vmatprep.subr.mxu0 0.0
      %1197 = vmatpush1.msra.mxu0 0.0
      %1198 = vmatprep.subr.mxu0 0.0
      %1199 = vmatpush1.msra.mxu0 0.0
      %1200 = vmatprep.subr.mxu0 0.0
      %1201 = vmatpush1.msra.mxu0 0.0
      %1202 = vmatprep.subr.mxu0 0.0
      %1203 = vmatpush1.msra.mxu0 0.0
      %1204 = vmatprep.subr.mxu0 0.0
      %1205 = vmatpush1.msra.mxu0 0.0
      %1206 = vmatprep.subr.mxu0 0.0
      %1207 = vmatpush1.msra.mxu0 0.0
      %1208 = vmatprep.subr.mxu0 0.0
      %1209 = vmatpush1.msra.mxu0 0.0
      %1210 = vmatprep.subr.mxu0 0.0
      %1211 = vmatpush1.msra.mxu0 0.0
      %1212 = vmatprep.subr.mxu0 0.0
      %1213 = vmatpush1.msra.mxu0 0.0
      %1214 = vmatprep.subr.mxu0 0.0
      %1215 = vmatpush1.msra.mxu0 0.0
      %1216 = vmatprep.subr.mxu0 0.0
      %1217 = vmatpush1.msra.mxu0 0.0
      %1218 = vmatprep.subr.mxu0 0.0
      %1219 = vmatpush1.msra.mxu0 0.0
      %1220 = vmatprep.subr.mxu0 0.0
      %1221 = vmatpush1.msra.mxu0 0.0
      %1222 = vmatprep.subr.mxu0 0.0
      %1223 = vmatpush1.msra.mxu0 0.0
      %1224 = vmatprep.subr.mxu0 0.0
      %1225 = vmatpush1.msra.mxu0 0.0
      %1226 = vmatprep.subr.mxu0 0.0
      %1227 = vmatpush1.msra.mxu0 0.0
      %1228 = vmatprep.subr.mxu0 0.0
      %1229 = vmatpush1.msra.mxu0 0.0
      %1230 = vmatprep.subr.mxu0 0.0
      %1231 = vmatpush1.msra.mxu0 0.0
      %1232 = vmatprep.subr.mxu0 0.0
      %1233 = vmatpush1.msra.mxu0 0.0
      %1234 = vmatprep.subr.mxu0 0.0
      %1235 = vmatpush1.msra.mxu0 0.0
      %1236 = vmatprep.subr.mxu0 0.0
      %1237 = vmatpush1.msra.mxu0 0.0
      %1238 = vmatprep.subr.mxu0 0.0
      %1239 = vmatpush1.msra.mxu0 0.0
      %1240 = vmatprep.subr.mxu0 0.0
      %1241 = vmatpush1.msra.mxu0 0.0
      %1242 = vmatprep.subr.mxu0 0.0
      %1243 = vmatpush1.msra.mxu0 0.0
      %1244 = vmatprep.subr.mxu0 0.0
      %1245 = vmatpush1.msra.mxu0 0.0
      %1246 = vmatprep.subr.mxu0 0.0
      %1247 = vmatpush1.msra.mxu0 0.0
      %1248 = vmatprep.subr.mxu0 0.0
      %1249 = vmatpush1.msra.mxu0 0.0
      %1250 = vmatprep.subr.mxu0 0.0
      %1251 = vmatpush1.msra.mxu0 0.0
      %1252 = vmatprep.subr.mxu0 0.0
      %1253 = vmatpush1.msra.mxu0 0.0
      %1254 = vmatprep.subr.mxu0 0.0
      %1255 = vmatpush1.msra.mxu0 0.0
      %1256 = vmatprep.subr.mxu0 0.0
      %1257 = vmatpush1.msra.mxu0 0.0
      %1258 = vmatprep.mubr.f32.mxu0 0.0
      %1259 = vmatmul.mubr.f32.gmra.mrb[0].mxu0 %v1168
      %v1260 = vpop.f32.mrb[0].mxu0
      %v1261 = vadd.f32 0.0, %v1260
      %v1262 = vpop.f32.mrb[0].mxu0
      %1263 = vmatprep.mubr.f32.mxu0 0.0
      %1264 = vmatmul.mubr.f32.gmra.mrb[0].mxu0 %v1171
      %v1265 = vpop.f32.mrb[0].mxu0
      %v1266 = vadd.f32 0.0, %v1265
      %v1267 = vpop.f32.mrb[0].mxu0
      %1268 = vmatprep.mubr.f32.mxu0 0.0
      %1269 = vmatmul.mubr.f32.gmra.mrb[0].mxu0 %v1174
      %v1270 = vpop.f32.mrb[0].mxu0
      %v1271 = vadd.f32 0.0, %v1270
      %v1272 = vpop.f32.mrb[0].mxu0
      %1273 = vmatprep.mubr.f32.mxu0 0.0
      %1274 = vmatmul.mubr.f32.gmra.mrb[0].mxu0 %v1177
      %v1275 = vpop.f32.mrb[0].mxu0
      %v1276 = vadd.f32 0.0, %v1275
      %v1277 = vpop.f32.mrb[0].mxu0
      %1278 = vmatprep.mubr.f32.mxu0 0.0
      %1279 = vmatmul.mubr.f32.gmra.mrb[0].mxu0 %v1180
      %v1280 = vpop.f32.mrb[0].mxu0
      %v1281 = vadd.f32 0.0, %v1280
      %v1282 = vpop.f32.mrb[0].mxu0
      %1283 = vmatprep.mubr.f32.mxu0 0.0
      %1284 = vmatmul.mubr.f32.gmra.mrb[0].mxu0 %v1183
      %v1285 = vpop.f32.mrb[0].mxu0
      %v1286 = vadd.f32 0.0, %v1285
      %v1287 = vpop.f32.mrb[0].mxu0
      %1288 = vmatprep.mubr.f32.mxu0 0.0
      %1289 = vmatmul.mubr.f32.gmra.mrb[0].mxu0 %v1186
      %v1290 = vpop.f32.mrb[0].mxu0
      %v1291 = vadd.f32 0.0, %v1290
      %v1292 = vpop.f32.mrb[0].mxu0
      %1293 = vmatprep.mubr.f32.mxu0 0.0
      %1294 = vmatmul.mubr.f32.gmra.mrb[0].mxu0 %v1189
      %v1295 = vpop.f32.mrb[0].mxu0
      %v1296 = vadd.f32 0.0, %v1295
      %v1297 = vpop.f32.mrb[0].mxu0
      %1298 = vdwg.mxu0
      %v1299 = vadd.f32 %v1148, %v1261
      %v1300 = vadd.f32 %v1149, %v1266
      %v1301 = vadd.f32 %v1150, %v1271
      %v1302 = vadd.f32 %v1151, %v1276
      %v1303 = vadd.f32 %v1152, %v1281
      %v1304 = vadd.f32 %v1153, %v1286
      %v1305 = vadd.f32 %v1154, %v1291
      %v1306 = vadd.f32 %v1155, %v1296
      %s1307 = scalar_lea.vmem %s248, 160
      %v1308 = vld [vmem:[%s1307] sm:$0xff]
      %v1309 = vld [vmem:[%s1307 + $0x10] sm:$0xff]
      %v1310 = vld [vmem:[%s1307 + $0x20] sm:$0xff]
      %v1311 = vld [vmem:[%s1307 + $0x30] sm:$0xff]
      %v1312 = vld [vmem:[%s1307 + $0x40] sm:$0xff]
      %v1313 = vld [vmem:[%s1307 + $0x50] sm:$0xff]
      %v1314 = vld [vmem:[%s1307 + $0x60] sm:$0xff]
      %v1315 = vld [vmem:[%s1307 + $0x70] sm:$0xff]
      %s1316 = scalar_lea.vmem %s253, 28
      %v1317 = vld [vmem:[%s1316] sm:$0xf]
      %v1319 = vsel %vm288, %v1308, 0
      %v1322 = vsel %vm288, %v1309, 0
      %v1325 = vsel %vm288, %v1310, 0
      %v1328 = vsel %vm288, %v1311, 0
      %v1331 = vsel %vm288, %v1312, 0
      %v1334 = vsel %vm288, %v1313, 0
      %v1337 = vsel %vm288, %v1314, 0
      %v1340 = vsel %vm288, %v1315, 0
      %v1343 = vsel %vm313, %v1317, 0
      %1345 = vmatprep.subr.mxu0 0.0
      %1346 = vmatpush1.msra.mxu0 %v1343
      %1347 = vmatprep.subr.mxu0 0.0
      %1348 = vmatpush1.msra.mxu0 0.0
      %1349 = vmatprep.subr.mxu0 0.0
      %1350 = vmatpush1.msra.mxu0 0.0
      %1351 = vmatprep.subr.mxu0 0.0
      %1352 = vmatpush1.msra.mxu0 0.0
      %1353 = vmatprep.subr.mxu0 0.0
      %1354 = vmatpush1.msra.mxu0 0.0
      %1355 = vmatprep.subr.mxu0 0.0
      %1356 = vmatpush1.msra.mxu0 0.0
      %1357 = vmatprep.subr.mxu0 0.0
      %1358 = vmatpush1.msra.mxu0 0.0
      %1359 = vmatprep.subr.mxu0 0.0
      %1360 = vmatpush1.msra.mxu0 0.0
      %1361 = vmatprep.subr.mxu0 0.0
      %1362 = vmatpush1.msra.mxu0 0.0
      %1363 = vmatprep.subr.mxu0 0.0
      %1364 = vmatpush1.msra.mxu0 0.0
      %1365 = vmatprep.subr.mxu0 0.0
      %1366 = vmatpush1.msra.mxu0 0.0
      %1367 = vmatprep.subr.mxu0 0.0
      %1368 = vmatpush1.msra.mxu0 0.0
      %1369 = vmatprep.subr.mxu0 0.0
      %1370 = vmatpush1.msra.mxu0 0.0
      %1371 = vmatprep.subr.mxu0 0.0
      %1372 = vmatpush1.msra.mxu0 0.0
      %1373 = vmatprep.subr.mxu0 0.0
      %1374 = vmatpush1.msra.mxu0 0.0
      %1375 = vmatprep.subr.mxu0 0.0
      %1376 = vmatpush1.msra.mxu0 0.0
      %1377 = vmatprep.subr.mxu0 0.0
      %1378 = vmatpush1.msra.mxu0 0.0
      %1379 = vmatprep.subr.mxu0 0.0
      %1380 = vmatpush1.msra.mxu0 0.0
      %1381 = vmatprep.subr.mxu0 0.0
      %1382 = vmatpush1.msra.mxu0 0.0
      %1383 = vmatprep.subr.mxu0 0.0
      %1384 = vmatpush1.msra.mxu0 0.0
      %1385 = vmatprep.subr.mxu0 0.0
      %1386 = vmatpush1.msra.mxu0 0.0
      %1387 = vmatprep.subr.mxu0 0.0
      %1388 = vmatpush1.msra.mxu0 0.0
      %1389 = vmatprep.subr.mxu0 0.0
      %1390 = vmatpush1.msra.mxu0 0.0
      %1391 = vmatprep.subr.mxu0 0.0
      %1392 = vmatpush1.msra.mxu0 0.0
      %1393 = vmatprep.subr.mxu0 0.0
      %1394 = vmatpush1.msra.mxu0 0.0
      %1395 = vmatprep.subr.mxu0 0.0
      %1396 = vmatpush1.msra.mxu0 0.0
      %1397 = vmatprep.subr.mxu0 0.0
      %1398 = vmatpush1.msra.mxu0 0.0
      %1399 = vmatprep.subr.mxu0 0.0
      %1400 = vmatpush1.msra.mxu0 0.0
      %1401 = vmatprep.subr.mxu0 0.0
      %1402 = vmatpush1.msra.mxu0 0.0
      %1403 = vmatprep.subr.mxu0 0.0
      %1404 = vmatpush1.msra.mxu0 0.0
      %1405 = vmatprep.subr.mxu0 0.0
      %1406 = vmatpush1.msra.mxu0 0.0
      %1407 = vmatprep.subr.mxu0 0.0
      %1408 = vmatpush1.msra.mxu0 0.0
      %1409 = vmatprep.mubr.f32.mxu0 0.0
      %1410 = vmatmul.mubr.f32.gmra.mrb[0].mxu0 %v1319
      %v1411 = vpop.f32.mrb[0].mxu0
      %v1412 = vadd.f32 0.0, %v1411
      %v1413 = vpop.f32.mrb[0].mxu0
      %1414 = vmatprep.mubr.f32.mxu0 0.0
      %1415 = vmatmul.mubr.f32.gmra.mrb[0].mxu0 %v1322
      %v1416 = vpop.f32.mrb[0].mxu0
      %v1417 = vadd.f32 0.0, %v1416
      %v1418 = vpop.f32.mrb[0].mxu0
      %1419 = vmatprep.mubr.f32.mxu0 0.0
      %1420 = vmatmul.mubr.f32.gmra.mrb[0].mxu0 %v1325
      %v1421 = vpop.f32.mrb[0].mxu0
      %v1422 = vadd.f32 0.0, %v1421
      %v1423 = vpop.f32.mrb[0].mxu0
      %1424 = vmatprep.mubr.f32.mxu0 0.0
      %1425 = vmatmul.mubr.f32.gmra.mrb[0].mxu0 %v1328
      %v1426 = vpop.f32.mrb[0].mxu0
      %v1427 = vadd.f32 0.0, %v1426
      %v1428 = vpop.f32.mrb[0].mxu0
      %1429 = vmatprep.mubr.f32.mxu0 0.0
      %1430 = vmatmul.mubr.f32.gmra.mrb[0].mxu0 %v1331
      %v1431 = vpop.f32.mrb[0].mxu0
      %v1432 = vadd.f32 0.0, %v1431
      %v1433 = vpop.f32.mrb[0].mxu0
      %1434 = vmatprep.mubr.f32.mxu0 0.0
      %1435 = vmatmul.mubr.f32.gmra.mrb[0].mxu0 %v1334
      %v1436 = vpop.f32.mrb[0].mxu0
      %v1437 = vadd.f32 0.0, %v1436
      %v1438 = vpop.f32.mrb[0].mxu0
      %1439 = vmatprep.mubr.f32.mxu0 0.0
      %1440 = vmatmul.mubr.f32.gmra.mrb[0].mxu0 %v1337
      %v1441 = vpop.f32.mrb[0].mxu0
      %v1442 = vadd.f32 0.0, %v1441
      %v1443 = vpop.f32.mrb[0].mxu0
      %1444 = vmatprep.mubr.f32.mxu0 0.0
      %1445 = vmatmul.mubr.f32.gmra.mrb[0].mxu0 %v1340
      %v1446 = vpop.f32.mrb[0].mxu0
      %v1447 = vadd.f32 0.0, %v1446
      %v1448 = vpop.f32.mrb[0].mxu0
      %1449 = vdwg.mxu0
      %v1450 = vadd.f32 %v1299, %v1412
      %v1451 = vadd.f32 %v1300, %v1417
      %v1452 = vadd.f32 %v1301, %v1422
      %v1453 = vadd.f32 %v1302, %v1427
      %v1454 = vadd.f32 %v1303, %v1432
      %v1455 = vadd.f32 %v1304, %v1437
      %v1456 = vadd.f32 %v1305, %v1442
      %v1457 = vadd.f32 %v1306, %v1447
      %v1458 = vld [vmem:[%s1156 + $0x1] sm:$0xff]
      %v1459 = vld [vmem:[%s1156 + $0x11] sm:$0xff]
      %v1460 = vld [vmem:[%s1156 + $0x21] sm:$0xff]
      %v1461 = vld [vmem:[%s1156 + $0x31] sm:$0xff]
      %v1462 = vld [vmem:[%s1156 + $0x41] sm:$0xff]
      %v1463 = vld [vmem:[%s1156 + $0x51] sm:$0xff]
      %v1464 = vld [vmem:[%s1156 + $0x61] sm:$0xff]
      %v1465 = vld [vmem:[%s1156 + $0x71] sm:$0xff]
      %s1466 = scalar_lea.vmem %s253, 32
      %v1467 = vld [vmem:[%s1466] sm:$0xf]
      %v1469 = vsel %vm288, %v1458, 0
      %v1472 = vsel %vm288, %v1459, 0
      %v1475 = vsel %vm288, %v1460, 0
      %v1478 = vsel %vm288, %v1461, 0
      %v1481 = vsel %vm288, %v1462, 0
      %v1484 = vsel %vm288, %v1463, 0
      %v1487 = vsel %vm288, %v1464, 0
      %v1490 = vsel %vm288, %v1465, 0
      %v1493 = vsel %vm313, %v1467, 0
      %1495 = vmatprep.subr.mxu0 0.0
      %1496 = vmatpush1.msra.mxu0 %v1493
      %1497 = vmatprep.subr.mxu0 0.0
      %1498 = vmatpush1.msra.mxu0 0.0
      %1499 = vmatprep.subr.mxu0 0.0
      %1500 = vmatpush1.msra.mxu0 0.0
      %1501 = vmatprep.subr.mxu0 0.0
      %1502 = vmatpush1.msra.mxu0 0.0
      %1503 = vmatprep.subr.mxu0 0.0
      %1504 = vmatpush1.msra.mxu0 0.0
      %1505 = vmatprep.subr.mxu0 0.0
      %1506 = vmatpush1.msra.mxu0 0.0
      %1507 = vmatprep.subr.mxu0 0.0
      %1508 = vmatpush1.msra.mxu0 0.0
      %1509 = vmatprep.subr.mxu0 0.0
      %1510 = vmatpush1.msra.mxu0 0.0
      %1511 = vmatprep.subr.mxu0 0.0
      %1512 = vmatpush1.msra.mxu0 0.0
      %1513 = vmatprep.subr.mxu0 0.0
      %1514 = vmatpush1.msra.mxu0 0.0
      %1515 = vmatprep.subr.mxu0 0.0
      %1516 = vmatpush1.msra.mxu0 0.0
      %1517 = vmatprep.subr.mxu0 0.0
      %1518 = vmatpush1.msra.mxu0 0.0
      %1519 = vmatprep.subr.mxu0 0.0
      %1520 = vmatpush1.msra.mxu0 0.0
      %1521 = vmatprep.subr.mxu0 0.0
      %1522 = vmatpush1.msra.mxu0 0.0
      %1523 = vmatprep.subr.mxu0 0.0
      %1524 = vmatpush1.msra.mxu0 0.0
      %1525 = vmatprep.subr.mxu0 0.0
      %1526 = vmatpush1.msra.mxu0 0.0
      %1527 = vmatprep.subr.mxu0 0.0
      %1528 = vmatpush1.msra.mxu0 0.0
      %1529 = vmatprep.subr.mxu0 0.0
      %1530 = vmatpush1.msra.mxu0 0.0
      %1531 = vmatprep.subr.mxu0 0.0
      %1532 = vmatpush1.msra.mxu0 0.0
      %1533 = vmatprep.subr.mxu0 0.0
      %1534 = vmatpush1.msra.mxu0 0.0
      %1535 = vmatprep.subr.mxu0 0.0
      %1536 = vmatpush1.msra.mxu0 0.0
      %1537 = vmatprep.subr.mxu0 0.0
      %1538 = vmatpush1.msra.mxu0 0.0
      %1539 = vmatprep.subr.mxu0 0.0
      %1540 = vmatpush1.msra.mxu0 0.0
      %1541 = vmatprep.subr.mxu0 0.0
      %1542 = vmatpush1.msra.mxu0 0.0
      %1543 = vmatprep.subr.mxu0 0.0
      %1544 = vmatpush1.msra.mxu0 0.0
      %1545 = vmatprep.subr.mxu0 0.0
      %1546 = vmatpush1.msra.mxu0 0.0
      %1547 = vmatprep.subr.mxu0 0.0
      %1548 = vmatpush1.msra.mxu0 0.0
      %1549 = vmatprep.subr.mxu0 0.0
      %1550 = vmatpush1.msra.mxu0 0.0
      %1551 = vmatprep.subr.mxu0 0.0
      %1552 = vmatpush1.msra.mxu0 0.0
      %1553 = vmatprep.subr.mxu0 0.0
      %1554 = vmatpush1.msra.mxu0 0.0
      %1555 = vmatprep.subr.mxu0 0.0
      %1556 = vmatpush1.msra.mxu0 0.0
      %1557 = vmatprep.subr.mxu0 0.0
      %1558 = vmatpush1.msra.mxu0 0.0
      %1559 = vmatprep.mubr.f32.mxu0 0.0
      %1560 = vmatmul.mubr.f32.gmra.mrb[0].mxu0 %v1469
      %v1561 = vpop.f32.mrb[0].mxu0
      %v1562 = vadd.f32 0.0, %v1561
      %v1563 = vpop.f32.mrb[0].mxu0
      %1564 = vmatprep.mubr.f32.mxu0 0.0
      %1565 = vmatmul.mubr.f32.gmra.mrb[0].mxu0 %v1472
      %v1566 = vpop.f32.mrb[0].mxu0
      %v1567 = vadd.f32 0.0, %v1566
      %v1568 = vpop.f32.mrb[0].mxu0
      %1569 = vmatprep.mubr.f32.mxu0 0.0
      %1570 = vmatmul.mubr.f32.gmra.mrb[0].mxu0 %v1475
      %v1571 = vpop.f32.mrb[0].mxu0
      %v1572 = vadd.f32 0.0, %v1571
      %v1573 = vpop.f32.mrb[0].mxu0
      %1574 = vmatprep.mubr.f32.mxu0 0.0
      %1575 = vmatmul.mubr.f32.gmra.mrb[0].mxu0 %v1478
      %v1576 = vpop.f32.mrb[0].mxu0
      %v1577 = vadd.f32 0.0, %v1576
      %v1578 = vpop.f32.mrb[0].mxu0
      %1579 = vmatprep.mubr.f32.mxu0 0.0
      %1580 = vmatmul.mubr.f32.gmra.mrb[0].mxu0 %v1481
      %v1581 = vpop.f32.mrb[0].mxu0
      %v1582 = vadd.f32 0.0, %v1581
      %v1583 = vpop.f32.mrb[0].mxu0
      %1584 = vmatprep.mubr.f32.mxu0 0.0
      %1585 = vmatmul.mubr.f32.gmra.mrb[0].mxu0 %v1484
      %v1586 = vpop.f32.mrb[0].mxu0
      %v1587 = vadd.f32 0.0, %v1586
      %v1588 = vpop.f32.mrb[0].mxu0
      %1589 = vmatprep.mubr.f32.mxu0 0.0
      %1590 = vmatmul.mubr.f32.gmra.mrb[0].mxu0 %v1487
      %v1591 = vpop.f32.mrb[0].mxu0
      %v1592 = vadd.f32 0.0, %v1591
      %v1593 = vpop.f32.mrb[0].mxu0
      %1594 = vmatprep.mubr.f32.mxu0 0.0
      %1595 = vmatmul.mubr.f32.gmra.mrb[0].mxu0 %v1490
      %v1596 = vpop.f32.mrb[0].mxu0
      %v1597 = vadd.f32 0.0, %v1596
      %v1598 = vpop.f32.mrb[0].mxu0
      %1599 = vdwg.mxu0
      %v1600 = vadd.f32 %v1450, %v1562
      %v1601 = vadd.f32 %v1451, %v1567
      %v1602 = vadd.f32 %v1452, %v1572
      %v1603 = vadd.f32 %v1453, %v1577
      %v1604 = vadd.f32 %v1454, %v1582
      %v1605 = vadd.f32 %v1455, %v1587
      %v1606 = vadd.f32 %v1456, %v1592
      %v1607 = vadd.f32 %v1457, %v1597
      %v1608 = vld [vmem:[%s256] sm:$0x1]
      %v1610 = vlaneseq
      %v1611 = vshrl.u32 %v1610, 7
      %v1612 = vsub.s32 0, %v1611
      %v1613 = vrot.slane %v1608, %v1612
      %v1615 = vmul.f32 %v1600, %v1613
      %v1616 = vmul.f32 %v1601, %v1613
      %v1617 = vmul.f32 %v1602, %v1613
      %v1618 = vmul.f32 %v1603, %v1613
      %v1619 = vmul.f32 %v1604, %v1613
      %v1620 = vmul.f32 %v1605, %v1613
      %v1621 = vmul.f32 %v1606, %v1613
      %v1622 = vmul.f32 %v1607, %v1613
      %v1623 = vld [vmem:[%s259] sm:$0x1]
      %v1625 = vlaneseq
      %v1626 = vshrl.u32 %v1625, 7
      %v1627 = vsub.s32 0, %v1626
      %v1628 = vrot.slane %v1623, %v1627
      %v1630 = vadd.f32 %v1615, %v1628
      %v1631 = vadd.f32 %v1616, %v1628
      %v1632 = vadd.f32 %v1617, %v1628
      %v1633 = vadd.f32 %v1618, %v1628
      %v1634 = vadd.f32 %v1619, %v1628
      %v1635 = vadd.f32 %v1620, %v1628
      %v1636 = vadd.f32 %v1621, %v1628
      %v1637 = vadd.f32 %v1622, %v1628
      %v1638 = vmax.f32 %v1630, 0.0
      %v1639 = vmax.f32 %v1631, 0.0
      %v1640 = vmax.f32 %v1632, 0.0
      %v1641 = vmax.f32 %v1633, 0.0
      %v1642 = vmax.f32 %v1634, 0.0
      %v1643 = vmax.f32 %v1635, 0.0
      %v1644 = vmax.f32 %v1636, 0.0
      %v1645 = vmax.f32 %v1637, 0.0
      %1646 = vst.msk [vmem:[%s267] sm:$0xff] %vm288, %v1638
      %1647 = vst.msk [vmem:[%s267 + $0x8] sm:$0xff] %vm288, %v1639
      %1648 = vst.msk [vmem:[%s267 + $0x10] sm:$0xff] %vm288, %v1640
      %1649 = vst.msk [vmem:[%s267 + $0x18] sm:$0xff] %vm288, %v1641
      %1650 = vst.msk [vmem:[%s267 + $0x20] sm:$0xff] %vm288, %v1642
      %1651 = vst.msk [vmem:[%s267 + $0x28] sm:$0xff] %vm288, %v1643
      %1652 = vst.msk [vmem:[%s267 + $0x30] sm:$0xff] %vm288, %v1644
      %1653 = vst.msk [vmem:[%s267 + $0x38] sm:$0xff] %vm288, %v1645
      %p1654 = scmp.lt.s32.totalorder %s19, 1
      %s1655 = scalar_select %p1654, %s19, 1
      %p1656 = scmp.lt.s32.totalorder %s20, 0
      %s1657 = scalar_select %p1656, %s20, 0
      %s1658 = smul.addr %s1655, 8
      %s1659 = sadd.s32 %s1657, %s1658
      %s1660 = smul.addr %s1659, 8
      %s1661 = scalar_lea.vmem %s4, %s1660
      // Predicated region
      $region37: #{bottleneck_forward.4} parent=35 // pred_check
        %p1662 = pneg %p151
      $region38: #{bottleneck_forward.4} parent=35 // pred_check_branch
        %1664 = sbr.rel (%p1662) target = $region40
      $region39: #{bottleneck_forward.4} parent=35 // pred_region
        _
      $region40: #{bottleneck_forward.4} parent=35 // pred_fallthru
        _
    $region36: #{bottleneck_forward.4} parent=5 // pred_fallthru
      _
    %p1665 = scmp.le.s32.totalorder 2, %s10
    // Predicated region
    $region41: #{bottleneck_forward.4} parent=5 // pred_check
      %p1666 = pneg %p1665
    $region42: #{bottleneck_forward.4} parent=5 // pred_check_branch
      %1668 = sbr.rel (%p1666) target = $region44
    $region43: #{bottleneck_forward.4} parent=5 // pred_region
      %s1669 = ssub.s32 %s10, 2
      // Predicated region
      $region45: #{bottleneck_forward.4} parent=43 // pred_check
        %p1670 = pneg %p157
      $region46: #{bottleneck_forward.4} parent=43 // pred_check_branch
        %1672 = sbr.rel (%p1670) target = $region48
      $region47: #{bottleneck_forward.4} parent=43 // pred_region
        %p1673 = scmp.lt.s32.totalorder %s21, 1
        %s1674 = scalar_select %p1673, %s21, 1
        %p1675 = scmp.lt.s32.totalorder %s22, 0
        %s1676 = scalar_select %p1675, %s22, 0
        %s1677 = smul.addr %s1674, 8
        %s1678 = sadd.s32 %s1676, %s1677
        %s1679 = smul.addr %s1678, 8
        %s1680 = scalar_lea.vmem %s4, %s1679
      $region48: #{bottleneck_forward.4} parent=43 // pred_fallthru
        _
    $region44: #{bottleneck_forward.4} parent=5 // pred_fallthru
      _
  $region6: #{bottleneck_forward.4} parent=0 // loop_footer
    %s14 = sadd.s32 1, %s10
  $region7: #{bottleneck_forward.4} parent=0 // loop_footer_branch
    %9 = sbr.rel target = $region3
  $region8: #{bottleneck_forward.4} parent=0 // loop_exit
    _

</llo_original>
